<compile_context>
chip_gen: v6e
topology: v6e:2x2x1
jax: 0.10.0
libtpu: 0.0.40
codegen_flags: <defaults>
</compile_context>

<pallas_src>
import functools

import jax
import jax.numpy as jnp
from jax.experimental import pallas as pl
from jax.experimental.pallas import tpu as pltpu


# ---------------------------------------------------------------------------
# Kernel: fused 3x3 conv (9 accumulated matmuls) + LSTM gate math + state update
# ---------------------------------------------------------------------------
def convlstm_kernel(xp_ref, cprev_ref, w_ref, b_ref, h_ref, c_ref, *,
                    wp: int, rows_out: int, row_chunk: int):
    # xp_ref:    (1, rows_in, Cin_p)  bf16  flattened cylinder-padded concat(x, h_prev)
    # cprev_ref: (1, rows_out, Ch)    f32   previous cell state (width padded to W+2)
    # w_ref:     (9, Cin_p, 4*Ch)     bf16  per-tap weights, tap t = dy*3 + dx
    # b_ref:     (1, 4*Ch)            f32   bias
    # h_ref:     (1, rows_out, Ch)    h_dtype (bf16 in rollouts)
    # c_ref:     (1, rows_out, Ch)    f32
    four_ch = b_ref.shape[-1]
    ch = four_ch // 4

    # Per-lane activation constants (hoisted out of the chunk loop):
    #   lanes [0, Ch)      -> tanh(z)                 (s=1, a=0)
    #   lanes [Ch, 4*Ch)   -> sigmoid(z) = 0.5*tanh(0.5*z) + 0.5   (s=0.5, a=0.5)
    lane = jax.lax.broadcasted_iota(jnp.int32, (1, four_ch), 1)
    is_gate = lane >= ch
    a_scale = jnp.where(is_gate, 0.5, 1.0).astype(jnp.float32)
    a_shift = jnp.where(is_gate, 0.5, 0.0).astype(jnp.float32)

    bias = b_ref[...]                                   # (1, 4*Ch)

    for c0 in range(0, rows_out, row_chunk):            # static Python loop (chunk count is static)
        m = min(row_chunk, rows_out - c0)

        # 3x3 conv == sum over 9 taps of row-shifted K=Cin_p matmuls on the flat image.
        def tap(t):
            off = (t // 3) * wp + (t % 3)                # dy*(W+2) + dx
            lhs = xp_ref[0, c0 + off:c0 + off + m, :]    # (m, Cin_p) bf16, static slice
            return jnp.dot(lhs, w_ref[t], preferred_element_type=jnp.float32)

        z = tap(0)
        for t in range(1, 9):
            z = z + tap(t)
        z = z + bias                                     # (m, 4*Ch) f32

        # One full-width (128-lane) EUP pass: [tanh(netin) | sig(i) | sig(f) | sig(o)].
        act = a_scale * jnp.tanh(a_scale * z) + a_shift

        g = act[:, 0 * ch:1 * ch]
        i = act[:, 1 * ch:2 * ch]
        f = act[:, 2 * ch:3 * ch]
        o = act[:, 3 * ch:4 * ch]

        c_prev = cprev_ref[0, c0:c0 + m, :]
        c_new = f * c_prev + i * g
        h_new = o * jnp.tanh(c_new)

        c_ref[0, c0:c0 + m, :] = c_new                   # c always f32
        h_ref[0, c0:c0 + m, :] = h_new.astype(h_ref.dtype)


# ---------------------------------------------------------------------------
# Wrapper glue (NHWC core + NCHW compatibility shim)
# ---------------------------------------------------------------------------
def _round_up(v, m):
    return (v + m - 1) // m * m


def convlstm_cell_step_nhwc(x_nhwc, h_prev_nhwc, c_prev_nhwc, w_oihw, bias, hidden_size,
                            *, row_chunk=256, compute_dtype=jnp.bfloat16, h_dtype=None):
    """One ConvLSTMCell step.  All tensors NHWC; in a recurrent rollout keep h/c in NHWC and
    pass h_dtype=jnp.bfloat16 (h is only re-consumed as a bf16 MXU operand next step)."""
    B, H, W, Ci = x_nhwc.shape
    Ch = hidden_size
    Cin = Ci + Ch
    Cin_p = _round_up(Cin, 16)          # bf16 sublane-aligned contraction dim per tap
    Wp = W + 2
    rows_out = H * Wp                   # one conv row per *padded* column (2 junk cols/row)
    rows_in = (H + 3) * Wp              # 1 top + 2 bottom zero rows: covers the dy=2,dx=2 tap
                                        # of the last (junk) output row without any OOB read.
    h_dtype = x_nhwc.dtype if h_dtype is None else h_dtype

    # concat(x, h_prev) in bf16 (+ zero channel padding), then CylinderPad:
    # circular in width (longitude), zero in height (latitude).
    pad_c = jnp.zeros((B, H, W, Cin_p - Cin), compute_dtype)
    xc = jnp.concatenate(
        [x_nhwc.astype(compute_dtype), h_prev_nhwc.astype(compute_dtype), pad_c], axis=-1)
    xc = jnp.concatenate([xc[:, :, -1:, :], xc, xc[:, :, :1, :]], axis=2)   # circular width
    xp = jnp.pad(xc, ((0, 0), (1, 2), (0, 0), (0, 0)))                       # zero height (1 top, 2 bottom)
    xp_flat = xp.reshape(B, rows_in, Cin_p)

    # c_prev on the same flat (H, W+2) row layout (values in the 2 junk cols are irrelevant).
    c_flat = jnp.pad(c_prev_nhwc.astype(jnp.float32), ((0, 0), (0, 0), (0, 2), (0, 0)))
    c_flat = c_flat.reshape(B, rows_out, Ch)

    # (O, I, kh, kw) -> (kh*kw, I_padded, O); tap index t = dy*3 + dx matches the kernel offsets.
    w_taps = jnp.transpose(w_oihw, (2, 3, 1, 0)).reshape(9, Cin, 4 * Ch)
    w_taps = jnp.pad(w_taps, ((0, 0), (0, Cin_p - Cin), (0, 0))).astype(compute_dtype)
    b2d = bias.reshape(1, 4 * Ch).astype(jnp.float32)

    kernel = functools.partial(convlstm_kernel, wp=Wp, rows_out=rows_out,
                               row_chunk=min(row_chunk, rows_out))

    h_flat, c_out_flat = pl.pallas_call(
        kernel,
        out_shape=(
            jax.ShapeDtypeStruct((B, rows_out, Ch), h_dtype),
            jax.ShapeDtypeStruct((B, rows_out, Ch), jnp.float32),
        ),
        grid_spec=pltpu.PrefetchScalarGridSpec(
            num_scalar_prefetch=0,
            grid=(B,),
            in_specs=[
                pl.BlockSpec((1, rows_in, Cin_p), lambda b: (b, 0, 0)),
                pl.BlockSpec((1, rows_out, Ch), lambda b: (b, 0, 0)),
                pl.BlockSpec((9, Cin_p, 4 * Ch), lambda b: (0, 0, 0)),  # weights stay resident
                pl.BlockSpec((1, 4 * Ch), lambda b: (0, 0)),            # bias stays resident
            ],
            out_specs=[
                pl.BlockSpec((1, rows_out, Ch), lambda b: (b, 0, 0)),
                pl.BlockSpec((1, rows_out, Ch), lambda b: (b, 0, 0)),
            ],
        ),
        compiler_params=pltpu.CompilerParams(dimension_semantics=("parallel",)),
    )(xp_flat, c_flat, w_taps, b2d)

    # Drop the 2 junk (wrap) columns per row.
    h_out = h_flat.reshape(B, H, Wp, Ch)[:, :, :W, :]
    c_out = c_out_flat.reshape(B, H, Wp, Ch)[:, :, :W, :]
    return h_out, c_out


def convlstm_cell_forward(x_nchw, h_prev_nchw, c_prev_nchw, w_oihw, bias, hidden_size, **kw):
    """PyTorch-compatible (NCHW) interface. For a recurrent rollout, call
    convlstm_cell_step_nhwc directly and keep h/c in NHWC so these transposes happen once
    outside the time loop, not per step.  c is always returned in f32."""
    x = jnp.transpose(x_nchw, (0, 2, 3, 1))
    h_prev = jnp.transpose(h_prev_nchw, (0, 2, 3, 1))
    c_prev = jnp.transpose(c_prev_nchw, (0, 2, 3, 1))
    h, c = convlstm_cell_step_nhwc(x, h_prev, c_prev, w_oihw, bias, hidden_size, **kw)
    return jnp.transpose(h, (0, 3, 1, 2)), jnp.transpose(c, (0, 3, 1, 2))


# ---------------------------------------------------------------------------
# Pure-JAX reference matching the PyTorch module semantics (NCHW)
# ---------------------------------------------------------------------------
def convlstm_cell_reference(x_nchw, h_prev_nchw, c_prev_nchw, w_oihw, bias, hidden_size,
                            compute_dtype=jnp.float32):
    xc = jnp.concatenate([x_nchw, h_prev_nchw], axis=1)
    # CylinderPad: circular width, zero height.
    xp = jnp.concatenate([xc[..., -1:], xc, xc[..., :1]], axis=-1)
    xp = jnp.pad(xp, ((0, 0), (0, 0), (1, 1), (0, 0)))
    conv = jax.lax.conv_general_dilated(
        xp.astype(compute_dtype), w_oihw.astype(compute_dtype),
        window_strides=(1, 1), padding="VALID",
        dimension_numbers=("NCHW", "OIHW", "NCHW"),
        preferred_element_type=jnp.float32,
    ) + bias[None, :, None, None]
    Ch = hidden_size
    netin = conv[:, 0 * Ch:1 * Ch]
    igate = conv[:, 1 * Ch:2 * Ch]
    fgate = conv[:, 2 * Ch:3 * Ch]
    ogate = conv[:, 3 * Ch:4 * Ch]
    c_curr = jax.nn.sigmoid(fgate) * c_prev_nchw + jax.nn.sigmoid(igate) * jnp.tanh(netin)
    h_curr = jax.nn.sigmoid(ogate) * jnp.tanh(c_curr)
    return h_curr, c_curr


if __name__ == "__main__":
    # Small shapes consistent with the module.
    batch_size = 2
    input_size = 4
    hidden_size = 32
    height = 16
    width = 16

    key = jax.random.PRNGKey(0)
    kx, kh, kc, kw_key, kb = jax.random.split(key, 5)

    x = jax.random.normal(kx, (batch_size, input_size, height, width), jnp.float32)
    h_prev = jax.random.normal(kh, (batch_size, hidden_size, height, width), jnp.float32)
    c_prev = jax.random.normal(kc, (batch_size, hidden_size, height, width), jnp.float32)

    # Deterministic init mirroring reset_parameters(): U(-std, std), std = 1/sqrt(hidden_size)
    std = 1.0 / jnp.sqrt(jnp.float32(hidden_size))
    cin = input_size + hidden_size
    w_oihw = jax.random.uniform(kw_key, (4 * hidden_size, cin, 3, 3), jnp.float32, -std, std)
    bias = jax.random.uniform(kb, (4 * hidden_size,), jnp.float32, -std, std)

    fwd = jax.jit(lambda a, b, c, w, bi: convlstm_cell_forward(a, b, c, w, bi, hidden_size))
    h_out, c_out = fwd(x, h_prev, c_prev, w_oihw, bias)
    jax.block_until_ready((h_out, c_out))

    assert h_out.shape == (batch_size, hidden_size, height, width)
    assert c_out.shape == (batch_size, hidden_size, height, width)
    assert h_out.dtype == jnp.float32 and c_out.dtype == jnp.float32

    # Tight check vs a reference using the same bf16 MXU operands / f32 accumulation.
    h_b, c_b = convlstm_cell_reference(x, h_prev, c_prev, w_oihw, bias, hidden_size,
                                       compute_dtype=jnp.bfloat16)
    assert jnp.allclose(h_out, h_b, atol=2e-3, rtol=2e-3), float(jnp.max(jnp.abs(h_out - h_b)))
    assert jnp.allclose(c_out, c_b, atol=2e-3, rtol=2e-3), float(jnp.max(jnp.abs(c_out - c_b)))

    # Loose check vs the full-f32 PyTorch-equivalent reference (bf16 operand tolerance).
    h_f, c_f = convlstm_cell_reference(x, h_prev, c_prev, w_oihw, bias, hidden_size,
                                       compute_dtype=jnp.float32)
    assert jnp.allclose(h_out, h_f, atol=5e-2, rtol=5e-2), float(jnp.max(jnp.abs(h_out - h_f)))
    assert jnp.allclose(c_out, c_f, atol=5e-2, rtol=5e-2), float(jnp.max(jnp.abs(c_out - c_f)))

    # Rollout-oriented NHWC variant: h emitted in bf16, c always f32.
    to_nhwc = lambda t: jnp.transpose(t, (0, 2, 3, 1))
    step16 = jax.jit(lambda a, b, c, w, bi: convlstm_cell_step_nhwc(
        a, b, c, w, bi, hidden_size, h_dtype=jnp.bfloat16))
    h16, c16 = step16(to_nhwc(x), to_nhwc(h_prev), to_nhwc(c_prev), w_oihw, bias)
    jax.block_until_ready((h16, c16))
    assert h16.dtype == jnp.bfloat16 and c16.dtype == jnp.float32
    assert jnp.allclose(h16.astype(jnp.float32), to_nhwc(h_out), atol=1e-2, rtol=1e-2)
    assert jnp.allclose(c16, to_nhwc(c_out), atol=1e-5, rtol=1e-5)

    print("KERNEL_OK")
</pallas_src>

<mosaic_0001>
module attributes {stable_mosaic.version = 11 : i64} {
  func.func @convlstm_kernel(%arg0: i32, %arg1: memref<1x342x48xbf16, #tpu.memory_space<vmem>>, %arg2: memref<1x288x32xf32, #tpu.memory_space<vmem>>, %arg3: memref<9x48x128xbf16, #tpu.memory_space<vmem>>, %arg4: memref<1x128xf32, #tpu.memory_space<vmem>>, %arg5: memref<1x288x32xf32, #tpu.memory_space<vmem>>, %arg6: memref<1x288x32xf32, #tpu.memory_space<vmem>>) attributes {dimension_semantics = [#tpu.dimension_semantics<parallel>], iteration_bounds = array<i64: 2>, scalar_prefetch = 0 : i64, scratch_operands = 0 : i64, tpu.core_type = #tpu.core_type<tc>, window_params = [{transform_indices = @transform_0, window_bounds = array<i64: 1, 342, 48>}, {transform_indices = @transform_1, window_bounds = array<i64: 1, 288, 32>}, {pipeline_mode = #tpu.pipeline_mode<synchronous>, transform_indices = @transform_2, window_bounds = array<i64: 9, 48, 128>}, {pipeline_mode = #tpu.pipeline_mode<synchronous>, transform_indices = @transform_3, window_bounds = array<i64: 1, 128>}, {transform_indices = @transform_4, window_bounds = array<i64: 1, 288, 32>}, {transform_indices = @transform_5, window_bounds = array<i64: 1, 288, 32>}]} {
    %0 = tpu.iota {dimensions = array<i32: 1>} : vector<1x128xi32>
    %c32_i32 = arith.constant 32 : i32
    %1 = vector.broadcast %c32_i32 : i32 to vector<1x128xi32>
    %2 = arith.cmpi sge, %0, %1 : vector<1x128xi32>
    %cst = arith.constant 5.000000e-01 : f32
    %cst_0 = arith.constant 1.000000e+00 : f32
    %3 = vector.broadcast %cst : f32 to vector<1x128xf32>
    %4 = vector.broadcast %cst_0 : f32 to vector<1x128xf32>
    %5 = arith.select %2, %3, %4 : vector<1x128xi1>, vector<1x128xf32>
    %cst_1 = arith.constant 5.000000e-01 : f32
    %cst_2 = arith.constant 0.000000e+00 : f32
    %6 = vector.broadcast %cst_1 : f32 to vector<1x128xf32>
    %7 = vector.broadcast %cst_2 : f32 to vector<1x128xf32>
    %8 = arith.select %2, %6, %7 : vector<1x128xi1>, vector<1x128xf32>
    %c0 = arith.constant 0 : index
    %c0_3 = arith.constant 0 : index
    %9 = vector.load %arg4[%c0, %c0_3] : memref<1x128xf32, #tpu.memory_space<vmem>>, vector<1x128xf32>
    %c0_4 = arith.constant 0 : index
    %c0_5 = arith.constant 0 : index
    %c0_6 = arith.constant 0 : index
    %10 = vector.load %arg1[%c0_4, %c0_5, %c0_6] : memref<1x342x48xbf16, #tpu.memory_space<vmem>>, vector<1x256x48xbf16>
    %11 = vector.shape_cast %10 : vector<1x256x48xbf16> to vector<256x48xbf16>
    %c0_7 = arith.constant 0 : index
    %c0_8 = arith.constant 0 : index
    %c0_9 = arith.constant 0 : index
    %12 = vector.load %arg3[%c0_7, %c0_8, %c0_9] : memref<9x48x128xbf16, #tpu.memory_space<vmem>>, vector<1x48x128xbf16>
    %13 = vector.shape_cast %12 : vector<1x48x128xbf16> to vector<48x128xbf16>
    %cst_10 = arith.constant dense<0.000000e+00> : vector<256x128xf32>
    %14 = tpu.matmul %11, %13, %cst_10 {dimension_numbers = #tpu.dot_dimension_numbers<[1], [0], [0], [1], [0, 0, 1, 1], [], []>} : vector<256x48xbf16>, vector<48x128xbf16>, vector<256x128xf32> -> vector<256x128xf32>
    %c0_11 = arith.constant 0 : index
    %c1 = arith.constant 1 : index
    %c0_12 = arith.constant 0 : index
    %15 = vector.load %arg1[%c0_11, %c1, %c0_12] : memref<1x342x48xbf16, #tpu.memory_space<vmem>>, vector<1x256x48xbf16>
    %16 = vector.shape_cast %15 : vector<1x256x48xbf16> to vector<256x48xbf16>
    %c1_13 = arith.constant 1 : index
    %c0_14 = arith.constant 0 : index
    %c0_15 = arith.constant 0 : index
    %17 = vector.load %arg3[%c1_13, %c0_14, %c0_15] : memref<9x48x128xbf16, #tpu.memory_space<vmem>>, vector<1x48x128xbf16>
    %18 = vector.shape_cast %17 : vector<1x48x128xbf16> to vector<48x128xbf16>
    %cst_16 = arith.constant dense<0.000000e+00> : vector<256x128xf32>
    %19 = tpu.matmul %16, %18, %cst_16 {dimension_numbers = #tpu.dot_dimension_numbers<[1], [0], [0], [1], [0, 0, 1, 1], [], []>} : vector<256x48xbf16>, vector<48x128xbf16>, vector<256x128xf32> -> vector<256x128xf32>
    %20 = arith.addf %14, %19 : vector<256x128xf32>
    %c0_17 = arith.constant 0 : index
    %c2 = arith.constant 2 : index
    %c0_18 = arith.constant 0 : index
    %21 = vector.load %arg1[%c0_17, %c2, %c0_18] : memref<1x342x48xbf16, #tpu.memory_space<vmem>>, vector<1x256x48xbf16>
    %22 = vector.shape_cast %21 : vector<1x256x48xbf16> to vector<256x48xbf16>
    %c2_19 = arith.constant 2 : index
    %c0_20 = arith.constant 0 : index
    %c0_21 = arith.constant 0 : index
    %23 = vector.load %arg3[%c2_19, %c0_20, %c0_21] : memref<9x48x128xbf16, #tpu.memory_space<vmem>>, vector<1x48x128xbf16>
    %24 = vector.shape_cast %23 : vector<1x48x128xbf16> to vector<48x128xbf16>
    %cst_22 = arith.constant dense<0.000000e+00> : vector<256x128xf32>
    %25 = tpu.matmul %22, %24, %cst_22 {dimension_numbers = #tpu.dot_dimension_numbers<[1], [0], [0], [1], [0, 0, 1, 1], [], []>} : vector<256x48xbf16>, vector<48x128xbf16>, vector<256x128xf32> -> vector<256x128xf32>
    %26 = arith.addf %20, %25 : vector<256x128xf32>
    %c0_23 = arith.constant 0 : index
    %c18 = arith.constant 18 : index
    %c0_24 = arith.constant 0 : index
    %27 = vector.load %arg1[%c0_23, %c18, %c0_24] : memref<1x342x48xbf16, #tpu.memory_space<vmem>>, vector<1x256x48xbf16>
    %28 = vector.shape_cast %27 : vector<1x256x48xbf16> to vector<256x48xbf16>
    %c3 = arith.constant 3 : index
    %c0_25 = arith.constant 0 : index
    %c0_26 = arith.constant 0 : index
    %29 = vector.load %arg3[%c3, %c0_25, %c0_26] : memref<9x48x128xbf16, #tpu.memory_space<vmem>>, vector<1x48x128xbf16>
    %30 = vector.shape_cast %29 : vector<1x48x128xbf16> to vector<48x128xbf16>
    %cst_27 = arith.constant dense<0.000000e+00> : vector<256x128xf32>
    %31 = tpu.matmul %28, %30, %cst_27 {dimension_numbers = #tpu.dot_dimension_numbers<[1], [0], [0], [1], [0, 0, 1, 1], [], []>} : vector<256x48xbf16>, vector<48x128xbf16>, vector<256x128xf32> -> vector<256x128xf32>
    %32 = arith.addf %26, %31 : vector<256x128xf32>
    %c0_28 = arith.constant 0 : index
    %c19 = arith.constant 19 : index
    %c0_29 = arith.constant 0 : index
    %33 = vector.load %arg1[%c0_28, %c19, %c0_29] : memref<1x342x48xbf16, #tpu.memory_space<vmem>>, vector<1x256x48xbf16>
    %34 = vector.shape_cast %33 : vector<1x256x48xbf16> to vector<256x48xbf16>
    %c4 = arith.constant 4 : index
    %c0_30 = arith.constant 0 : index
    %c0_31 = arith.constant 0 : index
    %35 = vector.load %arg3[%c4, %c0_30, %c0_31] : memref<9x48x128xbf16, #tpu.memory_space<vmem>>, vector<1x48x128xbf16>
    %36 = vector.shape_cast %35 : vector<1x48x128xbf16> to vector<48x128xbf16>
    %cst_32 = arith.constant dense<0.000000e+00> : vector<256x128xf32>
    %37 = tpu.matmul %34, %36, %cst_32 {dimension_numbers = #tpu.dot_dimension_numbers<[1], [0], [0], [1], [0, 0, 1, 1], [], []>} : vector<256x48xbf16>, vector<48x128xbf16>, vector<256x128xf32> -> vector<256x128xf32>
    %38 = arith.addf %32, %37 : vector<256x128xf32>
    %c0_33 = arith.constant 0 : index
    %c20 = arith.constant 20 : index
    %c0_34 = arith.constant 0 : index
    %39 = vector.load %arg1[%c0_33, %c20, %c0_34] : memref<1x342x48xbf16, #tpu.memory_space<vmem>>, vector<1x256x48xbf16>
    %40 = vector.shape_cast %39 : vector<1x256x48xbf16> to vector<256x48xbf16>
    %c5 = arith.constant 5 : index
    %c0_35 = arith.constant 0 : index
    %c0_36 = arith.constant 0 : index
    %41 = vector.load %arg3[%c5, %c0_35, %c0_36] : memref<9x48x128xbf16, #tpu.memory_space<vmem>>, vector<1x48x128xbf16>
    %42 = vector.shape_cast %41 : vector<1x48x128xbf16> to vector<48x128xbf16>
    %cst_37 = arith.constant dense<0.000000e+00> : vector<256x128xf32>
    %43 = tpu.matmul %40, %42, %cst_37 {dimension_numbers = #tpu.dot_dimension_numbers<[1], [0], [0], [1], [0, 0, 1, 1], [], []>} : vector<256x48xbf16>, vector<48x128xbf16>, vector<256x128xf32> -> vector<256x128xf32>
    %44 = arith.addf %38, %43 : vector<256x128xf32>
    %c0_38 = arith.constant 0 : index
    %c36 = arith.constant 36 : index
    %c0_39 = arith.constant 0 : index
    %45 = vector.load %arg1[%c0_38, %c36, %c0_39] : memref<1x342x48xbf16, #tpu.memory_space<vmem>>, vector<1x256x48xbf16>
    %46 = vector.shape_cast %45 : vector<1x256x48xbf16> to vector<256x48xbf16>
    %c6 = arith.constant 6 : index
    %c0_40 = arith.constant 0 : index
    %c0_41 = arith.constant 0 : index
    %47 = vector.load %arg3[%c6, %c0_40, %c0_41] : memref<9x48x128xbf16, #tpu.memory_space<vmem>>, vector<1x48x128xbf16>
    %48 = vector.shape_cast %47 : vector<1x48x128xbf16> to vector<48x128xbf16>
    %cst_42 = arith.constant dense<0.000000e+00> : vector<256x128xf32>
    %49 = tpu.matmul %46, %48, %cst_42 {dimension_numbers = #tpu.dot_dimension_numbers<[1], [0], [0], [1], [0, 0, 1, 1], [], []>} : vector<256x48xbf16>, vector<48x128xbf16>, vector<256x128xf32> -> vector<256x128xf32>
    %50 = arith.addf %44, %49 : vector<256x128xf32>
    %c0_43 = arith.constant 0 : index
    %c37 = arith.constant 37 : index
    %c0_44 = arith.constant 0 : index
    %51 = vector.load %arg1[%c0_43, %c37, %c0_44] : memref<1x342x48xbf16, #tpu.memory_space<vmem>>, vector<1x256x48xbf16>
    %52 = vector.shape_cast %51 : vector<1x256x48xbf16> to vector<256x48xbf16>
    %c7 = arith.constant 7 : index
    %c0_45 = arith.constant 0 : index
    %c0_46 = arith.constant 0 : index
    %53 = vector.load %arg3[%c7, %c0_45, %c0_46] : memref<9x48x128xbf16, #tpu.memory_space<vmem>>, vector<1x48x128xbf16>
    %54 = vector.shape_cast %53 : vector<1x48x128xbf16> to vector<48x128xbf16>
    %cst_47 = arith.constant dense<0.000000e+00> : vector<256x128xf32>
    %55 = tpu.matmul %52, %54, %cst_47 {dimension_numbers = #tpu.dot_dimension_numbers<[1], [0], [0], [1], [0, 0, 1, 1], [], []>} : vector<256x48xbf16>, vector<48x128xbf16>, vector<256x128xf32> -> vector<256x128xf32>
    %56 = arith.addf %50, %55 : vector<256x128xf32>
    %c0_48 = arith.constant 0 : index
    %c38 = arith.constant 38 : index
    %c0_49 = arith.constant 0 : index
    %57 = vector.load %arg1[%c0_48, %c38, %c0_49] : memref<1x342x48xbf16, #tpu.memory_space<vmem>>, vector<1x256x48xbf16>
    %58 = vector.shape_cast %57 : vector<1x256x48xbf16> to vector<256x48xbf16>
    %c8 = arith.constant 8 : index
    %c0_50 = arith.constant 0 : index
    %c0_51 = arith.constant 0 : index
    %59 = vector.load %arg3[%c8, %c0_50, %c0_51] : memref<9x48x128xbf16, #tpu.memory_space<vmem>>, vector<1x48x128xbf16>
    %60 = vector.shape_cast %59 : vector<1x48x128xbf16> to vector<48x128xbf16>
    %cst_52 = arith.constant dense<0.000000e+00> : vector<256x128xf32>
    %61 = tpu.matmul %58, %60, %cst_52 {dimension_numbers = #tpu.dot_dimension_numbers<[1], [0], [0], [1], [0, 0, 1, 1], [], []>} : vector<256x48xbf16>, vector<48x128xbf16>, vector<256x128xf32> -> vector<256x128xf32>
    %62 = arith.addf %56, %61 : vector<256x128xf32>
    %63 = vector.broadcast %9 : vector<1x128xf32> to vector<256x128xf32>
    %64 = arith.addf %62, %63 : vector<256x128xf32>
    %65 = vector.broadcast %5 : vector<1x128xf32> to vector<256x128xf32>
    %66 = arith.mulf %65, %64 : vector<256x128xf32>
    %67 = math.tanh %66 : vector<256x128xf32>
    %68 = vector.broadcast %5 : vector<1x128xf32> to vector<256x128xf32>
    %69 = arith.mulf %68, %67 : vector<256x128xf32>
    %70 = vector.broadcast %8 : vector<1x128xf32> to vector<256x128xf32>
    %71 = arith.addf %69, %70 : vector<256x128xf32>
    %72 = vector.extract_strided_slice %71 {offsets = [0, 0], sizes = [256, 32], strides = [1, 1]} : vector<256x128xf32> to vector<256x32xf32>
    %73 = vector.extract_strided_slice %71 {offsets = [0, 32], sizes = [256, 32], strides = [1, 1]} : vector<256x128xf32> to vector<256x32xf32>
    %74 = vector.extract_strided_slice %71 {offsets = [0, 64], sizes = [256, 32], strides = [1, 1]} : vector<256x128xf32> to vector<256x32xf32>
    %75 = vector.extract_strided_slice %71 {offsets = [0, 96], sizes = [256, 32], strides = [1, 1]} : vector<256x128xf32> to vector<256x32xf32>
    %c0_53 = arith.constant 0 : index
    %c0_54 = arith.constant 0 : index
    %c0_55 = arith.constant 0 : index
    %76 = vector.load %arg2[%c0_53, %c0_54, %c0_55] : memref<1x288x32xf32, #tpu.memory_space<vmem>>, vector<1x256x32xf32>
    %77 = vector.shape_cast %76 : vector<1x256x32xf32> to vector<256x32xf32>
    %78 = arith.mulf %74, %77 : vector<256x32xf32>
    %79 = arith.mulf %73, %72 : vector<256x32xf32>
    %80 = arith.addf %78, %79 : vector<256x32xf32>
    %81 = math.tanh %80 : vector<256x32xf32>
    %82 = arith.mulf %75, %81 : vector<256x32xf32>
    %c0_56 = arith.constant 0 : index
    %c0_57 = arith.constant 0 : index
    %c0_58 = arith.constant 0 : index
    %83 = vector.load %arg6[%c0_56, %c0_57, %c0_58] : memref<1x288x32xf32, #tpu.memory_space<vmem>>, vector<1x256x32xf32>
    %84 = vector.shape_cast %83 : vector<1x256x32xf32> to vector<256x32xf32>
    %85 = vector.shape_cast %80 : vector<256x32xf32> to vector<1x256x32xf32>
    tpu.vector_store %arg6[%c0_56, %c0_57, %c0_58], %85 {strides = array<i32>} : memref<1x288x32xf32, #tpu.memory_space<vmem>>, vector<1x256x32xf32>,
    %c0_59 = arith.constant 0 : index
    %c0_60 = arith.constant 0 : index
    %c0_61 = arith.constant 0 : index
    %86 = vector.load %arg5[%c0_59, %c0_60, %c0_61] : memref<1x288x32xf32, #tpu.memory_space<vmem>>, vector<1x256x32xf32>
    %87 = vector.shape_cast %86 : vector<1x256x32xf32> to vector<256x32xf32>
    %88 = vector.shape_cast %82 : vector<256x32xf32> to vector<1x256x32xf32>
    tpu.vector_store %arg5[%c0_59, %c0_60, %c0_61], %88 {strides = array<i32>} : memref<1x288x32xf32, #tpu.memory_space<vmem>>, vector<1x256x32xf32>,
    %c0_62 = arith.constant 0 : index
    %c256 = arith.constant 256 : index
    %c0_63 = arith.constant 0 : index
    %89 = vector.load %arg1[%c0_62, %c256, %c0_63] : memref<1x342x48xbf16, #tpu.memory_space<vmem>>, vector<1x32x48xbf16>
    %90 = vector.shape_cast %89 : vector<1x32x48xbf16> to vector<32x48xbf16>
    %c0_64 = arith.constant 0 : index
    %c0_65 = arith.constant 0 : index
    %c0_66 = arith.constant 0 : index
    %91 = vector.load %arg3[%c0_64, %c0_65, %c0_66] : memref<9x48x128xbf16, #tpu.memory_space<vmem>>, vector<1x48x128xbf16>
    %92 = vector.shape_cast %91 : vector<1x48x128xbf16> to vector<48x128xbf16>
    %cst_67 = arith.constant dense<0.000000e+00> : vector<32x128xf32>
    %93 = tpu.matmul %90, %92, %cst_67 {dimension_numbers = #tpu.dot_dimension_numbers<[1], [0], [0], [1], [0, 0, 1, 1], [], []>} : vector<32x48xbf16>, vector<48x128xbf16>, vector<32x128xf32> -> vector<32x128xf32>
    %c0_68 = arith.constant 0 : index
    %c257 = arith.constant 257 : index
    %c0_69 = arith.constant 0 : index
    %94 = vector.load %arg1[%c0_68, %c257, %c0_69] : memref<1x342x48xbf16, #tpu.memory_space<vmem>>, vector<1x32x48xbf16>
    %95 = vector.shape_cast %94 : vector<1x32x48xbf16> to vector<32x48xbf16>
    %c1_70 = arith.constant 1 : index
    %c0_71 = arith.constant 0 : index
    %c0_72 = arith.constant 0 : index
    %96 = vector.load %arg3[%c1_70, %c0_71, %c0_72] : memref<9x48x128xbf16, #tpu.memory_space<vmem>>, vector<1x48x128xbf16>
    %97 = vector.shape_cast %96 : vector<1x48x128xbf16> to vector<48x128xbf16>
    %cst_73 = arith.constant dense<0.000000e+00> : vector<32x128xf32>
    %98 = tpu.matmul %95, %97, %cst_73 {dimension_numbers = #tpu.dot_dimension_numbers<[1], [0], [0], [1], [0, 0, 1, 1], [], []>} : vector<32x48xbf16>, vector<48x128xbf16>, vector<32x128xf32> -> vector<32x128xf32>
    %99 = arith.addf %93, %98 : vector<32x128xf32>
    %c0_74 = arith.constant 0 : index
    %c258 = arith.constant 258 : index
    %c0_75 = arith.constant 0 : index
    %100 = vector.load %arg1[%c0_74, %c258, %c0_75] : memref<1x342x48xbf16, #tpu.memory_space<vmem>>, vector<1x32x48xbf16>
    %101 = vector.shape_cast %100 : vector<1x32x48xbf16> to vector<32x48xbf16>
    %c2_76 = arith.constant 2 : index
    %c0_77 = arith.constant 0 : index
    %c0_78 = arith.constant 0 : index
    %102 = vector.load %arg3[%c2_76, %c0_77, %c0_78] : memref<9x48x128xbf16, #tpu.memory_space<vmem>>, vector<1x48x128xbf16>
    %103 = vector.shape_cast %102 : vector<1x48x128xbf16> to vector<48x128xbf16>
    %cst_79 = arith.constant dense<0.000000e+00> : vector<32x128xf32>
    %104 = tpu.matmul %101, %103, %cst_79 {dimension_numbers = #tpu.dot_dimension_numbers<[1], [0], [0], [1], [0, 0, 1, 1], [], []>} : vector<32x48xbf16>, vector<48x128xbf16>, vector<32x128xf32> -> vector<32x128xf32>
    %105 = arith.addf %99, %104 : vector<32x128xf32>
    %c0_80 = arith.constant 0 : index
    %c274 = arith.constant 274 : index
    %c0_81 = arith.constant 0 : index
    %106 = vector.load %arg1[%c0_80, %c274, %c0_81] : memref<1x342x48xbf16, #tpu.memory_space<vmem>>, vector<1x32x48xbf16>
    %107 = vector.shape_cast %106 : vector<1x32x48xbf16> to vector<32x48xbf16>
    %c3_82 = arith.constant 3 : index
    %c0_83 = arith.constant 0 : index
    %c0_84 = arith.constant 0 : index
    %108 = vector.load %arg3[%c3_82, %c0_83, %c0_84] : memref<9x48x128xbf16, #tpu.memory_space<vmem>>, vector<1x48x128xbf16>
    %109 = vector.shape_cast %108 : vector<1x48x128xbf16> to vector<48x128xbf16>
    %cst_85 = arith.constant dense<0.000000e+00> : vector<32x128xf32>
    %110 = tpu.matmul %107, %109, %cst_85 {dimension_numbers = #tpu.dot_dimension_numbers<[1], [0], [0], [1], [0, 0, 1, 1], [], []>} : vector<32x48xbf16>, vector<48x128xbf16>, vector<32x128xf32> -> vector<32x128xf32>
    %111 = arith.addf %105, %110 : vector<32x128xf32>
    %c0_86 = arith.constant 0 : index
    %c275 = arith.constant 275 : index
    %c0_87 = arith.constant 0 : index
    %112 = vector.load %arg1[%c0_86, %c275, %c0_87] : memref<1x342x48xbf16, #tpu.memory_space<vmem>>, vector<1x32x48xbf16>
    %113 = vector.shape_cast %112 : vector<1x32x48xbf16> to vector<32x48xbf16>
    %c4_88 = arith.constant 4 : index
    %c0_89 = arith.constant 0 : index
    %c0_90 = arith.constant 0 : index
    %114 = vector.load %arg3[%c4_88, %c0_89, %c0_90] : memref<9x48x128xbf16, #tpu.memory_space<vmem>>, vector<1x48x128xbf16>
    %115 = vector.shape_cast %114 : vector<1x48x128xbf16> to vector<48x128xbf16>
    %cst_91 = arith.constant dense<0.000000e+00> : vector<32x128xf32>
    %116 = tpu.matmul %113, %115, %cst_91 {dimension_numbers = #tpu.dot_dimension_numbers<[1], [0], [0], [1], [0, 0, 1, 1], [], []>} : vector<32x48xbf16>, vector<48x128xbf16>, vector<32x128xf32> -> vector<32x128xf32>
    %117 = arith.addf %111, %116 : vector<32x128xf32>
    %c0_92 = arith.constant 0 : index
    %c276 = arith.constant 276 : index
    %c0_93 = arith.constant 0 : index
    %118 = vector.load %arg1[%c0_92, %c276, %c0_93] : memref<1x342x48xbf16, #tpu.memory_space<vmem>>, vector<1x32x48xbf16>
    %119 = vector.shape_cast %118 : vector<1x32x48xbf16> to vector<32x48xbf16>
    %c5_94 = arith.constant 5 : index
    %c0_95 = arith.constant 0 : index
    %c0_96 = arith.constant 0 : index
    %120 = vector.load %arg3[%c5_94, %c0_95, %c0_96] : memref<9x48x128xbf16, #tpu.memory_space<vmem>>, vector<1x48x128xbf16>
    %121 = vector.shape_cast %120 : vector<1x48x128xbf16> to vector<48x128xbf16>
    %cst_97 = arith.constant dense<0.000000e+00> : vector<32x128xf32>
    %122 = tpu.matmul %119, %121, %cst_97 {dimension_numbers = #tpu.dot_dimension_numbers<[1], [0], [0], [1], [0, 0, 1, 1], [], []>} : vector<32x48xbf16>, vector<48x128xbf16>, vector<32x128xf32> -> vector<32x128xf32>
    %123 = arith.addf %117, %122 : vector<32x128xf32>
    %c0_98 = arith.constant 0 : index
    %c292 = arith.constant 292 : index
    %c0_99 = arith.constant 0 : index
    %124 = vector.load %arg1[%c0_98, %c292, %c0_99] : memref<1x342x48xbf16, #tpu.memory_space<vmem>>, vector<1x32x48xbf16>
    %125 = vector.shape_cast %124 : vector<1x32x48xbf16> to vector<32x48xbf16>
    %c6_100 = arith.constant 6 : index
    %c0_101 = arith.constant 0 : index
    %c0_102 = arith.constant 0 : index
    %126 = vector.load %arg3[%c6_100, %c0_101, %c0_102] : memref<9x48x128xbf16, #tpu.memory_space<vmem>>, vector<1x48x128xbf16>
    %127 = vector.shape_cast %126 : vector<1x48x128xbf16> to vector<48x128xbf16>
    %cst_103 = arith.constant dense<0.000000e+00> : vector<32x128xf32>
    %128 = tpu.matmul %125, %127, %cst_103 {dimension_numbers = #tpu.dot_dimension_numbers<[1], [0], [0], [1], [0, 0, 1, 1], [], []>} : vector<32x48xbf16>, vector<48x128xbf16>, vector<32x128xf32> -> vector<32x128xf32>
    %129 = arith.addf %123, %128 : vector<32x128xf32>
    %c0_104 = arith.constant 0 : index
    %c293 = arith.constant 293 : index
    %c0_105 = arith.constant 0 : index
    %130 = vector.load %arg1[%c0_104, %c293, %c0_105] : memref<1x342x48xbf16, #tpu.memory_space<vmem>>, vector<1x32x48xbf16>
    %131 = vector.shape_cast %130 : vector<1x32x48xbf16> to vector<32x48xbf16>
    %c7_106 = arith.constant 7 : index
    %c0_107 = arith.constant 0 : index
    %c0_108 = arith.constant 0 : index
    %132 = vector.load %arg3[%c7_106, %c0_107, %c0_108] : memref<9x48x128xbf16, #tpu.memory_space<vmem>>, vector<1x48x128xbf16>
    %133 = vector.shape_cast %132 : vector<1x48x128xbf16> to vector<48x128xbf16>
    %cst_109 = arith.constant dense<0.000000e+00> : vector<32x128xf32>
    %134 = tpu.matmul %131, %133, %cst_109 {dimension_numbers = #tpu.dot_dimension_numbers<[1], [0], [0], [1], [0, 0, 1, 1], [], []>} : vector<32x48xbf16>, vector<48x128xbf16>, vector<32x128xf32> -> vector<32x128xf32>
    %135 = arith.addf %129, %134 : vector<32x128xf32>
    %c0_110 = arith.constant 0 : index
    %c294 = arith.constant 294 : index
    %c0_111 = arith.constant 0 : index
    %136 = vector.load %arg1[%c0_110, %c294, %c0_111] : memref<1x342x48xbf16, #tpu.memory_space<vmem>>, vector<1x32x48xbf16>
    %137 = vector.shape_cast %136 : vector<1x32x48xbf16> to vector<32x48xbf16>
    %c8_112 = arith.constant 8 : index
    %c0_113 = arith.constant 0 : index
    %c0_114 = arith.constant 0 : index
    %138 = vector.load %arg3[%c8_112, %c0_113, %c0_114] : memref<9x48x128xbf16, #tpu.memory_space<vmem>>, vector<1x48x128xbf16>
    %139 = vector.shape_cast %138 : vector<1x48x128xbf16> to vector<48x128xbf16>
    %cst_115 = arith.constant dense<0.000000e+00> : vector<32x128xf32>
    %140 = tpu.matmul %137, %139, %cst_115 {dimension_numbers = #tpu.dot_dimension_numbers<[1], [0], [0], [1], [0, 0, 1, 1], [], []>} : vector<32x48xbf16>, vector<48x128xbf16>, vector<32x128xf32> -> vector<32x128xf32>
    %141 = arith.addf %135, %140 : vector<32x128xf32>
    %142 = vector.broadcast %9 : vector<1x128xf32> to vector<32x128xf32>
    %143 = arith.addf %141, %142 : vector<32x128xf32>
    %144 = vector.broadcast %5 : vector<1x128xf32> to vector<32x128xf32>
    %145 = arith.mulf %144, %143 : vector<32x128xf32>
    %146 = math.tanh %145 : vector<32x128xf32>
    %147 = vector.broadcast %5 : vector<1x128xf32> to vector<32x128xf32>
    %148 = arith.mulf %147, %146 : vector<32x128xf32>
    %149 = vector.broadcast %8 : vector<1x128xf32> to vector<32x128xf32>
    %150 = arith.addf %148, %149 : vector<32x128xf32>
    %151 = vector.extract_strided_slice %150 {offsets = [0, 0], sizes = [32, 32], strides = [1, 1]} : vector<32x128xf32> to vector<32x32xf32>
    %152 = vector.extract_strided_slice %150 {offsets = [0, 32], sizes = [32, 32], strides = [1, 1]} : vector<32x128xf32> to vector<32x32xf32>
    %153 = vector.extract_strided_slice %150 {offsets = [0, 64], sizes = [32, 32], strides = [1, 1]} : vector<32x128xf32> to vector<32x32xf32>
    %154 = vector.extract_strided_slice %150 {offsets = [0, 96], sizes = [32, 32], strides = [1, 1]} : vector<32x128xf32> to vector<32x32xf32>
    %c0_116 = arith.constant 0 : index
    %c256_117 = arith.constant 256 : index
    %c0_118 = arith.constant 0 : index
    %155 = vector.load %arg2[%c0_116, %c256_117, %c0_118] : memref<1x288x32xf32, #tpu.memory_space<vmem>>, vector<1x32x32xf32>
    %156 = vector.shape_cast %155 : vector<1x32x32xf32> to vector<32x32xf32>
    %157 = arith.mulf %153, %156 : vector<32x32xf32>
    %158 = arith.mulf %152, %151 : vector<32x32xf32>
    %159 = arith.addf %157, %158 : vector<32x32xf32>
    %160 = math.tanh %159 : vector<32x32xf32>
    %161 = arith.mulf %154, %160 : vector<32x32xf32>
    %c0_119 = arith.constant 0 : index
    %c256_120 = arith.constant 256 : index
    %c0_121 = arith.constant 0 : index
    %162 = vector.load %arg6[%c0_119, %c256_120, %c0_121] : memref<1x288x32xf32, #tpu.memory_space<vmem>>, vector<1x32x32xf32>
    %163 = vector.shape_cast %162 : vector<1x32x32xf32> to vector<32x32xf32>
    %164 = vector.shape_cast %159 : vector<32x32xf32> to vector<1x32x32xf32>
    tpu.vector_store %arg6[%c0_119, %c256_120, %c0_121], %164 {strides = array<i32>} : memref<1x288x32xf32, #tpu.memory_space<vmem>>, vector<1x32x32xf32>,
    %c0_122 = arith.constant 0 : index
    %c256_123 = arith.constant 256 : index
    %c0_124 = arith.constant 0 : index
    %165 = vector.load %arg5[%c0_122, %c256_123, %c0_124] : memref<1x288x32xf32, #tpu.memory_space<vmem>>, vector<1x32x32xf32>
    %166 = vector.shape_cast %165 : vector<1x32x32xf32> to vector<32x32xf32>
    %167 = vector.shape_cast %161 : vector<32x32xf32> to vector<1x32x32xf32>
    tpu.vector_store %arg5[%c0_122, %c256_123, %c0_124], %167 {strides = array<i32>} : memref<1x288x32xf32, #tpu.memory_space<vmem>>, vector<1x32x32xf32>,
    return
  }
  func.func @transform_0(%arg0: i32) -> (i32, i32, i32) {
    %c0_i32 = arith.constant 0 : i32
    %c0_i32_0 = arith.constant 0 : i32
    %c0_i32_1 = arith.constant 0 : i32
    return %arg0, %c0_i32, %c0_i32_0 : i32, i32, i32
  }
  func.func @transform_1(%arg0: i32) -> (i32, i32, i32) {
    %c0_i32 = arith.constant 0 : i32
    %c0_i32_0 = arith.constant 0 : i32
    %c0_i32_1 = arith.constant 0 : i32
    return %arg0, %c0_i32, %c0_i32_0 : i32, i32, i32
  }
  func.func @transform_2(%arg0: i32) -> (i32, i32, i32) {
    %c0_i32 = arith.constant 0 : i32
    %c0_i32_0 = arith.constant 0 : i32
    %c0_i32_1 = arith.constant 0 : i32
    %c0_i32_2 = arith.constant 0 : i32
    return %c0_i32, %c0_i32_0, %c0_i32_1 : i32, i32, i32
  }
  func.func @transform_3(%arg0: i32) -> (i32, i32) {
    %c0_i32 = arith.constant 0 : i32
    %c0_i32_0 = arith.constant 0 : i32
    %c0_i32_1 = arith.constant 0 : i32
    return %c0_i32, %c0_i32_0 : i32, i32
  }
  func.func @transform_4(%arg0: i32) -> (i32, i32, i32) {
    %c0_i32 = arith.constant 0 : i32
    %c0_i32_0 = arith.constant 0 : i32
    %c0_i32_1 = arith.constant 0 : i32
    return %arg0, %c0_i32, %c0_i32_0 : i32, i32, i32
  }
  func.func @transform_5(%arg0: i32) -> (i32, i32, i32) {
    %c0_i32 = arith.constant 0 : i32
    %c0_i32_0 = arith.constant 0 : i32
    %c0_i32_1 = arith.constant 0 : i32
    return %arg0, %c0_i32, %c0_i32_0 : i32, i32, i32
  }
}

</mosaic_0001>

<llo_original>
// kernel: _lambda_.1
$region0: #{_lambda_.1}
  #allocation0 [shape = 'u32[]', space=smem, size = 0x4, offset = 0x4, fixed_abs, tag = 'smem constant byte address 0x4 - core index']
  #allocation1 [shape = 'u32[144,128]{1,0:T(1,128)}', space=vmem, size = 0x12000, scoped, tag = 'internal scratch']
  %s0 = inlined_call_operand.vmem [shape: bf16[2,342,48], index: 0, kind: input, shape index: {}]
  %s1 = inlined_call_operand.vmem [shape: f32[2,288,32], index: 1, kind: input, shape index: {}]
  %s2 = inlined_call_operand.vmem [shape: bf16[9,48,128], index: 2, kind: input, shape index: {}]
  %s3 = inlined_call_operand.vmem [shape: f32[1,128], index: 3, kind: input, shape index: {}]
  %s4 = inlined_call_operand.vmem [shape: f32[2,288,32], index: 4, kind: output, shape index: {0}]
  %s5 = inlined_call_operand.vmem [shape: f32[2,288,32], index: 5, kind: output, shape index: {1}]
  %6 = xla_tuple %s4, %s5
  %s7 = sld [smem:[#allocation0]]
  $region57: #{_lambda_.1} parent=0
    _
  %s9 = ssub.s32 1, %s7
  %s10 = scalar_select 0, %s9, %s7
  loop: start=0, step=1, limit=4
  $region2: #{_lambda_.1} parent=0 // loop_pre_header
    _
  $region3: #{_lambda_.1} parent=0 // loop_header
    %s12 = sphi 0, %s16
    %p13 = scmp.ge.s32.totalorder %s12, 4
    %s22 = sphi 0, %s24
    %s25 = sphi 0, %s22
    %s26 = sphi 0, %s25
    %s42 = sphi 0, %s26
    %s48 = sphi 0, %s50
    %s51 = sphi 0, %s48
    %s52 = sphi 0, %s51
    %s68 = sphi 0, %s52
    %s72 = sphi 0, %s72
    %s74 = sphi 0, %s72
    %s75 = sphi 0, %s74
    %s89 = sphi 0, %s75
    %s93 = sphi 0, %s93
    %s95 = sphi 0, %s93
    %s96 = sphi 0, %s95
    %s110 = sphi 0, %s96
    %s116 = sphi 0, %s118
    %s119 = sphi 0, %s116
    %s120 = sphi 0, %s119
    %s136 = sphi 0, %s120
    %s142 = sphi 0, %s144
    %s145 = sphi 0, %s142
    %s146 = sphi 0, %s145
    %s162 = sphi 0, %s146
  $region4: #{_lambda_.1} parent=0 // loop_header_branch
    %15 = sbr.rel (%p13) target = $region8
  $region5: #{_lambda_.1} parent=0 // loop_body
    %s17 = ssub.s32 %s12, 1
    %s18 = ssub.s32 %s12, 2
    %s19 = sadd.s32 %s12, 1
    %s20 = ssub.s32 %s12, %s19
    %p21 = scmp.eq.s32.totalorder %s20, 0
    %s23 = sadd.s32 %s22, 1
    %s24 = scalar_select %p21, %s22, %s23
    %p27 = pneg %p21
    %p28 = scmp.eq.s32.totalorder %s12, 1
    %p29 = por %p27, %p28
    %p30 = scmp.ne.s32.totalorder %s22, %s25
    %p31 = scmp.eq.s32.totalorder %s12, 0
    %p32 = por %p30, %p31
    %p33 = scmp.ne.s32.totalorder %s22, %s25
    %p34 = scmp.eq.s32.totalorder %s17, 1
    %p35 = por %p33, %p34
    %p36 = scmp.ne.s32.totalorder %s25, %s26
    %p37 = scmp.eq.s32.totalorder %s17, 0
    %p38 = por %p36, %p37
    %p39 = scmp.ne.s32.totalorder %s25, %s26
    %p40 = scmp.eq.s32.totalorder %s18, 1
    %p41 = por %p39, %p40
    %p43 = scmp.ne.s32.totalorder %s26, %s42
    %p44 = scmp.eq.s32.totalorder %s18, 0
    %p45 = por %p43, %p44
    %s46 = ssub.s32 %s12, %s19
    %p47 = scmp.eq.s32.totalorder %s46, 0
    %s49 = sadd.s32 %s48, 1
    %s50 = scalar_select %p47, %s48, %s49
    %p53 = pneg %p47
    %p54 = scmp.eq.s32.totalorder %s12, 1
    %p55 = por %p53, %p54
    %p56 = scmp.ne.s32.totalorder %s48, %s51
    %p57 = scmp.eq.s32.totalorder %s12, 0
    %p58 = por %p56, %p57
    %p59 = scmp.ne.s32.totalorder %s48, %s51
    %p60 = scmp.eq.s32.totalorder %s17, 1
    %p61 = por %p59, %p60
    %p62 = scmp.ne.s32.totalorder %s51, %s52
    %p63 = scmp.eq.s32.totalorder %s17, 0
    %p64 = por %p62, %p63
    %p65 = scmp.ne.s32.totalorder %s51, %s52
    %p66 = scmp.eq.s32.totalorder %s18, 1
    %p67 = por %p65, %p66
    %p69 = scmp.ne.s32.totalorder %s52, %s68
    %p70 = scmp.eq.s32.totalorder %s18, 0
    %p71 = por %p69, %p70
    %s73 = sadd.s32 %s72, 1
    %p76 = scmp.eq.s32.totalorder %s12, 1
    %p77 = scmp.ne.s32.totalorder %s72, %s74
    %p78 = scmp.eq.s32.totalorder %s12, 0
    %p79 = por %p77, %p78
    %p80 = scmp.ne.s32.totalorder %s72, %s74
    %p81 = scmp.eq.s32.totalorder %s17, 1
    %p82 = por %p80, %p81
    %p83 = scmp.ne.s32.totalorder %s74, %s75
    %p84 = scmp.eq.s32.totalorder %s17, 0
    %p85 = por %p83, %p84
    %p86 = scmp.ne.s32.totalorder %s74, %s75
    %p87 = scmp.eq.s32.totalorder %s18, 1
    %p88 = por %p86, %p87
    %p90 = scmp.ne.s32.totalorder %s75, %s89
    %p91 = scmp.eq.s32.totalorder %s18, 0
    %p92 = por %p90, %p91
    %s94 = sadd.s32 %s93, 1
    %p97 = scmp.eq.s32.totalorder %s12, 1
    %p98 = scmp.ne.s32.totalorder %s93, %s95
    %p99 = scmp.eq.s32.totalorder %s12, 0
    %p100 = por %p98, %p99
    %p101 = scmp.ne.s32.totalorder %s93, %s95
    %p102 = scmp.eq.s32.totalorder %s17, 1
    %p103 = por %p101, %p102
    %p104 = scmp.ne.s32.totalorder %s95, %s96
    %p105 = scmp.eq.s32.totalorder %s17, 0
    %p106 = por %p104, %p105
    %p107 = scmp.ne.s32.totalorder %s95, %s96
    %p108 = scmp.eq.s32.totalorder %s18, 1
    %p109 = por %p107, %p108
    %p111 = scmp.ne.s32.totalorder %s96, %s110
    %p112 = scmp.eq.s32.totalorder %s18, 0
    %p113 = por %p111, %p112
    %s114 = ssub.s32 %s12, %s19
    %p115 = scmp.eq.s32.totalorder %s114, 0
    %s117 = sadd.s32 %s116, 1
    %s118 = scalar_select %p115, %s116, %s117
    %p121 = pneg %p115
    %p122 = scmp.eq.s32.totalorder %s12, 1
    %p123 = por %p121, %p122
    %p124 = scmp.ne.s32.totalorder %s116, %s119
    %p125 = scmp.eq.s32.totalorder %s12, 0
    %p126 = por %p124, %p125
    %p127 = scmp.ne.s32.totalorder %s116, %s119
    %p128 = scmp.eq.s32.totalorder %s17, 1
    %p129 = por %p127, %p128
    %p130 = scmp.ne.s32.totalorder %s119, %s120
    %p131 = scmp.eq.s32.totalorder %s17, 0
    %p132 = por %p130, %p131
    %p133 = scmp.ne.s32.totalorder %s119, %s120
    %p134 = scmp.eq.s32.totalorder %s18, 1
    %p135 = por %p133, %p134
    %p137 = scmp.ne.s32.totalorder %s120, %s136
    %p138 = scmp.eq.s32.totalorder %s18, 0
    %p139 = por %p137, %p138
    %s140 = ssub.s32 %s12, %s19
    %p141 = scmp.eq.s32.totalorder %s140, 0
    %s143 = sadd.s32 %s142, 1
    %s144 = scalar_select %p141, %s142, %s143
    %p147 = pneg %p141
    %p148 = scmp.eq.s32.totalorder %s12, 1
    %p149 = por %p147, %p148
    %p150 = scmp.ne.s32.totalorder %s142, %s145
    %p151 = scmp.eq.s32.totalorder %s12, 0
    %p152 = por %p150, %p151
    %p153 = scmp.ne.s32.totalorder %s142, %s145
    %p154 = scmp.eq.s32.totalorder %s17, 1
    %p155 = por %p153, %p154
    %p156 = scmp.ne.s32.totalorder %s145, %s146
    %p157 = scmp.eq.s32.totalorder %s17, 0
    %p158 = por %p156, %p157
    %p159 = scmp.ne.s32.totalorder %s145, %s146
    %p160 = scmp.eq.s32.totalorder %s18, 1
    %p161 = por %p159, %p160
    %p163 = scmp.ne.s32.totalorder %s146, %s162
    %p164 = scmp.eq.s32.totalorder %s18, 0
    %p165 = por %p163, %p164
    %p166 = scmp.le.s32.totalorder 1, %s12
    %p167 = scmp.lt.s32.totalorder %s12, 3
    %p168 = pnand %p166, %p167
    %p169 = pneg %p168
    // Predicated region
    $region9: #{_lambda_.1} parent=5 // pred_check
      _
    $region10: #{_lambda_.1} parent=5 // pred_check_branch
      %171 = sbr.rel (%p168) target = $region12
    $region11: #{_lambda_.1} parent=5 // pred_region
      %s172 = ssub.s32 %s12, 1
      // Predicated region
      $region13: #{_lambda_.1} parent=11 // pred_check
        %p173 = pneg %p85
      $region14: #{_lambda_.1} parent=11 // pred_check_branch
        %175 = sbr.rel (%p173) target = $region16
      $region15: #{_lambda_.1} parent=11 // pred_region
        _
      $region16: #{_lambda_.1} parent=11 // pred_fallthru
        _
      // Predicated region
      $region17: #{_lambda_.1} parent=11 // pred_check
        %p176 = pneg %p106
      $region18: #{_lambda_.1} parent=11 // pred_check_branch
        %178 = sbr.rel (%p176) target = $region20
      $region19: #{_lambda_.1} parent=11 // pred_region
        _
      $region20: #{_lambda_.1} parent=11 // pred_fallthru
        _
    $region12: #{_lambda_.1} parent=5 // pred_fallthru
      _
    %p179 = scmp.lt.s32.totalorder %s12, 2
    // Predicated region
    $region21: #{_lambda_.1} parent=5 // pred_check
      %p180 = pneg %p179
    $region22: #{_lambda_.1} parent=5 // pred_check_branch
      %182 = sbr.rel (%p180) target = $region24
    $region23: #{_lambda_.1} parent=5 // pred_region
      // Predicated region
      $region25: #{_lambda_.1} parent=23 // pred_check
        %p183 = pneg %p32
      $region26: #{_lambda_.1} parent=23 // pred_check_branch
        %185 = sbr.rel (%p183) target = $region28
      $region27: #{_lambda_.1} parent=23 // pred_region
        %p186 = scmp.lt.s32.totalorder %s12, 1
        %s187 = scalar_select %p186, %s12, 1
        %s188 = smul.addr %s187, 43
        %s189 = smul.addr %s188, 4
        %s190 = scalar_lea.vmem %s0, %s189
      $region28: #{_lambda_.1} parent=23 // pred_fallthru
        _
      // Predicated region
      $region29: #{_lambda_.1} parent=23 // pred_check
        %p191 = pneg %p58
      $region30: #{_lambda_.1} parent=23 // pred_check_branch
        %193 = sbr.rel (%p191) target = $region32
      $region31: #{_lambda_.1} parent=23 // pred_region
        %p194 = scmp.lt.s32.totalorder %s12, 1
        %s195 = scalar_select %p194, %s12, 1
        %s196 = smul.addr %s195, 36
        %s197 = smul.addr %s196, 8
        %s198 = scalar_lea.vmem %s1, %s197
      $region32: #{_lambda_.1} parent=23 // pred_fallthru
        _
    $region24: #{_lambda_.1} parent=5 // pred_fallthru
      _
    %p199 = scmp.le.s32.totalorder 1, %s12
    %p200 = scmp.lt.s32.totalorder %s12, 3
    %p201 = pnand %p199, %p200
    %p202 = pneg %p201
    // Predicated region
    $region33: #{_lambda_.1} parent=5 // pred_check
      _
    $region34: #{_lambda_.1} parent=5 // pred_check_branch
      %204 = sbr.rel (%p201) target = $region36
    $region35: #{_lambda_.1} parent=5 // pred_region
      %s205 = ssub.s32 %s12, 1
      %p206 = scmp.lt.s32.totalorder %s17, 1
      %s207 = scalar_select %p206, %s17, 1
      %s208 = smul.addr %s207, 43
      %s209 = smul.addr %s208, 4
      %s210 = scalar_lea.vmem %s0, %s209
      %p211 = pneg %p38
      %p212 = pneg %p35
      %p213 = scmp.lt.s32.totalorder %s17, 1
      %s214 = scalar_select %p213, %s17, 1
      %s215 = smul.addr %s214, 36
      %s216 = smul.addr %s215, 8
      %s217 = scalar_lea.vmem %s1, %s216
      %p218 = pneg %p64
      %p219 = pneg %p61
      %p220 = pneg %p85
      %p221 = pneg %p82
      %p222 = pneg %p106
      %p223 = pneg %p103
      %p224 = pneg %p132
      %p225 = pneg %p129
      %p226 = scmp.lt.s32.totalorder %s17, 1
      %s227 = scalar_select %p226, %s17, 1
      %s228 = smul.addr %s227, 36
      %s229 = smul.addr %s228, 8
      %s230 = scalar_lea.vmem %s4, %s229
      %p231 = pneg %p158
      %p232 = pneg %p155
      %p233 = scmp.lt.s32.totalorder %s17, 1
      %s234 = scalar_select %p233, %s17, 1
      %s235 = smul.addr %s234, 36
      %s236 = smul.addr %s235, 8
      %s237 = scalar_lea.vmem %s5, %s236
      %p238 = scmp.lt.s32.totalorder %s17, 1
      %s239 = scalar_select %p238, %s17, 1
      %s240 = smul.addr %s239, 43
      %s241 = smul.addr %s240, 4
      %s242 = scalar_lea.vmem %s0, %s241
      %p243 = scmp.lt.s32.totalorder %s17, 1
      %s244 = scalar_select %p243, %s17, 1
      %s245 = smul.addr %s244, 36
      %s246 = smul.addr %s245, 8
      %s247 = scalar_lea.vmem %s1, %s246
      %p248 = scmp.lt.s32.totalorder %s17, 1
      %s249 = scalar_select %p248, %s17, 1
      %s250 = smul.addr %s249, 36
      %s251 = smul.addr %s250, 8
      %s252 = scalar_lea.vmem %s4, %s251
      %p253 = scmp.lt.s32.totalorder %s17, 1
      %s254 = scalar_select %p253, %s17, 1
      %s255 = smul.addr %s254, 36
      %s256 = smul.addr %s255, 8
      %s257 = scalar_lea.vmem %s5, %s256
      %v259 = vlaneseq
      %v260 = vand.u32 %v259, 127
      %vm261 = vcmp.ge.s32.totalorder %v260, 32
      %v262 = vsel %vm261, 0.5, 1.0
      %v263 = vsel %vm261, 0.5, 0.0
      %v264 = vld [vmem:[%s3] sm:$0x1]
      %v265 = vld [vmem:[%s242] sm:$0xf]
      %v266 = vld [vmem:[%s242 + $0x4] sm:$0xf]
      %v267 = vld [vmem:[%s242 + $0x8] sm:$0xf]
      %v268 = vld [vmem:[%s242 + $0xc] sm:$0xf]
      %v269 = vld [vmem:[%s242 + $0x10] sm:$0xf]
      %v270 = vld [vmem:[%s242 + $0x14] sm:$0xf]
      %v271 = vld [vmem:[%s242 + $0x18] sm:$0xf]
      %v272 = vld [vmem:[%s242 + $0x1c] sm:$0xf]
      %v273 = vld [vmem:[%s242 + $0x20] sm:$0xf]
      %v274 = vld [vmem:[%s242 + $0x24] sm:$0xf]
      %v275 = vld [vmem:[%s242 + $0x28] sm:$0xf]
      %v276 = vld [vmem:[%s242 + $0x2c] sm:$0xf]
      %v277 = vld [vmem:[%s242 + $0x30] sm:$0xf]
      %v278 = vld [vmem:[%s242 + $0x34] sm:$0xf]
      %v279 = vld [vmem:[%s242 + $0x38] sm:$0xf]
      %v280 = vld [vmem:[%s242 + $0x3c] sm:$0xf]
      %v281 = vld [vmem:[%s242 + $0x40] sm:$0xf]
      %v282 = vld [vmem:[%s242 + $0x44] sm:$0xf]
      %v283 = vld [vmem:[%s242 + $0x48] sm:$0xf]
      %v284 = vld [vmem:[%s242 + $0x4c] sm:$0xf]
      %v285 = vld [vmem:[%s242 + $0x50] sm:$0xf]
      %v286 = vld [vmem:[%s242 + $0x54] sm:$0xf]
      %v287 = vld [vmem:[%s242 + $0x58] sm:$0xf]
      %v288 = vld [vmem:[%s242 + $0x5c] sm:$0xf]
      %v289 = vld [vmem:[%s242 + $0x60] sm:$0xf]
      %v290 = vld [vmem:[%s242 + $0x64] sm:$0xf]
      %v291 = vld [vmem:[%s242 + $0x68] sm:$0xf]
      %v292 = vld [vmem:[%s242 + $0x6c] sm:$0xf]
      %v293 = vld [vmem:[%s242 + $0x70] sm:$0xf]
      %v294 = vld [vmem:[%s242 + $0x74] sm:$0xf]
      %v295 = vld [vmem:[%s242 + $0x78] sm:$0xf]
      %v296 = vld [vmem:[%s242 + $0x7c] sm:$0xf]
      %v297 = vld [vmem:[%s2] sm:$0xf]
      %v298 = vld [vmem:[%s2 + $0x4] sm:$0xf]
      %v299 = vld [vmem:[%s2 + $0x8] sm:$0xf]
      %v300 = vld [vmem:[%s2 + $0xc] sm:$0xf]
      %v301 = vld [vmem:[%s2 + $0x10] sm:$0xf]
      %v302 = vld [vmem:[%s2 + $0x14] sm:$0xf]
      %v303 = vld [vmem:[%s242 + $0x80] sm:$0x1]
      %s304 = scalar_lea.vmem %s2, 24
      %v305 = vld [vmem:[%s304] sm:$0xf]
      %v306 = vld [vmem:[%s304 + $0x4] sm:$0xf]
      %v307 = vld [vmem:[%s304 + $0x8] sm:$0xf]
      %v308 = vld [vmem:[%s304 + $0xc] sm:$0xf]
      %v309 = vld [vmem:[%s304 + $0x10] sm:$0xf]
      %v310 = vld [vmem:[%s304 + $0x14] sm:$0xf]
      %v344 = vunpack.c.l.b16 %v265
      %v345 = vunpack.c.l.b16 %v266
      %v346 = vunpack.c.l.b16 %v267
      %v347 = vunpack.c.l.b16 %v268
      %v348 = vunpack.c.l.b16 %v269
      %v349 = vunpack.c.l.b16 %v270
      %v350 = vunpack.c.l.b16 %v271
      %v351 = vunpack.c.l.b16 %v272
      %v352 = vunpack.c.l.b16 %v273
      %v353 = vunpack.c.l.b16 %v274
      %v354 = vunpack.c.l.b16 %v275
      %v355 = vunpack.c.l.b16 %v276
      %v356 = vunpack.c.l.b16 %v277
      %v357 = vunpack.c.l.b16 %v278
      %v358 = vunpack.c.l.b16 %v279
      %v359 = vunpack.c.l.b16 %v280
      %v360 = vunpack.c.l.b16 %v281
      %v361 = vunpack.c.l.b16 %v282
      %v362 = vunpack.c.l.b16 %v283
      %v363 = vunpack.c.l.b16 %v284
      %v364 = vunpack.c.l.b16 %v285
      %v365 = vunpack.c.l.b16 %v286
      %v366 = vunpack.c.l.b16 %v287
      %v367 = vunpack.c.l.b16 %v288
      %v368 = vunpack.c.l.b16 %v289
      %v369 = vunpack.c.l.b16 %v290
      %v370 = vunpack.c.l.b16 %v291
      %v371 = vunpack.c.l.b16 %v292
      %v372 = vunpack.c.l.b16 %v293
      %v373 = vunpack.c.l.b16 %v294
      %v374 = vunpack.c.l.b16 %v295
      %v375 = vunpack.c.l.b16 %v296
      %v376 = vunpack.c.l.b16 %v303
      %v377 = vpack.c.b16 %v345, %v344
      %v378 = vpack.c.b16 %v347, %v346
      %v379 = vpack.c.b16 %v349, %v348
      %v380 = vpack.c.b16 %v351, %v350
      %v381 = vpack.c.b16 %v353, %v352
      %v382 = vpack.c.b16 %v355, %v354
      %v383 = vpack.c.b16 %v357, %v356
      %v384 = vpack.c.b16 %v359, %v358
      %v385 = vpack.c.b16 %v361, %v360
      %v386 = vpack.c.b16 %v363, %v362
      %v387 = vpack.c.b16 %v365, %v364
      %v388 = vpack.c.b16 %v367, %v366
      %v389 = vpack.c.b16 %v369, %v368
      %v390 = vpack.c.b16 %v371, %v370
      %v391 = vpack.c.b16 %v373, %v372
      %v392 = vpack.c.b16 %v375, %v374
      %v393 = vpack.c.b16 %v376, %v376
      %vm394 = vsmask.f32 7424
      %v396 = vshrl.u32 %v377, 16
      %v398 = vshll.u32 %v377, 16
      %v400 = vrot.slane %v398, 1
      %v401 = vor.u32 %v396, %v400
      %v403 = vshll.u32 %v378, 16
      %v405 = vrot.slane %v403, 1
      %v406 = vsel %vm394, %v401, %v405
      %v407 = vshrl.u32 %v378, 16
      %v409 = vor.u32 %v407, %v405
      %v411 = vshll.u32 %v379, 16
      %v413 = vrot.slane %v411, 1
      %v414 = vsel %vm394, %v409, %v413
      %v415 = vshrl.u32 %v379, 16
      %v417 = vor.u32 %v415, %v413
      %v419 = vshll.u32 %v380, 16
      %v421 = vrot.slane %v419, 1
      %v422 = vsel %vm394, %v417, %v421
      %v423 = vshrl.u32 %v380, 16
      %v425 = vor.u32 %v423, %v421
      %v427 = vshll.u32 %v381, 16
      %v429 = vrot.slane %v427, 1
      %v430 = vsel %vm394, %v425, %v429
      %v431 = vshrl.u32 %v381, 16
      %v433 = vor.u32 %v431, %v429
      %v435 = vshll.u32 %v382, 16
      %v437 = vrot.slane %v435, 1
      %v438 = vsel %vm394, %v433, %v437
      %v439 = vshrl.u32 %v382, 16
      %v441 = vor.u32 %v439, %v437
      %v443 = vshll.u32 %v383, 16
      %v445 = vrot.slane %v443, 1
      %v446 = vsel %vm394, %v441, %v445
      %v447 = vshrl.u32 %v383, 16
      %v449 = vor.u32 %v447, %v445
      %v451 = vshll.u32 %v384, 16
      %v453 = vrot.slane %v451, 1
      %v454 = vsel %vm394, %v449, %v453
      %v455 = vshrl.u32 %v384, 16
      %v457 = vor.u32 %v455, %v453
      %v459 = vshll.u32 %v385, 16
      %v461 = vrot.slane %v459, 1
      %v462 = vsel %vm394, %v457, %v461
      %v463 = vshrl.u32 %v385, 16
      %v465 = vor.u32 %v463, %v461
      %v467 = vshll.u32 %v386, 16
      %v469 = vrot.slane %v467, 1
      %v470 = vsel %vm394, %v465, %v469
      %v471 = vshrl.u32 %v386, 16
      %v473 = vor.u32 %v471, %v469
      %v475 = vshll.u32 %v387, 16
      %v477 = vrot.slane %v475, 1
      %v478 = vsel %vm394, %v473, %v477
      %v479 = vshrl.u32 %v387, 16
      %v481 = vor.u32 %v479, %v477
      %v483 = vshll.u32 %v388, 16
      %v485 = vrot.slane %v483, 1
      %v486 = vsel %vm394, %v481, %v485
      %v487 = vshrl.u32 %v388, 16
      %v489 = vor.u32 %v487, %v485
      %v491 = vshll.u32 %v389, 16
      %v493 = vrot.slane %v491, 1
      %v494 = vsel %vm394, %v489, %v493
      %v495 = vshrl.u32 %v389, 16
      %v497 = vor.u32 %v495, %v493
      %v499 = vshll.u32 %v390, 16
      %v501 = vrot.slane %v499, 1
      %v502 = vsel %vm394, %v497, %v501
      %v503 = vshrl.u32 %v390, 16
      %v505 = vor.u32 %v503, %v501
      %v507 = vshll.u32 %v391, 16
      %v509 = vrot.slane %v507, 1
      %v510 = vsel %vm394, %v505, %v509
      %v511 = vshrl.u32 %v391, 16
      %v513 = vor.u32 %v511, %v509
      %v515 = vshll.u32 %v392, 16
      %v517 = vrot.slane %v515, 1
      %v518 = vsel %vm394, %v513, %v517
      %v519 = vshrl.u32 %v392, 16
      %v521 = vor.u32 %v519, %v517
      %v523 = vshll.u32 %v393, 16
      %v525 = vrot.slane %v523, 1
      %v526 = vsel %vm394, %v521, %v525
      %v533 = vunpack.c.l.b16 %v305
      %v534 = vunpack.c.l.b16 %v306
      %v535 = vunpack.c.l.b16 %v307
      %v536 = vunpack.c.l.b16 %v308
      %v537 = vunpack.c.l.b16 %v309
      %v538 = vunpack.c.l.b16 %v310
      %v539 = vpack.c.b16 %v534, %v533
      %v540 = vpack.c.b16 %v536, %v535
      %v541 = vpack.c.b16 %v538, %v537
      %vm545 = vcmask 392192
      %v547 = vsel %vm545, %v406, 0
      %v550 = vsel %vm545, %v414, 0
      %v553 = vsel %vm545, %v422, 0
      %v556 = vsel %vm545, %v430, 0
      %v559 = vsel %vm545, %v438, 0
      %v562 = vsel %vm545, %v446, 0
      %v565 = vsel %vm545, %v454, 0
      %v568 = vsel %vm545, %v462, 0
      %v571 = vsel %vm545, %v470, 0
      %v574 = vsel %vm545, %v478, 0
      %v577 = vsel %vm545, %v486, 0
      %v580 = vsel %vm545, %v494, 0
      %v583 = vsel %vm545, %v502, 0
      %v586 = vsel %vm545, %v510, 0
      %v589 = vsel %vm545, %v518, 0
      %v592 = vsel %vm545, %v526, 0
      %594 = vmatprep.subr.bf16.mxu0 0
      %595 = vmatpush1.bf16.msra.mxu0 0
      %596 = vmatprep.subr.bf16.mxu0 0
      %597 = vmatpush1.bf16.msra.mxu0 0
      %598 = vmatprep.subr.bf16.mxu0 0
      %599 = vmatpush1.bf16.msra.mxu0 0
      %600 = vmatprep.subr.bf16.mxu0 0
      %601 = vmatpush1.bf16.msra.mxu0 0
      %602 = vmatprep.subr.bf16.mxu0 0
      %603 = vmatpush1.bf16.msra.mxu0 0
      %604 = vmatprep.subr.bf16.mxu0 0
      %605 = vmatpush1.bf16.msra.mxu0 %v541
      %606 = vmatprep.subr.bf16.mxu0 0
      %607 = vmatpush1.bf16.msra.mxu0 %v540
      %608 = vmatprep.subr.bf16.mxu0 0
      %609 = vmatpush1.bf16.msra.mxu0 %v539
      %610 = vmatprep.subr.bf16.mxu0 0
      %611 = vmatpush2.bf16.msra.mxu0 0
      %612 = vmatprep.subr.bf16.mxu0 0
      %613 = vmatpush2.bf16.msra.mxu0 0
      %614 = vmatprep.subr.bf16.mxu0 0
      %615 = vmatpush2.bf16.msra.mxu0 0
      %616 = vmatprep.subr.bf16.mxu0 0
      %617 = vmatpush2.bf16.msra.mxu0 0
      %618 = vmatprep.subr.bf16.mxu0 0
      %619 = vmatpush2.bf16.msra.mxu0 0
      %620 = vmatprep.subr.bf16.mxu0 0
      %621 = vmatpush2.bf16.msra.mxu0 0
      %622 = vmatprep.subr.bf16.mxu0 0
      %623 = vmatpush2.bf16.msra.mxu0 0
      %624 = vmatprep.subr.bf16.mxu0 0
      %625 = vmatpush2.bf16.msra.mxu0 0
      %626 = vmatprep.mubr.bf16.mxu0 0
      %627 = vmatmul.mubr.bf16.gmra.mxu0 %v547
      %v628 = vpop.f32.mrf.mxu0
      %v629 = vadd.f32 0.0, %v628
      %v630 = vpop.f32.mrf.mxu0
      %v631 = vpop.f32.mrf.mxu0
      %v632 = vadd.f32 0.0, %v631
      %v633 = vpop.f32.mrf.mxu0
      %634 = vmatprep.mubr.bf16.mxu0 0
      %635 = vmatmul.mubr.bf16.gmra.mxu0 %v550
      %v636 = vpop.f32.mrf.mxu0
      %v637 = vadd.f32 0.0, %v636
      %v638 = vpop.f32.mrf.mxu0
      %v639 = vpop.f32.mrf.mxu0
      %v640 = vadd.f32 0.0, %v639
      %v641 = vpop.f32.mrf.mxu0
      %642 = vmatprep.mubr.bf16.mxu0 0
      %643 = vmatmul.mubr.bf16.gmra.mxu0 %v553
      %v644 = vpop.f32.mrf.mxu0
      %v645 = vadd.f32 0.0, %v644
      %v646 = vpop.f32.mrf.mxu0
      %v647 = vpop.f32.mrf.mxu0
      %v648 = vadd.f32 0.0, %v647
      %v649 = vpop.f32.mrf.mxu0
      %650 = vmatprep.mubr.bf16.mxu0 0
      %651 = vmatmul.mubr.bf16.gmra.mxu0 %v556
      %v652 = vpop.f32.mrf.mxu0
      %v653 = vadd.f32 0.0, %v652
      %v654 = vpop.f32.mrf.mxu0
      %v655 = vpop.f32.mrf.mxu0
      %v656 = vadd.f32 0.0, %v655
      %v657 = vpop.f32.mrf.mxu0
      %658 = vmatprep.mubr.bf16.mxu0 0
      %659 = vmatmul.mubr.bf16.gmra.mxu0 %v559
      %v660 = vpop.f32.mrf.mxu0
      %v661 = vadd.f32 0.0, %v660
      %v662 = vpop.f32.mrf.mxu0
      %v663 = vpop.f32.mrf.mxu0
      %v664 = vadd.f32 0.0, %v663
      %v665 = vpop.f32.mrf.mxu0
      %666 = vmatprep.mubr.bf16.mxu0 0
      %667 = vmatmul.mubr.bf16.gmra.mxu0 %v562
      %v668 = vpop.f32.mrf.mxu0
      %v669 = vadd.f32 0.0, %v668
      %v670 = vpop.f32.mrf.mxu0
      %v671 = vpop.f32.mrf.mxu0
      %v672 = vadd.f32 0.0, %v671
      %v673 = vpop.f32.mrf.mxu0
      %674 = vmatprep.mubr.bf16.mxu0 0
      %675 = vmatmul.mubr.bf16.gmra.mxu0 %v565
      %v676 = vpop.f32.mrf.mxu0
      %v677 = vadd.f32 0.0, %v676
      %v678 = vpop.f32.mrf.mxu0
      %v679 = vpop.f32.mrf.mxu0
      %v680 = vadd.f32 0.0, %v679
      %v681 = vpop.f32.mrf.mxu0
      %682 = vmatprep.mubr.bf16.mxu0 0
      %683 = vmatmul.mubr.bf16.gmra.mxu0 %v568
      %v684 = vpop.f32.mrf.mxu0
      %v685 = vadd.f32 0.0, %v684
      %v686 = vpop.f32.mrf.mxu0
      %v687 = vpop.f32.mrf.mxu0
      %v688 = vadd.f32 0.0, %v687
      %v689 = vpop.f32.mrf.mxu0
      %690 = vmatprep.mubr.bf16.mxu0 0
      %691 = vmatmul.mubr.bf16.gmra.mxu0 %v571
      %v692 = vpop.f32.mrf.mxu0
      %v693 = vadd.f32 0.0, %v692
      %v694 = vpop.f32.mrf.mxu0
      %v695 = vpop.f32.mrf.mxu0
      %v696 = vadd.f32 0.0, %v695
      %v697 = vpop.f32.mrf.mxu0
      %698 = vmatprep.mubr.bf16.mxu0 0
      %699 = vmatmul.mubr.bf16.gmra.mxu0 %v574
      %v700 = vpop.f32.mrf.mxu0
      %v701 = vadd.f32 0.0, %v700
      %v702 = vpop.f32.mrf.mxu0
      %v703 = vpop.f32.mrf.mxu0
      %v704 = vadd.f32 0.0, %v703
      %v705 = vpop.f32.mrf.mxu0
      %706 = vmatprep.mubr.bf16.mxu0 0
      %707 = vmatmul.mubr.bf16.gmra.mxu0 %v577
      %v708 = vpop.f32.mrf.mxu0
      %v709 = vadd.f32 0.0, %v708
      %v710 = vpop.f32.mrf.mxu0
      %v711 = vpop.f32.mrf.mxu0
      %v712 = vadd.f32 0.0, %v711
      %v713 = vpop.f32.mrf.mxu0
      %714 = vmatprep.mubr.bf16.mxu0 0
      %715 = vmatmul.mubr.bf16.gmra.mxu0 %v580
      %v716 = vpop.f32.mrf.mxu0
      %v717 = vadd.f32 0.0, %v716
      %v718 = vpop.f32.mrf.mxu0
      %v719 = vpop.f32.mrf.mxu0
      %v720 = vadd.f32 0.0, %v719
      %v721 = vpop.f32.mrf.mxu0
      %722 = vmatprep.mubr.bf16.mxu0 0
      %723 = vmatmul.mubr.bf16.gmra.mxu0 %v583
      %v724 = vpop.f32.mrf.mxu0
      %v725 = vadd.f32 0.0, %v724
      %v726 = vpop.f32.mrf.mxu0
      %v727 = vpop.f32.mrf.mxu0
      %v728 = vadd.f32 0.0, %v727
      %v729 = vpop.f32.mrf.mxu0
      %730 = vmatprep.mubr.bf16.mxu0 0
      %731 = vmatmul.mubr.bf16.gmra.mxu0 %v586
      %v732 = vpop.f32.mrf.mxu0
      %v733 = vadd.f32 0.0, %v732
      %v734 = vpop.f32.mrf.mxu0
      %v735 = vpop.f32.mrf.mxu0
      %v736 = vadd.f32 0.0, %v735
      %v737 = vpop.f32.mrf.mxu0
      %738 = vmatprep.mubr.bf16.mxu0 0
      %739 = vmatmul.mubr.bf16.gmra.mxu0 %v589
      %v740 = vpop.f32.mrf.mxu0
      %v741 = vadd.f32 0.0, %v740
      %v742 = vpop.f32.mrf.mxu0
      %v743 = vpop.f32.mrf.mxu0
      %v744 = vadd.f32 0.0, %v743
      %v745 = vpop.f32.mrf.mxu0
      %746 = vmatprep.mubr.bf16.mxu0 0
      %747 = vmatmul.mubr.bf16.gmra.mxu0 %v592
      %v748 = vpop.f32.mrf.mxu0
      %v749 = vadd.f32 0.0, %v748
      %v750 = vpop.f32.mrf.mxu0
      %v751 = vpop.f32.mrf.mxu0
      %v752 = vadd.f32 0.0, %v751
      %v753 = vpop.f32.mrf.mxu0
      %754 = vdwg.mxu0
      %v761 = vunpack.c.l.b16 %v297
      %v762 = vunpack.c.l.b16 %v298
      %v763 = vunpack.c.l.b16 %v299
      %v764 = vunpack.c.l.b16 %v300
      %v765 = vunpack.c.l.b16 %v301
      %v766 = vunpack.c.l.b16 %v302
      %v767 = vpack.c.b16 %v762, %v761
      %v768 = vpack.c.b16 %v764, %v763
      %v769 = vpack.c.b16 %v766, %v765
      %v773 = vsel %vm545, %v377, 0
      %v775 = vsel %vm545, %v378, 0
      %v777 = vsel %vm545, %v379, 0
      %v779 = vsel %vm545, %v380, 0
      %v781 = vsel %vm545, %v381, 0
      %v783 = vsel %vm545, %v382, 0
      %v785 = vsel %vm545, %v383, 0
      %v787 = vsel %vm545, %v384, 0
      %v789 = vsel %vm545, %v385, 0
      %v791 = vsel %vm545, %v386, 0
      %v793 = vsel %vm545, %v387, 0
      %v795 = vsel %vm545, %v388, 0
      %v797 = vsel %vm545, %v389, 0
      %v799 = vsel %vm545, %v390, 0
      %v801 = vsel %vm545, %v391, 0
      %v803 = vsel %vm545, %v392, 0
      %805 = vmatprep.subr.bf16.mxu0 0
      %806 = vmatpush1.bf16.msra.mxu0 0
      %807 = vmatprep.subr.bf16.mxu0 0
      %808 = vmatpush1.bf16.msra.mxu0 0
      %809 = vmatprep.subr.bf16.mxu0 0
      %810 = vmatpush1.bf16.msra.mxu0 0
      %811 = vmatprep.subr.bf16.mxu0 0
      %812 = vmatpush1.bf16.msra.mxu0 0
      %813 = vmatprep.subr.bf16.mxu0 0
      %814 = vmatpush1.bf16.msra.mxu0 0
      %815 = vmatprep.subr.bf16.mxu0 0
      %816 = vmatpush1.bf16.msra.mxu0 %v769
      %817 = vmatprep.subr.bf16.mxu0 0
      %818 = vmatpush1.bf16.msra.mxu0 %v768
      %819 = vmatprep.subr.bf16.mxu0 0
      %820 = vmatpush1.bf16.msra.mxu0 %v767
      %821 = vmatprep.subr.bf16.mxu0 0
      %822 = vmatpush2.bf16.msra.mxu0 0
      %823 = vmatprep.subr.bf16.mxu0 0
      %824 = vmatpush2.bf16.msra.mxu0 0
      %825 = vmatprep.subr.bf16.mxu0 0
      %826 = vmatpush2.bf16.msra.mxu0 0
      %827 = vmatprep.subr.bf16.mxu0 0
      %828 = vmatpush2.bf16.msra.mxu0 0
      %829 = vmatprep.subr.bf16.mxu0 0
      %830 = vmatpush2.bf16.msra.mxu0 0
      %831 = vmatprep.subr.bf16.mxu0 0
      %832 = vmatpush2.bf16.msra.mxu0 0
      %833 = vmatprep.subr.bf16.mxu0 0
      %834 = vmatpush2.bf16.msra.mxu0 0
      %835 = vmatprep.subr.bf16.mxu0 0
      %836 = vmatpush2.bf16.msra.mxu0 0
      %837 = vmatprep.mubr.bf16.mxu0 0
      %838 = vmatmul.mubr.bf16.gmra.mxu0 %v773
      %v839 = vpop.f32.mrf.mxu0
      %v840 = vadd.f32 %v629, %v839
      %v841 = vpop.f32.mrf.mxu0
      %v842 = vpop.f32.mrf.mxu0
      %v843 = vadd.f32 %v632, %v842
      %v844 = vpop.f32.mrf.mxu0
      %845 = vmatprep.mubr.bf16.mxu0 0
      %846 = vmatmul.mubr.bf16.gmra.mxu0 %v775
      %v847 = vpop.f32.mrf.mxu0
      %v848 = vadd.f32 %v637, %v847
      %v849 = vpop.f32.mrf.mxu0
      %v850 = vpop.f32.mrf.mxu0
      %v851 = vadd.f32 %v640, %v850
      %v852 = vpop.f32.mrf.mxu0
      %853 = vmatprep.mubr.bf16.mxu0 0
      %854 = vmatmul.mubr.bf16.gmra.mxu0 %v777
      %v855 = vpop.f32.mrf.mxu0
      %v856 = vadd.f32 %v645, %v855
      %v857 = vpop.f32.mrf.mxu0
      %v858 = vpop.f32.mrf.mxu0
      %v859 = vadd.f32 %v648, %v858
      %v860 = vpop.f32.mrf.mxu0
      %861 = vmatprep.mubr.bf16.mxu0 0
      %862 = vmatmul.mubr.bf16.gmra.mxu0 %v779
      %v863 = vpop.f32.mrf.mxu0
      %v864 = vadd.f32 %v653, %v863
      %v865 = vpop.f32.mrf.mxu0
      %v866 = vpop.f32.mrf.mxu0
      %v867 = vadd.f32 %v656, %v866
      %v868 = vpop.f32.mrf.mxu0
      %869 = vmatprep.mubr.bf16.mxu0 0
      %870 = vmatmul.mubr.bf16.gmra.mxu0 %v781
      %v871 = vpop.f32.mrf.mxu0
      %v872 = vadd.f32 %v661, %v871
      %v873 = vpop.f32.mrf.mxu0
      %v874 = vpop.f32.mrf.mxu0
      %v875 = vadd.f32 %v664, %v874
      %v876 = vpop.f32.mrf.mxu0
      %877 = vmatprep.mubr.bf16.mxu0 0
      %878 = vmatmul.mubr.bf16.gmra.mxu0 %v783
      %v879 = vpop.f32.mrf.mxu0
      %v880 = vadd.f32 %v669, %v879
      %v881 = vpop.f32.mrf.mxu0
      %v882 = vpop.f32.mrf.mxu0
      %v883 = vadd.f32 %v672, %v882
      %v884 = vpop.f32.mrf.mxu0
      %885 = vmatprep.mubr.bf16.mxu0 0
      %886 = vmatmul.mubr.bf16.gmra.mxu0 %v785
      %v887 = vpop.f32.mrf.mxu0
      %v888 = vadd.f32 %v677, %v887
      %v889 = vpop.f32.mrf.mxu0
      %v890 = vpop.f32.mrf.mxu0
      %v891 = vadd.f32 %v680, %v890
      %v892 = vpop.f32.mrf.mxu0
      %893 = vmatprep.mubr.bf16.mxu0 0
      %894 = vmatmul.mubr.bf16.gmra.mxu0 %v787
      %v895 = vpop.f32.mrf.mxu0
      %v896 = vadd.f32 %v685, %v895
      %v897 = vpop.f32.mrf.mxu0
      %v898 = vpop.f32.mrf.mxu0
      %v899 = vadd.f32 %v688, %v898
      %v900 = vpop.f32.mrf.mxu0
      %901 = vmatprep.mubr.bf16.mxu0 0
      %902 = vmatmul.mubr.bf16.gmra.mxu0 %v789
      %v903 = vpop.f32.mrf.mxu0
      %v904 = vadd.f32 %v693, %v903
      %v905 = vpop.f32.mrf.mxu0
      %v906 = vpop.f32.mrf.mxu0
      %v907 = vadd.f32 %v696, %v906
      %v908 = vpop.f32.mrf.mxu0
      %909 = vmatprep.mubr.bf16.mxu0 0
      %910 = vmatmul.mubr.bf16.gmra.mxu0 %v791
      %v911 = vpop.f32.mrf.mxu0
      %v912 = vadd.f32 %v701, %v911
      %v913 = vpop.f32.mrf.mxu0
      %v914 = vpop.f32.mrf.mxu0
      %v915 = vadd.f32 %v704, %v914
      %v916 = vpop.f32.mrf.mxu0
      %917 = vmatprep.mubr.bf16.mxu0 0
      %918 = vmatmul.mubr.bf16.gmra.mxu0 %v793
      %v919 = vpop.f32.mrf.mxu0
      %v920 = vadd.f32 %v709, %v919
      %v921 = vpop.f32.mrf.mxu0
      %v922 = vpop.f32.mrf.mxu0
      %v923 = vadd.f32 %v712, %v922
      %v924 = vpop.f32.mrf.mxu0
      %925 = vmatprep.mubr.bf16.mxu0 0
      %926 = vmatmul.mubr.bf16.gmra.mxu0 %v795
      %v927 = vpop.f32.mrf.mxu0
      %v928 = vadd.f32 %v717, %v927
      %v929 = vpop.f32.mrf.mxu0
      %v930 = vpop.f32.mrf.mxu0
      %v931 = vadd.f32 %v720, %v930
      %v932 = vpop.f32.mrf.mxu0
      %933 = vmatprep.mubr.bf16.mxu0 0
      %934 = vmatmul.mubr.bf16.gmra.mxu0 %v797
      %v935 = vpop.f32.mrf.mxu0
      %v936 = vadd.f32 %v725, %v935
      %v937 = vpop.f32.mrf.mxu0
      %v938 = vpop.f32.mrf.mxu0
      %v939 = vadd.f32 %v728, %v938
      %v940 = vpop.f32.mrf.mxu0
      %941 = vmatprep.mubr.bf16.mxu0 0
      %942 = vmatmul.mubr.bf16.gmra.mxu0 %v799
      %v943 = vpop.f32.mrf.mxu0
      %v944 = vadd.f32 %v733, %v943
      %v945 = vpop.f32.mrf.mxu0
      %v946 = vpop.f32.mrf.mxu0
      %v947 = vadd.f32 %v736, %v946
      %v948 = vpop.f32.mrf.mxu0
      %949 = vmatprep.mubr.bf16.mxu0 0
      %950 = vmatmul.mubr.bf16.gmra.mxu0 %v801
      %v951 = vpop.f32.mrf.mxu0
      %v952 = vadd.f32 %v741, %v951
      %v953 = vpop.f32.mrf.mxu0
      %v954 = vpop.f32.mrf.mxu0
      %v955 = vadd.f32 %v744, %v954
      %v956 = vpop.f32.mrf.mxu0
      %957 = vmatprep.mubr.bf16.mxu0 0
      %958 = vmatmul.mubr.bf16.gmra.mxu0 %v803
      %v959 = vpop.f32.mrf.mxu0
      %v960 = vadd.f32 %v749, %v959
      %v961 = vpop.f32.mrf.mxu0
      %v962 = vpop.f32.mrf.mxu0
      %v963 = vadd.f32 %v752, %v962
      %v964 = vpop.f32.mrf.mxu0
      %965 = vdwg.mxu0
      %v966 = vld [vmem:[%s242] sm:$0xe]
      %s967 = scalar_lea.vmem %s2, 48
      %v968 = vld [vmem:[%s967] sm:$0xf]
      %v969 = vld [vmem:[%s967 + $0x4] sm:$0xf]
      %v970 = vld [vmem:[%s967 + $0x8] sm:$0xf]
      %v971 = vld [vmem:[%s967 + $0xc] sm:$0xf]
      %v972 = vld [vmem:[%s967 + $0x10] sm:$0xf]
      %v973 = vld [vmem:[%s967 + $0x14] sm:$0xf]
      %v975 = vunpack.c.l.b16 %v966
      %v976 = vpack.c.b16 %v345, %v975
      %vm977 = vcmask 1046528
      %v978 = vrot.slane %v976, 1
      %v979 = vrot.slane %v378, 1
      %v980 = vsel %vm977, %v978, %v979
      %v981 = vrot.slane %v379, 1
      %v982 = vsel %vm977, %v979, %v981
      %v983 = vrot.slane %v380, 1
      %v984 = vsel %vm977, %v981, %v983
      %v985 = vrot.slane %v381, 1
      %v986 = vsel %vm977, %v983, %v985
      %v987 = vrot.slane %v382, 1
      %v988 = vsel %vm977, %v985, %v987
      %v989 = vrot.slane %v383, 1
      %v990 = vsel %vm977, %v987, %v989
      %v991 = vrot.slane %v384, 1
      %v992 = vsel %vm977, %v989, %v991
      %v993 = vrot.slane %v385, 1
      %v994 = vsel %vm977, %v991, %v993
      %v995 = vrot.slane %v386, 1
      %v996 = vsel %vm977, %v993, %v995
      %v997 = vrot.slane %v387, 1
      %v998 = vsel %vm977, %v995, %v997
      %v999 = vrot.slane %v388, 1
      %v1000 = vsel %vm977, %v997, %v999
      %v1001 = vrot.slane %v389, 1
      %v1002 = vsel %vm977, %v999, %v1001
      %v1003 = vrot.slane %v390, 1
      %v1004 = vsel %vm977, %v1001, %v1003
      %v1005 = vrot.slane %v391, 1
      %v1006 = vsel %vm977, %v1003, %v1005
      %v1007 = vrot.slane %v392, 1
      %v1008 = vsel %vm977, %v1005, %v1007
      %v1009 = vrot.slane %v393, 1
      %v1010 = vsel %vm977, %v1007, %v1009
      %v1017 = vunpack.c.l.b16 %v968
      %v1018 = vunpack.c.l.b16 %v969
      %v1019 = vunpack.c.l.b16 %v970
      %v1020 = vunpack.c.l.b16 %v971
      %v1021 = vunpack.c.l.b16 %v972
      %v1022 = vunpack.c.l.b16 %v973
      %v1023 = vpack.c.b16 %v1018, %v1017
      %v1024 = vpack.c.b16 %v1020, %v1019
      %v1025 = vpack.c.b16 %v1022, %v1021
      %v1030 = vsel %vm545, %v980, 0
      %v1033 = vsel %vm545, %v982, 0
      %v1036 = vsel %vm545, %v984, 0
      %v1039 = vsel %vm545, %v986, 0
      %v1042 = vsel %vm545, %v988, 0
      %v1045 = vsel %vm545, %v990, 0
      %v1048 = vsel %vm545, %v992, 0
      %v1051 = vsel %vm545, %v994, 0
      %v1054 = vsel %vm545, %v996, 0
      %v1057 = vsel %vm545, %v998, 0
      %v1060 = vsel %vm545, %v1000, 0
      %v1063 = vsel %vm545, %v1002, 0
      %v1066 = vsel %vm545, %v1004, 0
      %v1069 = vsel %vm545, %v1006, 0
      %v1072 = vsel %vm545, %v1008, 0
      %v1075 = vsel %vm545, %v1010, 0
      %1077 = vmatprep.subr.bf16.mxu0 0
      %1078 = vmatpush1.bf16.msra.mxu0 0
      %1079 = vmatprep.subr.bf16.mxu0 0
      %1080 = vmatpush1.bf16.msra.mxu0 0
      %1081 = vmatprep.subr.bf16.mxu0 0
      %1082 = vmatpush1.bf16.msra.mxu0 0
      %1083 = vmatprep.subr.bf16.mxu0 0
      %1084 = vmatpush1.bf16.msra.mxu0 0
      %1085 = vmatprep.subr.bf16.mxu0 0
      %1086 = vmatpush1.bf16.msra.mxu0 0
      %1087 = vmatprep.subr.bf16.mxu0 0
      %1088 = vmatpush1.bf16.msra.mxu0 %v1025
      %1089 = vmatprep.subr.bf16.mxu0 0
      %1090 = vmatpush1.bf16.msra.mxu0 %v1024
      %1091 = vmatprep.subr.bf16.mxu0 0
      %1092 = vmatpush1.bf16.msra.mxu0 %v1023
      %1093 = vmatprep.subr.bf16.mxu0 0
      %1094 = vmatpush2.bf16.msra.mxu0 0
      %1095 = vmatprep.subr.bf16.mxu0 0
      %1096 = vmatpush2.bf16.msra.mxu0 0
      %1097 = vmatprep.subr.bf16.mxu0 0
      %1098 = vmatpush2.bf16.msra.mxu0 0
      %1099 = vmatprep.subr.bf16.mxu0 0
      %1100 = vmatpush2.bf16.msra.mxu0 0
      %1101 = vmatprep.subr.bf16.mxu0 0
      %1102 = vmatpush2.bf16.msra.mxu0 0
      %1103 = vmatprep.subr.bf16.mxu0 0
      %1104 = vmatpush2.bf16.msra.mxu0 0
      %1105 = vmatprep.subr.bf16.mxu0 0
      %1106 = vmatpush2.bf16.msra.mxu0 0
      %1107 = vmatprep.subr.bf16.mxu0 0
      %1108 = vmatpush2.bf16.msra.mxu0 0
      %1109 = vmatprep.mubr.bf16.mxu0 0
      %1110 = vmatmul.mubr.bf16.gmra.mxu0 %v1030
      %v1111 = vpop.f32.mrf.mxu0
      %v1112 = vadd.f32 0.0, %v1111
      %v1113 = vpop.f32.mrf.mxu0
      %v1114 = vpop.f32.mrf.mxu0
      %v1115 = vadd.f32 0.0, %v1114
      %v1116 = vpop.f32.mrf.mxu0
      %1117 = vmatprep.mubr.bf16.mxu0 0
      %1118 = vmatmul.mubr.bf16.gmra.mxu0 %v1033
      %v1119 = vpop.f32.mrf.mxu0
      %v1120 = vadd.f32 0.0, %v1119
      %v1121 = vpop.f32.mrf.mxu0
      %v1122 = vpop.f32.mrf.mxu0
      %v1123 = vadd.f32 0.0, %v1122
      %v1124 = vpop.f32.mrf.mxu0
      %1125 = vmatprep.mubr.bf16.mxu0 0
      %1126 = vmatmul.mubr.bf16.gmra.mxu0 %v1036
      %v1127 = vpop.f32.mrf.mxu0
      %v1128 = vadd.f32 0.0, %v1127
      %v1129 = vpop.f32.mrf.mxu0
      %v1130 = vpop.f32.mrf.mxu0
      %v1131 = vadd.f32 0.0, %v1130
      %v1132 = vpop.f32.mrf.mxu0
      %1133 = vmatprep.mubr.bf16.mxu0 0
      %1134 = vmatmul.mubr.bf16.gmra.mxu0 %v1039
      %v1135 = vpop.f32.mrf.mxu0
      %v1136 = vadd.f32 0.0, %v1135
      %v1137 = vpop.f32.mrf.mxu0
      %v1138 = vpop.f32.mrf.mxu0
      %v1139 = vadd.f32 0.0, %v1138
      %v1140 = vpop.f32.mrf.mxu0
      %1141 = vmatprep.mubr.bf16.mxu0 0
      %1142 = vmatmul.mubr.bf16.gmra.mxu0 %v1042
      %v1143 = vpop.f32.mrf.mxu0
      %v1144 = vadd.f32 0.0, %v1143
      %v1145 = vpop.f32.mrf.mxu0
      %v1146 = vpop.f32.mrf.mxu0
      %v1147 = vadd.f32 0.0, %v1146
      %v1148 = vpop.f32.mrf.mxu0
      %1149 = vmatprep.mubr.bf16.mxu0 0
      %1150 = vmatmul.mubr.bf16.gmra.mxu0 %v1045
      %v1151 = vpop.f32.mrf.mxu0
      %v1152 = vadd.f32 0.0, %v1151
      %v1153 = vpop.f32.mrf.mxu0
      %v1154 = vpop.f32.mrf.mxu0
      %v1155 = vadd.f32 0.0, %v1154
      %v1156 = vpop.f32.mrf.mxu0
      %1157 = vmatprep.mubr.bf16.mxu0 0
      %1158 = vmatmul.mubr.bf16.gmra.mxu0 %v1048
      %v1159 = vpop.f32.mrf.mxu0
      %v1160 = vadd.f32 0.0, %v1159
      %v1161 = vpop.f32.mrf.mxu0
      %v1162 = vpop.f32.mrf.mxu0
      %v1163 = vadd.f32 0.0, %v1162
      %v1164 = vpop.f32.mrf.mxu0
      %1165 = vmatprep.mubr.bf16.mxu0 0
      %1166 = vmatmul.mubr.bf16.gmra.mxu0 %v1051
      %v1167 = vpop.f32.mrf.mxu0
      %v1168 = vadd.f32 0.0, %v1167
      %v1169 = vpop.f32.mrf.mxu0
      %v1170 = vpop.f32.mrf.mxu0
      %v1171 = vadd.f32 0.0, %v1170
      %v1172 = vpop.f32.mrf.mxu0
      %1173 = vmatprep.mubr.bf16.mxu0 0
      %1174 = vmatmul.mubr.bf16.gmra.mxu0 %v1054
      %v1175 = vpop.f32.mrf.mxu0
      %v1176 = vadd.f32 0.0, %v1175
      %v1177 = vpop.f32.mrf.mxu0
      %v1178 = vpop.f32.mrf.mxu0
      %v1179 = vadd.f32 0.0, %v1178
      %v1180 = vpop.f32.mrf.mxu0
      %1181 = vmatprep.mubr.bf16.mxu0 0
      %1182 = vmatmul.mubr.bf16.gmra.mxu0 %v1057
      %v1183 = vpop.f32.mrf.mxu0
      %v1184 = vadd.f32 0.0, %v1183
      %v1185 = vpop.f32.mrf.mxu0
      %v1186 = vpop.f32.mrf.mxu0
      %v1187 = vadd.f32 0.0, %v1186
      %v1188 = vpop.f32.mrf.mxu0
      %1189 = vmatprep.mubr.bf16.mxu0 0
      %1190 = vmatmul.mubr.bf16.gmra.mxu0 %v1060
      %v1191 = vpop.f32.mrf.mxu0
      %v1192 = vadd.f32 0.0, %v1191
      %v1193 = vpop.f32.mrf.mxu0
      %v1194 = vpop.f32.mrf.mxu0
      %v1195 = vadd.f32 0.0, %v1194
      %v1196 = vpop.f32.mrf.mxu0
      %1197 = vmatprep.mubr.bf16.mxu0 0
      %1198 = vmatmul.mubr.bf16.gmra.mxu0 %v1063
      %v1199 = vpop.f32.mrf.mxu0
      %v1200 = vadd.f32 0.0, %v1199
      %v1201 = vpop.f32.mrf.mxu0
      %v1202 = vpop.f32.mrf.mxu0
      %v1203 = vadd.f32 0.0, %v1202
      %v1204 = vpop.f32.mrf.mxu0
      %1205 = vmatprep.mubr.bf16.mxu0 0
      %1206 = vmatmul.mubr.bf16.gmra.mxu0 %v1066
      %v1207 = vpop.f32.mrf.mxu0
      %v1208 = vadd.f32 0.0, %v1207
      %v1209 = vpop.f32.mrf.mxu0
      %v1210 = vpop.f32.mrf.mxu0
      %v1211 = vadd.f32 0.0, %v1210
      %v1212 = vpop.f32.mrf.mxu0
      %1213 = vmatprep.mubr.bf16.mxu0 0
      %1214 = vmatmul.mubr.bf16.gmra.mxu0 %v1069
      %v1215 = vpop.f32.mrf.mxu0
      %v1216 = vadd.f32 0.0, %v1215
      %v1217 = vpop.f32.mrf.mxu0
      %v1218 = vpop.f32.mrf.mxu0
      %v1219 = vadd.f32 0.0, %v1218
      %v1220 = vpop.f32.mrf.mxu0
      %1221 = vmatprep.mubr.bf16.mxu0 0
      %1222 = vmatmul.mubr.bf16.gmra.mxu0 %v1072
      %v1223 = vpop.f32.mrf.mxu0
      %v1224 = vadd.f32 0.0, %v1223
      %v1225 = vpop.f32.mrf.mxu0
      %v1226 = vpop.f32.mrf.mxu0
      %v1227 = vadd.f32 0.0, %v1226
      %v1228 = vpop.f32.mrf.mxu0
      %1229 = vmatprep.mubr.bf16.mxu0 0
      %1230 = vmatmul.mubr.bf16.gmra.mxu0 %v1075
      %v1231 = vpop.f32.mrf.mxu0
      %v1232 = vadd.f32 0.0, %v1231
      %v1233 = vpop.f32.mrf.mxu0
      %v1234 = vpop.f32.mrf.mxu0
      %v1235 = vadd.f32 0.0, %v1234
      %v1236 = vpop.f32.mrf.mxu0
      %1237 = vdwg.mxu0
      %v1238 = vadd.f32 %v840, %v1112
      %v1239 = vadd.f32 %v843, %v1115
      %v1240 = vadd.f32 %v848, %v1120
      %v1241 = vadd.f32 %v851, %v1123
      %v1242 = vadd.f32 %v856, %v1128
      %v1243 = vadd.f32 %v859, %v1131
      %v1244 = vadd.f32 %v864, %v1136
      %v1245 = vadd.f32 %v867, %v1139
      %v1246 = vadd.f32 %v872, %v1144
      %v1247 = vadd.f32 %v875, %v1147
      %v1248 = vadd.f32 %v880, %v1152
      %v1249 = vadd.f32 %v883, %v1155
      %v1250 = vadd.f32 %v888, %v1160
      %v1251 = vadd.f32 %v891, %v1163
      %v1252 = vadd.f32 %v896, %v1168
      %v1253 = vadd.f32 %v899, %v1171
      %v1254 = vadd.f32 %v904, %v1176
      %v1255 = vadd.f32 %v907, %v1179
      %v1256 = vadd.f32 %v912, %v1184
      %v1257 = vadd.f32 %v915, %v1187
      %v1258 = vadd.f32 %v920, %v1192
      %v1259 = vadd.f32 %v923, %v1195
      %v1260 = vadd.f32 %v928, %v1200
      %v1261 = vadd.f32 %v931, %v1203
      %v1262 = vadd.f32 %v936, %v1208
      %v1263 = vadd.f32 %v939, %v1211
      %v1264 = vadd.f32 %v944, %v1216
      %v1265 = vadd.f32 %v947, %v1219
      %v1266 = vadd.f32 %v952, %v1224
      %v1267 = vadd.f32 %v955, %v1227
      %v1268 = vadd.f32 %v960, %v1232
      %v1269 = vadd.f32 %v963, %v1235
      %v1270 = vld [vmem:[%s242 + $0x8] sm:$0xe]
      %v1271 = vld [vmem:[%s242 + $0xc] sm:$0xf]
      %v1272 = vld [vmem:[%s242 + $0x10] sm:$0xf]
      %v1273 = vld [vmem:[%s242 + $0x14] sm:$0xf]
      %v1274 = vld [vmem:[%s242 + $0x18] sm:$0xf]
      %v1275 = vld [vmem:[%s242 + $0x1c] sm:$0xf]
      %v1276 = vld [vmem:[%s242 + $0x20] sm:$0xf]
      %v1277 = vld [vmem:[%s242 + $0x24] sm:$0xf]
      %v1278 = vld [vmem:[%s242 + $0x28] sm:$0xf]
      %v1279 = vld [vmem:[%s242 + $0x2c] sm:$0xf]
      %v1280 = vld [vmem:[%s242 + $0x30] sm:$0xf]
      %v1281 = vld [vmem:[%s242 + $0x34] sm:$0xf]
      %v1282 = vld [vmem:[%s242 + $0x38] sm:$0xf]
      %v1283 = vld [vmem:[%s242 + $0x3c] sm:$0xf]
      %v1284 = vld [vmem:[%s242 + $0x40] sm:$0xf]
      %v1285 = vld [vmem:[%s242 + $0x44] sm:$0xf]
      %v1286 = vld [vmem:[%s242 + $0x48] sm:$0xf]
      %v1287 = vld [vmem:[%s242 + $0x4c] sm:$0xf]
      %v1288 = vld [vmem:[%s242 + $0x50] sm:$0xf]
      %v1289 = vld [vmem:[%s242 + $0x54] sm:$0xf]
      %v1290 = vld [vmem:[%s242 + $0x58] sm:$0xf]
      %v1291 = vld [vmem:[%s242 + $0x5c] sm:$0xf]
      %v1292 = vld [vmem:[%s242 + $0x60] sm:$0xf]
      %v1293 = vld [vmem:[%s242 + $0x64] sm:$0xf]
      %v1294 = vld [vmem:[%s242 + $0x68] sm:$0xf]
      %v1295 = vld [vmem:[%s242 + $0x6c] sm:$0xf]
      %v1296 = vld [vmem:[%s242 + $0x70] sm:$0xf]
      %v1297 = vld [vmem:[%s242 + $0x74] sm:$0xf]
      %v1298 = vld [vmem:[%s242 + $0x78] sm:$0xf]
      %v1299 = vld [vmem:[%s242 + $0x7c] sm:$0xf]
      %v1300 = vld [vmem:[%s242 + $0x80] sm:$0xf]
      %v1301 = vld [vmem:[%s242 + $0x84] sm:$0xf]
      %v1302 = vld [vmem:[%s242 + $0x88] sm:$0x1]
      %s1303 = scalar_lea.vmem %s2, 72
      %v1304 = vld [vmem:[%s1303] sm:$0xf]
      %v1305 = vld [vmem:[%s1303 + $0x4] sm:$0xf]
      %v1306 = vld [vmem:[%s1303 + $0x8] sm:$0xf]
      %v1307 = vld [vmem:[%s1303 + $0xc] sm:$0xf]
      %v1308 = vld [vmem:[%s1303 + $0x10] sm:$0xf]
      %v1309 = vld [vmem:[%s1303 + $0x14] sm:$0xf]
      %v1343 = vunpack.c.l.b16 %v1270
      %v1344 = vunpack.c.l.b16 %v1271
      %v1345 = vunpack.c.l.b16 %v1272
      %v1346 = vunpack.c.l.b16 %v1273
      %v1347 = vunpack.c.l.b16 %v1274
      %v1348 = vunpack.c.l.b16 %v1275
      %v1349 = vunpack.c.l.b16 %v1276
      %v1350 = vunpack.c.l.b16 %v1277
      %v1351 = vunpack.c.l.b16 %v1278
      %v1352 = vunpack.c.l.b16 %v1279
      %v1353 = vunpack.c.l.b16 %v1280
      %v1354 = vunpack.c.l.b16 %v1281
      %v1355 = vunpack.c.l.b16 %v1282
      %v1356 = vunpack.c.l.b16 %v1283
      %v1357 = vunpack.c.l.b16 %v1284
      %v1358 = vunpack.c.l.b16 %v1285
      %v1359 = vunpack.c.l.b16 %v1286
      %v1360 = vunpack.c.l.b16 %v1287
      %v1361 = vunpack.c.l.b16 %v1288
      %v1362 = vunpack.c.l.b16 %v1289
      %v1363 = vunpack.c.l.b16 %v1290
      %v1364 = vunpack.c.l.b16 %v1291
      %v1365 = vunpack.c.l.b16 %v1292
      %v1366 = vunpack.c.l.b16 %v1293
      %v1367 = vunpack.c.l.b16 %v1294
      %v1368 = vunpack.c.l.b16 %v1295
      %v1369 = vunpack.c.l.b16 %v1296
      %v1370 = vunpack.c.l.b16 %v1297
      %v1371 = vunpack.c.l.b16 %v1298
      %v1372 = vunpack.c.l.b16 %v1299
      %v1373 = vunpack.c.l.b16 %v1300
      %v1374 = vunpack.c.l.b16 %v1301
      %v1375 = vunpack.c.l.b16 %v1302
      %v1376 = vpack.c.b16 %v1344, %v1343
      %v1377 = vpack.c.b16 %v1346, %v1345
      %v1378 = vpack.c.b16 %v1348, %v1347
      %v1379 = vpack.c.b16 %v1350, %v1349
      %v1380 = vpack.c.b16 %v1352, %v1351
      %v1381 = vpack.c.b16 %v1354, %v1353
      %v1382 = vpack.c.b16 %v1356, %v1355
      %v1383 = vpack.c.b16 %v1358, %v1357
      %v1384 = vpack.c.b16 %v1360, %v1359
      %v1385 = vpack.c.b16 %v1362, %v1361
      %v1386 = vpack.c.b16 %v1364, %v1363
      %v1387 = vpack.c.b16 %v1366, %v1365
      %v1388 = vpack.c.b16 %v1368, %v1367
      %v1389 = vpack.c.b16 %v1370, %v1369
      %v1390 = vpack.c.b16 %v1372, %v1371
      %v1391 = vpack.c.b16 %v1374, %v1373
      %v1392 = vpack.c.b16 %v1375, %v1375
      %v1393 = vrot.slane %v1376, 1
      %v1394 = vrot.slane %v1377, 1
      %v1395 = vsel %vm977, %v1393, %v1394
      %v1396 = vrot.slane %v1378, 1
      %v1397 = vsel %vm977, %v1394, %v1396
      %v1398 = vrot.slane %v1379, 1
      %v1399 = vsel %vm977, %v1396, %v1398
      %v1400 = vrot.slane %v1380, 1
      %v1401 = vsel %vm977, %v1398, %v1400
      %v1402 = vrot.slane %v1381, 1
      %v1403 = vsel %vm977, %v1400, %v1402
      %v1404 = vrot.slane %v1382, 1
      %v1405 = vsel %vm977, %v1402, %v1404
      %v1406 = vrot.slane %v1383, 1
      %v1407 = vsel %vm977, %v1404, %v1406
      %v1408 = vrot.slane %v1384, 1
      %v1409 = vsel %vm977, %v1406, %v1408
      %v1410 = vrot.slane %v1385, 1
      %v1411 = vsel %vm977, %v1408, %v1410
      %v1412 = vrot.slane %v1386, 1
      %v1413 = vsel %vm977, %v1410, %v1412
      %v1414 = vrot.slane %v1387, 1
      %v1415 = vsel %vm977, %v1412, %v1414
      %v1416 = vrot.slane %v1388, 1
      %v1417 = vsel %vm977, %v1414, %v1416
      %v1418 = vrot.slane %v1389, 1
      %v1419 = vsel %vm977, %v1416, %v1418
      %v1420 = vrot.slane %v1390, 1
      %v1421 = vsel %vm977, %v1418, %v1420
      %v1422 = vrot.slane %v1391, 1
      %v1423 = vsel %vm977, %v1420, %v1422
      %v1424 = vrot.slane %v1392, 1
      %v1425 = vsel %vm977, %v1422, %v1424
      %v1432 = vunpack.c.l.b16 %v1304
      %v1433 = vunpack.c.l.b16 %v1305
      %v1434 = vunpack.c.l.b16 %v1306
      %v1435 = vunpack.c.l.b16 %v1307
      %v1436 = vunpack.c.l.b16 %v1308
      %v1437 = vunpack.c.l.b16 %v1309
      %v1438 = vpack.c.b16 %v1433, %v1432
      %v1439 = vpack.c.b16 %v1435, %v1434
      %v1440 = vpack.c.b16 %v1437, %v1436
      %v1445 = vsel %vm545, %v1395, 0
      %v1448 = vsel %vm545, %v1397, 0
      %v1451 = vsel %vm545, %v1399, 0
      %v1454 = vsel %vm545, %v1401, 0
      %v1457 = vsel %vm545, %v1403, 0
      %v1460 = vsel %vm545, %v1405, 0
      %v1463 = vsel %vm545, %v1407, 0
      %v1466 = vsel %vm545, %v1409, 0
      %v1469 = vsel %vm545, %v1411, 0
      %v1472 = vsel %vm545, %v1413, 0
      %v1475 = vsel %vm545, %v1415, 0
      %v1478 = vsel %vm545, %v1417, 0
      %v1481 = vsel %vm545, %v1419, 0
      %v1484 = vsel %vm545, %v1421, 0
      %v1487 = vsel %vm545, %v1423, 0
      %v1490 = vsel %vm545, %v1425, 0
      %1492 = vmatprep.subr.bf16.mxu0 0
      %1493 = vmatpush1.bf16.msra.mxu0 0
      %1494 = vmatprep.subr.bf16.mxu0 0
      %1495 = vmatpush1.bf16.msra.mxu0 0
      %1496 = vmatprep.subr.bf16.mxu0 0
      %1497 = vmatpush1.bf16.msra.mxu0 0
      %1498 = vmatprep.subr.bf16.mxu0 0
      %1499 = vmatpush1.bf16.msra.mxu0 0
      %1500 = vmatprep.subr.bf16.mxu0 0
      %1501 = vmatpush1.bf16.msra.mxu0 0
      %1502 = vmatprep.subr.bf16.mxu0 0
      %1503 = vmatpush1.bf16.msra.mxu0 %v1440
      %1504 = vmatprep.subr.bf16.mxu0 0
      %1505 = vmatpush1.bf16.msra.mxu0 %v1439
      %1506 = vmatprep.subr.bf16.mxu0 0
      %1507 = vmatpush1.bf16.msra.mxu0 %v1438
      %1508 = vmatprep.subr.bf16.mxu0 0
      %1509 = vmatpush2.bf16.msra.mxu0 0
      %1510 = vmatprep.subr.bf16.mxu0 0
      %1511 = vmatpush2.bf16.msra.mxu0 0
      %1512 = vmatprep.subr.bf16.mxu0 0
      %1513 = vmatpush2.bf16.msra.mxu0 0
      %1514 = vmatprep.subr.bf16.mxu0 0
      %1515 = vmatpush2.bf16.msra.mxu0 0
      %1516 = vmatprep.subr.bf16.mxu0 0
      %1517 = vmatpush2.bf16.msra.mxu0 0
      %1518 = vmatprep.subr.bf16.mxu0 0
      %1519 = vmatpush2.bf16.msra.mxu0 0
      %1520 = vmatprep.subr.bf16.mxu0 0
      %1521 = vmatpush2.bf16.msra.mxu0 0
      %1522 = vmatprep.subr.bf16.mxu0 0
      %1523 = vmatpush2.bf16.msra.mxu0 0
      %1524 = vmatprep.mubr.bf16.mxu0 0
      %1525 = vmatmul.mubr.bf16.gmra.mxu0 %v1445
      %v1526 = vpop.f32.mrf.mxu0
      %v1527 = vadd.f32 0.0, %v1526
      %v1528 = vpop.f32.mrf.mxu0
      %v1529 = vpop.f32.mrf.mxu0
      %v1530 = vadd.f32 0.0, %v1529
      %v1531 = vpop.f32.mrf.mxu0
      %1532 = vmatprep.mubr.bf16.mxu0 0
      %1533 = vmatmul.mubr.bf16.gmra.mxu0 %v1448
      %v1534 = vpop.f32.mrf.mxu0
      %v1535 = vadd.f32 0.0, %v1534
      %v1536 = vpop.f32.mrf.mxu0
      %v1537 = vpop.f32.mrf.mxu0
      %v1538 = vadd.f32 0.0, %v1537
      %v1539 = vpop.f32.mrf.mxu0
      %1540 = vmatprep.mubr.bf16.mxu0 0
      %1541 = vmatmul.mubr.bf16.gmra.mxu0 %v1451
      %v1542 = vpop.f32.mrf.mxu0
      %v1543 = vadd.f32 0.0, %v1542
      %v1544 = vpop.f32.mrf.mxu0
      %v1545 = vpop.f32.mrf.mxu0
      %v1546 = vadd.f32 0.0, %v1545
      %v1547 = vpop.f32.mrf.mxu0
      %1548 = vmatprep.mubr.bf16.mxu0 0
      %1549 = vmatmul.mubr.bf16.gmra.mxu0 %v1454
      %v1550 = vpop.f32.mrf.mxu0
      %v1551 = vadd.f32 0.0, %v1550
      %v1552 = vpop.f32.mrf.mxu0
      %v1553 = vpop.f32.mrf.mxu0
      %v1554 = vadd.f32 0.0, %v1553
      %v1555 = vpop.f32.mrf.mxu0
      %1556 = vmatprep.mubr.bf16.mxu0 0
      %1557 = vmatmul.mubr.bf16.gmra.mxu0 %v1457
      %v1558 = vpop.f32.mrf.mxu0
      %v1559 = vadd.f32 0.0, %v1558
      %v1560 = vpop.f32.mrf.mxu0
      %v1561 = vpop.f32.mrf.mxu0
      %v1562 = vadd.f32 0.0, %v1561
      %v1563 = vpop.f32.mrf.mxu0
      %1564 = vmatprep.mubr.bf16.mxu0 0
      %1565 = vmatmul.mubr.bf16.gmra.mxu0 %v1460
      %v1566 = vpop.f32.mrf.mxu0
      %v1567 = vadd.f32 0.0, %v1566
      %v1568 = vpop.f32.mrf.mxu0
      %v1569 = vpop.f32.mrf.mxu0
      %v1570 = vadd.f32 0.0, %v1569
      %v1571 = vpop.f32.mrf.mxu0
      %1572 = vmatprep.mubr.bf16.mxu0 0
      %1573 = vmatmul.mubr.bf16.gmra.mxu0 %v1463
      %v1574 = vpop.f32.mrf.mxu0
      %v1575 = vadd.f32 0.0, %v1574
      %v1576 = vpop.f32.mrf.mxu0
      %v1577 = vpop.f32.mrf.mxu0
      %v1578 = vadd.f32 0.0, %v1577
      %v1579 = vpop.f32.mrf.mxu0
      %1580 = vmatprep.mubr.bf16.mxu0 0
      %1581 = vmatmul.mubr.bf16.gmra.mxu0 %v1466
      %v1582 = vpop.f32.mrf.mxu0
      %v1583 = vadd.f32 0.0, %v1582
      %v1584 = vpop.f32.mrf.mxu0
      %v1585 = vpop.f32.mrf.mxu0
      %v1586 = vadd.f32 0.0, %v1585
      %v1587 = vpop.f32.mrf.mxu0
      %1588 = vmatprep.mubr.bf16.mxu0 0
      %1589 = vmatmul.mubr.bf16.gmra.mxu0 %v1469
      %v1590 = vpop.f32.mrf.mxu0
      %v1591 = vadd.f32 0.0, %v1590
      %v1592 = vpop.f32.mrf.mxu0
      %v1593 = vpop.f32.mrf.mxu0
      %v1594 = vadd.f32 0.0, %v1593
      %v1595 = vpop.f32.mrf.mxu0
      %1596 = vmatprep.mubr.bf16.mxu0 0
      %1597 = vmatmul.mubr.bf16.gmra.mxu0 %v1472
      %v1598 = vpop.f32.mrf.mxu0
      %v1599 = vadd.f32 0.0, %v1598
      %v1600 = vpop.f32.mrf.mxu0
      %v1601 = vpop.f32.mrf.mxu0
      %v1602 = vadd.f32 0.0, %v1601
      %v1603 = vpop.f32.mrf.mxu0
      %1604 = vmatprep.mubr.bf16.mxu0 0
      %1605 = vmatmul.mubr.bf16.gmra.mxu0 %v1475
      %v1606 = vpop.f32.mrf.mxu0
      %v1607 = vadd.f32 0.0, %v1606
      %v1608 = vpop.f32.mrf.mxu0
      %v1609 = vpop.f32.mrf.mxu0
      %v1610 = vadd.f32 0.0, %v1609
      %v1611 = vpop.f32.mrf.mxu0
      %1612 = vmatprep.mubr.bf16.mxu0 0
      %1613 = vmatmul.mubr.bf16.gmra.mxu0 %v1478
      %v1614 = vpop.f32.mrf.mxu0
      %v1615 = vadd.f32 0.0, %v1614
      %v1616 = vpop.f32.mrf.mxu0
      %v1617 = vpop.f32.mrf.mxu0
      %v1618 = vadd.f32 0.0, %v1617
      %v1619 = vpop.f32.mrf.mxu0
      %1620 = vmatprep.mubr.bf16.mxu0 0
      %1621 = vmatmul.mubr.bf16.gmra.mxu0 %v1481
      %v1622 = vpop.f32.mrf.mxu0
      %v1623 = vadd.f32 0.0, %v1622
      %v1624 = vpop.f32.mrf.mxu0
      %v1625 = vpop.f32.mrf.mxu0
      %v1626 = vadd.f32 0.0, %v1625
      %v1627 = vpop.f32.mrf.mxu0
      %1628 = vmatprep.mubr.bf16.mxu0 0
      %1629 = vmatmul.mubr.bf16.gmra.mxu0 %v1484
      %v1630 = vpop.f32.mrf.mxu0
      %v1631 = vadd.f32 0.0, %v1630
      %v1632 = vpop.f32.mrf.mxu0
      %v1633 = vpop.f32.mrf.mxu0
      %v1634 = vadd.f32 0.0, %v1633
      %v1635 = vpop.f32.mrf.mxu0
      %1636 = vmatprep.mubr.bf16.mxu0 0
      %1637 = vmatmul.mubr.bf16.gmra.mxu0 %v1487
      %v1638 = vpop.f32.mrf.mxu0
      %v1639 = vadd.f32 0.0, %v1638
      %v1640 = vpop.f32.mrf.mxu0
      %v1641 = vpop.f32.mrf.mxu0
      %v1642 = vadd.f32 0.0, %v1641
      %v1643 = vpop.f32.mrf.mxu0
      %1644 = vmatprep.mubr.bf16.mxu0 0
      %1645 = vmatmul.mubr.bf16.gmra.mxu0 %v1490
      %v1646 = vpop.f32.mrf.mxu0
      %v1647 = vadd.f32 0.0, %v1646
      %v1648 = vpop.f32.mrf.mxu0
      %v1649 = vpop.f32.mrf.mxu0
      %v1650 = vadd.f32 0.0, %v1649
      %v1651 = vpop.f32.mrf.mxu0
      %1652 = vdwg.mxu0
      %v1653 = vadd.f32 %v1238, %v1527
      %v1654 = vadd.f32 %v1239, %v1530
      %v1655 = vadd.f32 %v1240, %v1535
      %v1656 = vadd.f32 %v1241, %v1538
      %v1657 = vadd.f32 %v1242, %v1543
      %v1658 = vadd.f32 %v1243, %v1546
      %v1659 = vadd.f32 %v1244, %v1551
      %v1660 = vadd.f32 %v1245, %v1554
      %v1661 = vadd.f32 %v1246, %v1559
      %v1662 = vadd.f32 %v1247, %v1562
      %v1663 = vadd.f32 %v1248, %v1567
      %v1664 = vadd.f32 %v1249, %v1570
      %v1665 = vadd.f32 %v1250, %v1575
      %v1666 = vadd.f32 %v1251, %v1578
      %v1667 = vadd.f32 %v1252, %v1583
      %v1668 = vadd.f32 %v1253, %v1586
      %v1669 = vadd.f32 %v1254, %v1591
      %v1670 = vadd.f32 %v1255, %v1594
      %v1671 = vadd.f32 %v1256, %v1599
      %v1672 = vadd.f32 %v1257, %v1602
      %v1673 = vadd.f32 %v1258, %v1607
      %v1674 = vadd.f32 %v1259, %v1610
      %v1675 = vadd.f32 %v1260, %v1615
      %v1676 = vadd.f32 %v1261, %v1618
      %v1677 = vadd.f32 %v1262, %v1623
      %v1678 = vadd.f32 %v1263, %v1626
      %v1679 = vadd.f32 %v1264, %v1631
      %v1680 = vadd.f32 %v1265, %v1634
      %v1681 = vadd.f32 %v1266, %v1639
      %v1682 = vadd.f32 %v1267, %v1642
      %v1683 = vadd.f32 %v1268, %v1647
      %v1684 = vadd.f32 %v1269, %v1650
      %v1685 = vld [vmem:[%s242 + $0x88] sm:$0x3]
      %s1686 = scalar_lea.vmem %s2, 96
      %v1687 = vld [vmem:[%s1686] sm:$0xf]
      %v1688 = vld [vmem:[%s1686 + $0x4] sm:$0xf]
      %v1689 = vld [vmem:[%s1686 + $0x8] sm:$0xf]
      %v1690 = vld [vmem:[%s1686 + $0xc] sm:$0xf]
      %v1691 = vld [vmem:[%s1686 + $0x10] sm:$0xf]
      %v1692 = vld [vmem:[%s1686 + $0x14] sm:$0xf]
      %v1694 = vunpack.c.l.b16 %v1685
      %v1695 = vpack.c.b16 %v1694, %v1694
      %vm1696 = vsmask.f32 6400
      %v1698 = vshrl.u32 %v1376, 16
      %v1700 = vrot.slane %v1698, 1
      %v1701 = vshll.u32 %v1376, 16
      %v1703 = vrot.slane %v1701, 2
      %v1704 = vor.u32 %v1700, %v1703
      %v1706 = vshrl.u32 %v1377, 16
      %v1708 = vrot.slane %v1706, 1
      %v1709 = vshll.u32 %v1377, 16
      %v1711 = vrot.slane %v1709, 2
      %v1712 = vor.u32 %v1708, %v1711
      %v1713 = vsel %vm1696, %v1704, %v1712
      %v1715 = vshrl.u32 %v1378, 16
      %v1717 = vrot.slane %v1715, 1
      %v1718 = vshll.u32 %v1378, 16
      %v1720 = vrot.slane %v1718, 2
      %v1721 = vor.u32 %v1717, %v1720
      %v1722 = vsel %vm1696, %v1712, %v1721
      %v1724 = vshrl.u32 %v1379, 16
      %v1726 = vrot.slane %v1724, 1
      %v1727 = vshll.u32 %v1379, 16
      %v1729 = vrot.slane %v1727, 2
      %v1730 = vor.u32 %v1726, %v1729
      %v1731 = vsel %vm1696, %v1721, %v1730
      %v1733 = vshrl.u32 %v1380, 16
      %v1735 = vrot.slane %v1733, 1
      %v1736 = vshll.u32 %v1380, 16
      %v1738 = vrot.slane %v1736, 2
      %v1739 = vor.u32 %v1735, %v1738
      %v1740 = vsel %vm1696, %v1730, %v1739
      %v1742 = vshrl.u32 %v1381, 16
      %v1744 = vrot.slane %v1742, 1
      %v1745 = vshll.u32 %v1381, 16
      %v1747 = vrot.slane %v1745, 2
      %v1748 = vor.u32 %v1744, %v1747
      %v1749 = vsel %vm1696, %v1739, %v1748
      %v1751 = vshrl.u32 %v1382, 16
      %v1753 = vrot.slane %v1751, 1
      %v1754 = vshll.u32 %v1382, 16
      %v1756 = vrot.slane %v1754, 2
      %v1757 = vor.u32 %v1753, %v1756
      %v1758 = vsel %vm1696, %v1748, %v1757
      %v1760 = vshrl.u32 %v1383, 16
      %v1762 = vrot.slane %v1760, 1
      %v1763 = vshll.u32 %v1383, 16
      %v1765 = vrot.slane %v1763, 2
      %v1766 = vor.u32 %v1762, %v1765
      %v1767 = vsel %vm1696, %v1757, %v1766
      %v1769 = vshrl.u32 %v1384, 16
      %v1771 = vrot.slane %v1769, 1
      %v1772 = vshll.u32 %v1384, 16
      %v1774 = vrot.slane %v1772, 2
      %v1775 = vor.u32 %v1771, %v1774
      %v1776 = vsel %vm1696, %v1766, %v1775
      %v1778 = vshrl.u32 %v1385, 16
      %v1780 = vrot.slane %v1778, 1
      %v1781 = vshll.u32 %v1385, 16
      %v1783 = vrot.slane %v1781, 2
      %v1784 = vor.u32 %v1780, %v1783
      %v1785 = vsel %vm1696, %v1775, %v1784
      %v1787 = vshrl.u32 %v1386, 16
      %v1789 = vrot.slane %v1787, 1
      %v1790 = vshll.u32 %v1386, 16
      %v1792 = vrot.slane %v1790, 2
      %v1793 = vor.u32 %v1789, %v1792
      %v1794 = vsel %vm1696, %v1784, %v1793
      %v1796 = vshrl.u32 %v1387, 16
      %v1798 = vrot.slane %v1796, 1
      %v1799 = vshll.u32 %v1387, 16
      %v1801 = vrot.slane %v1799, 2
      %v1802 = vor.u32 %v1798, %v1801
      %v1803 = vsel %vm1696, %v1793, %v1802
      %v1805 = vshrl.u32 %v1388, 16
      %v1807 = vrot.slane %v1805, 1
      %v1808 = vshll.u32 %v1388, 16
      %v1810 = vrot.slane %v1808, 2
      %v1811 = vor.u32 %v1807, %v1810
      %v1812 = vsel %vm1696, %v1802, %v1811
      %v1814 = vshrl.u32 %v1389, 16
      %v1816 = vrot.slane %v1814, 1
      %v1817 = vshll.u32 %v1389, 16
      %v1819 = vrot.slane %v1817, 2
      %v1820 = vor.u32 %v1816, %v1819
      %v1821 = vsel %vm1696, %v1811, %v1820
      %v1823 = vshrl.u32 %v1390, 16
      %v1825 = vrot.slane %v1823, 1
      %v1826 = vshll.u32 %v1390, 16
      %v1828 = vrot.slane %v1826, 2
      %v1829 = vor.u32 %v1825, %v1828
      %v1830 = vsel %vm1696, %v1820, %v1829
      %v1832 = vshrl.u32 %v1391, 16
      %v1834 = vrot.slane %v1832, 1
      %v1835 = vshll.u32 %v1391, 16
      %v1837 = vrot.slane %v1835, 2
      %v1838 = vor.u32 %v1834, %v1837
      %v1839 = vsel %vm1696, %v1829, %v1838
      %v1841 = vshrl.u32 %v1695, 16
      %v1843 = vrot.slane %v1841, 1
      %v1844 = vshll.u32 %v1695, 16
      %v1846 = vrot.slane %v1844, 2
      %v1847 = vor.u32 %v1843, %v1846
      %v1848 = vsel %vm1696, %v1838, %v1847
      %v1855 = vunpack.c.l.b16 %v1687
      %v1856 = vunpack.c.l.b16 %v1688
      %v1857 = vunpack.c.l.b16 %v1689
      %v1858 = vunpack.c.l.b16 %v1690
      %v1859 = vunpack.c.l.b16 %v1691
      %v1860 = vunpack.c.l.b16 %v1692
      %v1861 = vpack.c.b16 %v1856, %v1855
      %v1862 = vpack.c.b16 %v1858, %v1857
      %v1863 = vpack.c.b16 %v1860, %v1859
      %v1868 = vsel %vm545, %v1713, 0
      %v1871 = vsel %vm545, %v1722, 0
      %v1874 = vsel %vm545, %v1731, 0
      %v1877 = vsel %vm545, %v1740, 0
      %v1880 = vsel %vm545, %v1749, 0
      %v1883 = vsel %vm545, %v1758, 0
      %v1886 = vsel %vm545, %v1767, 0
      %v1889 = vsel %vm545, %v1776, 0
      %v1892 = vsel %vm545, %v1785, 0
      %v1895 = vsel %vm545, %v1794, 0
      %v1898 = vsel %vm545, %v1803, 0
      %v1901 = vsel %vm545, %v1812, 0
      %v1904 = vsel %vm545, %v1821, 0
      %v1907 = vsel %vm545, %v1830, 0
      %v1910 = vsel %vm545, %v1839, 0
      %v1913 = vsel %vm545, %v1848, 0
      %1915 = vmatprep.subr.bf16.mxu0 0
      %1916 = vmatpush1.bf16.msra.mxu0 0
      %1917 = vmatprep.subr.bf16.mxu0 0
      %1918 = vmatpush1.bf16.msra.mxu0 0
      %1919 = vmatprep.subr.bf16.mxu0 0
      %1920 = vmatpush1.bf16.msra.mxu0 0
      %1921 = vmatprep.subr.bf16.mxu0 0
      %1922 = vmatpush1.bf16.msra.mxu0 0
      %1923 = vmatprep.subr.bf16.mxu0 0
      %1924 = vmatpush1.bf16.msra.mxu0 0
      %1925 = vmatprep.subr.bf16.mxu0 0
      %1926 = vmatpush1.bf16.msra.mxu0 %v1863
      %1927 = vmatprep.subr.bf16.mxu0 0
      %1928 = vmatpush1.bf16.msra.mxu0 %v1862
      %1929 = vmatprep.subr.bf16.mxu0 0
      %1930 = vmatpush1.bf16.msra.mxu0 %v1861
      %1931 = vmatprep.subr.bf16.mxu0 0
      %1932 = vmatpush2.bf16.msra.mxu0 0
      %1933 = vmatprep.subr.bf16.mxu0 0
      %1934 = vmatpush2.bf16.msra.mxu0 0
      %1935 = vmatprep.subr.bf16.mxu0 0
      %1936 = vmatpush2.bf16.msra.mxu0 0
      %1937 = vmatprep.subr.bf16.mxu0 0
      %1938 = vmatpush2.bf16.msra.mxu0 0
      %1939 = vmatprep.subr.bf16.mxu0 0
      %1940 = vmatpush2.bf16.msra.mxu0 0
      %1941 = vmatprep.subr.bf16.mxu0 0
      %1942 = vmatpush2.bf16.msra.mxu0 0
      %1943 = vmatprep.subr.bf16.mxu0 0
      %1944 = vmatpush2.bf16.msra.mxu0 0
      %1945 = vmatprep.subr.bf16.mxu0 0
      %1946 = vmatpush2.bf16.msra.mxu0 0
      %1947 = vmatprep.mubr.bf16.mxu0 0
      %1948 = vmatmul.mubr.bf16.gmra.mxu0 %v1868
      %v1949 = vpop.f32.mrf.mxu0
      %v1950 = vadd.f32 0.0, %v1949
      %v1951 = vpop.f32.mrf.mxu0
      %v1952 = vpop.f32.mrf.mxu0
      %v1953 = vadd.f32 0.0, %v1952
      %v1954 = vpop.f32.mrf.mxu0
      %1955 = vmatprep.mubr.bf16.mxu0 0
      %1956 = vmatmul.mubr.bf16.gmra.mxu0 %v1871
      %v1957 = vpop.f32.mrf.mxu0
      %v1958 = vadd.f32 0.0, %v1957
      %v1959 = vpop.f32.mrf.mxu0
      %v1960 = vpop.f32.mrf.mxu0
      %v1961 = vadd.f32 0.0, %v1960
      %v1962 = vpop.f32.mrf.mxu0
      %1963 = vmatprep.mubr.bf16.mxu0 0
      %1964 = vmatmul.mubr.bf16.gmra.mxu0 %v1874
      %v1965 = vpop.f32.mrf.mxu0
      %v1966 = vadd.f32 0.0, %v1965
      %v1967 = vpop.f32.mrf.mxu0
      %v1968 = vpop.f32.mrf.mxu0
      %v1969 = vadd.f32 0.0, %v1968
      %v1970 = vpop.f32.mrf.mxu0
      %1971 = vmatprep.mubr.bf16.mxu0 0
      %1972 = vmatmul.mubr.bf16.gmra.mxu0 %v1877
      %v1973 = vpop.f32.mrf.mxu0
      %v1974 = vadd.f32 0.0, %v1973
      %v1975 = vpop.f32.mrf.mxu0
      %v1976 = vpop.f32.mrf.mxu0
      %v1977 = vadd.f32 0.0, %v1976
      %v1978 = vpop.f32.mrf.mxu0
      %1979 = vmatprep.mubr.bf16.mxu0 0
      %1980 = vmatmul.mubr.bf16.gmra.mxu0 %v1880
      %v1981 = vpop.f32.mrf.mxu0
      %v1982 = vadd.f32 0.0, %v1981
      %v1983 = vpop.f32.mrf.mxu0
      %v1984 = vpop.f32.mrf.mxu0
      %v1985 = vadd.f32 0.0, %v1984
      %v1986 = vpop.f32.mrf.mxu0
      %1987 = vmatprep.mubr.bf16.mxu0 0
      %1988 = vmatmul.mubr.bf16.gmra.mxu0 %v1883
      %v1989 = vpop.f32.mrf.mxu0
      %v1990 = vadd.f32 0.0, %v1989
      %v1991 = vpop.f32.mrf.mxu0
      %v1992 = vpop.f32.mrf.mxu0
      %v1993 = vadd.f32 0.0, %v1992
      %v1994 = vpop.f32.mrf.mxu0
      %1995 = vmatprep.mubr.bf16.mxu0 0
      %1996 = vmatmul.mubr.bf16.gmra.mxu0 %v1886
      %v1997 = vpop.f32.mrf.mxu0
      %v1998 = vadd.f32 0.0, %v1997
      %v1999 = vpop.f32.mrf.mxu0
      %v2000 = vpop.f32.mrf.mxu0
      %v2001 = vadd.f32 0.0, %v2000
      %v2002 = vpop.f32.mrf.mxu0
      %2003 = vmatprep.mubr.bf16.mxu0 0
      %2004 = vmatmul.mubr.bf16.gmra.mxu0 %v1889
      %v2005 = vpop.f32.mrf.mxu0
      %v2006 = vadd.f32 0.0, %v2005
      %v2007 = vpop.f32.mrf.mxu0
      %v2008 = vpop.f32.mrf.mxu0
      %v2009 = vadd.f32 0.0, %v2008
      %v2010 = vpop.f32.mrf.mxu0
      %2011 = vmatprep.mubr.bf16.mxu0 0
      %2012 = vmatmul.mubr.bf16.gmra.mxu0 %v1892
      %v2013 = vpop.f32.mrf.mxu0
      %v2014 = vadd.f32 0.0, %v2013
      %v2015 = vpop.f32.mrf.mxu0
      %v2016 = vpop.f32.mrf.mxu0
      %v2017 = vadd.f32 0.0, %v2016
      %v2018 = vpop.f32.mrf.mxu0
      %2019 = vmatprep.mubr.bf16.mxu0 0
      %2020 = vmatmul.mubr.bf16.gmra.mxu0 %v1895
      %v2021 = vpop.f32.mrf.mxu0
      %v2022 = vadd.f32 0.0, %v2021
      %v2023 = vpop.f32.mrf.mxu0
      %v2024 = vpop.f32.mrf.mxu0
      %v2025 = vadd.f32 0.0, %v2024
      %v2026 = vpop.f32.mrf.mxu0
      %2027 = vmatprep.mubr.bf16.mxu0 0
      %2028 = vmatmul.mubr.bf16.gmra.mxu0 %v1898
      %v2029 = vpop.f32.mrf.mxu0
      %v2030 = vadd.f32 0.0, %v2029
      %v2031 = vpop.f32.mrf.mxu0
      %v2032 = vpop.f32.mrf.mxu0
      %v2033 = vadd.f32 0.0, %v2032
      %v2034 = vpop.f32.mrf.mxu0
      %2035 = vmatprep.mubr.bf16.mxu0 0
      %2036 = vmatmul.mubr.bf16.gmra.mxu0 %v1901
      %v2037 = vpop.f32.mrf.mxu0
      %v2038 = vadd.f32 0.0, %v2037
      %v2039 = vpop.f32.mrf.mxu0
      %v2040 = vpop.f32.mrf.mxu0
      %v2041 = vadd.f32 0.0, %v2040
      %v2042 = vpop.f32.mrf.mxu0
      %2043 = vmatprep.mubr.bf16.mxu0 0
      %2044 = vmatmul.mubr.bf16.gmra.mxu0 %v1904
      %v2045 = vpop.f32.mrf.mxu0
      %v2046 = vadd.f32 0.0, %v2045
      %v2047 = vpop.f32.mrf.mxu0
      %v2048 = vpop.f32.mrf.mxu0
      %v2049 = vadd.f32 0.0, %v2048
      %v2050 = vpop.f32.mrf.mxu0
      %2051 = vmatprep.mubr.bf16.mxu0 0
      %2052 = vmatmul.mubr.bf16.gmra.mxu0 %v1907
      %v2053 = vpop.f32.mrf.mxu0
      %v2054 = vadd.f32 0.0, %v2053
      %v2055 = vpop.f32.mrf.mxu0
      %v2056 = vpop.f32.mrf.mxu0
      %v2057 = vadd.f32 0.0, %v2056
      %v2058 = vpop.f32.mrf.mxu0
      %2059 = vmatprep.mubr.bf16.mxu0 0
      %2060 = vmatmul.mubr.bf16.gmra.mxu0 %v1910
      %v2061 = vpop.f32.mrf.mxu0
      %v2062 = vadd.f32 0.0, %v2061
      %v2063 = vpop.f32.mrf.mxu0
      %v2064 = vpop.f32.mrf.mxu0
      %v2065 = vadd.f32 0.0, %v2064
      %v2066 = vpop.f32.mrf.mxu0
      %2067 = vmatprep.mubr.bf16.mxu0 0
      %2068 = vmatmul.mubr.bf16.gmra.mxu0 %v1913
      %v2069 = vpop.f32.mrf.mxu0
      %v2070 = vadd.f32 0.0, %v2069
      %v2071 = vpop.f32.mrf.mxu0
      %v2072 = vpop.f32.mrf.mxu0
      %v2073 = vadd.f32 0.0, %v2072
      %v2074 = vpop.f32.mrf.mxu0
      %2075 = vdwg.mxu0
      %v2076 = vadd.f32 %v1653, %v1950
      %v2077 = vadd.f32 %v1654, %v1953
      %v2078 = vadd.f32 %v1655, %v1958
      %v2079 = vadd.f32 %v1656, %v1961
      %v2080 = vadd.f32 %v1657, %v1966
      %v2081 = vadd.f32 %v1658, %v1969
      %v2082 = vadd.f32 %v1659, %v1974
      %v2083 = vadd.f32 %v1660, %v1977
      %v2084 = vadd.f32 %v1661, %v1982
      %v2085 = vadd.f32 %v1662, %v1985
      %v2086 = vadd.f32 %v1663, %v1990
      %v2087 = vadd.f32 %v1664, %v1993
      %v2088 = vadd.f32 %v1665, %v1998
      %v2089 = vadd.f32 %v1666, %v2001
      %v2090 = vadd.f32 %v1667, %v2006
      %v2091 = vadd.f32 %v1668, %v2009
      %v2092 = vadd.f32 %v1669, %v2014
      %v2093 = vadd.f32 %v1670, %v2017
      %v2094 = vadd.f32 %v1671, %v2022
      %v2095 = vadd.f32 %v1672, %v2025
      %v2096 = vadd.f32 %v1673, %v2030
      %v2097 = vadd.f32 %v1674, %v2033
      %v2098 = vadd.f32 %v1675, %v2038
      %v2099 = vadd.f32 %v1676, %v2041
      %v2100 = vadd.f32 %v1677, %v2046
      %v2101 = vadd.f32 %v1678, %v2049
      %v2102 = vadd.f32 %v1679, %v2054
      %v2103 = vadd.f32 %v1680, %v2057
      %v2104 = vadd.f32 %v1681, %v2062
      %v2105 = vadd.f32 %v1682, %v2065
      %v2106 = vadd.f32 %v1683, %v2070
      %v2107 = vadd.f32 %v1684, %v2073
      %v2108 = vld [vmem:[%s242 + $0x8] sm:$0xc]
      %s2109 = scalar_lea.vmem %s2, 120
      %v2110 = vld [vmem:[%s2109] sm:$0xf]
      %v2111 = vld [vmem:[%s2109 + $0x4] sm:$0xf]
      %v2112 = vld [vmem:[%s2109 + $0x8] sm:$0xf]
      %v2113 = vld [vmem:[%s2109 + $0xc] sm:$0xf]
      %v2114 = vld [vmem:[%s2109 + $0x10] sm:$0xf]
      %v2115 = vld [vmem:[%s2109 + $0x14] sm:$0xf]
      %v2117 = vunpack.c.l.b16 %v2108
      %v2118 = vpack.c.b16 %v1344, %v2117
      %vm2119 = vcmask 1045504
      %v2120 = vrot.slane %v2118, 2
      %v2121 = vrot.slane %v1377, 2
      %v2122 = vsel %vm2119, %v2120, %v2121
      %v2123 = vrot.slane %v1378, 2
      %v2124 = vsel %vm2119, %v2121, %v2123
      %v2125 = vrot.slane %v1379, 2
      %v2126 = vsel %vm2119, %v2123, %v2125
      %v2127 = vrot.slane %v1380, 2
      %v2128 = vsel %vm2119, %v2125, %v2127
      %v2129 = vrot.slane %v1381, 2
      %v2130 = vsel %vm2119, %v2127, %v2129
      %v2131 = vrot.slane %v1382, 2
      %v2132 = vsel %vm2119, %v2129, %v2131
      %v2133 = vrot.slane %v1383, 2
      %v2134 = vsel %vm2119, %v2131, %v2133
      %v2135 = vrot.slane %v1384, 2
      %v2136 = vsel %vm2119, %v2133, %v2135
      %v2137 = vrot.slane %v1385, 2
      %v2138 = vsel %vm2119, %v2135, %v2137
      %v2139 = vrot.slane %v1386, 2
      %v2140 = vsel %vm2119, %v2137, %v2139
      %v2141 = vrot.slane %v1387, 2
      %v2142 = vsel %vm2119, %v2139, %v2141
      %v2143 = vrot.slane %v1388, 2
      %v2144 = vsel %vm2119, %v2141, %v2143
      %v2145 = vrot.slane %v1389, 2
      %v2146 = vsel %vm2119, %v2143, %v2145
      %v2147 = vrot.slane %v1390, 2
      %v2148 = vsel %vm2119, %v2145, %v2147
      %v2149 = vrot.slane %v1391, 2
      %v2150 = vsel %vm2119, %v2147, %v2149
      %v2151 = vrot.slane %v1695, 2
      %v2152 = vsel %vm2119, %v2149, %v2151
      %v2159 = vunpack.c.l.b16 %v2110
      %v2160 = vunpack.c.l.b16 %v2111
      %v2161 = vunpack.c.l.b16 %v2112
      %v2162 = vunpack.c.l.b16 %v2113
      %v2163 = vunpack.c.l.b16 %v2114
      %v2164 = vunpack.c.l.b16 %v2115
      %v2165 = vpack.c.b16 %v2160, %v2159
      %v2166 = vpack.c.b16 %v2162, %v2161
      %v2167 = vpack.c.b16 %v2164, %v2163
      %v2172 = vsel %vm545, %v2122, 0
      %v2175 = vsel %vm545, %v2124, 0
      %v2178 = vsel %vm545, %v2126, 0
      %v2181 = vsel %vm545, %v2128, 0
      %v2184 = vsel %vm545, %v2130, 0
      %v2187 = vsel %vm545, %v2132, 0
      %v2190 = vsel %vm545, %v2134, 0
      %v2193 = vsel %vm545, %v2136, 0
      %v2196 = vsel %vm545, %v2138, 0
      %v2199 = vsel %vm545, %v2140, 0
      %v2202 = vsel %vm545, %v2142, 0
      %v2205 = vsel %vm545, %v2144, 0
      %v2208 = vsel %vm545, %v2146, 0
      %v2211 = vsel %vm545, %v2148, 0
      %v2214 = vsel %vm545, %v2150, 0
      %v2217 = vsel %vm545, %v2152, 0
      %2219 = vmatprep.subr.bf16.mxu0 0
      %2220 = vmatpush1.bf16.msra.mxu0 0
      %2221 = vmatprep.subr.bf16.mxu0 0
      %2222 = vmatpush1.bf16.msra.mxu0 0
      %2223 = vmatprep.subr.bf16.mxu0 0
      %2224 = vmatpush1.bf16.msra.mxu0 0
      %2225 = vmatprep.subr.bf16.mxu0 0
      %2226 = vmatpush1.bf16.msra.mxu0 0
      %2227 = vmatprep.subr.bf16.mxu0 0
      %2228 = vmatpush1.bf16.msra.mxu0 0
      %2229 = vmatprep.subr.bf16.mxu0 0
      %2230 = vmatpush1.bf16.msra.mxu0 %v2167
      %2231 = vmatprep.subr.bf16.mxu0 0
      %2232 = vmatpush1.bf16.msra.mxu0 %v2166
      %2233 = vmatprep.subr.bf16.mxu0 0
      %2234 = vmatpush1.bf16.msra.mxu0 %v2165
      %2235 = vmatprep.subr.bf16.mxu0 0
      %2236 = vmatpush2.bf16.msra.mxu0 0
      %2237 = vmatprep.subr.bf16.mxu0 0
      %2238 = vmatpush2.bf16.msra.mxu0 0
      %2239 = vmatprep.subr.bf16.mxu0 0
      %2240 = vmatpush2.bf16.msra.mxu0 0
      %2241 = vmatprep.subr.bf16.mxu0 0
      %2242 = vmatpush2.bf16.msra.mxu0 0
      %2243 = vmatprep.subr.bf16.mxu0 0
      %2244 = vmatpush2.bf16.msra.mxu0 0
      %2245 = vmatprep.subr.bf16.mxu0 0
      %2246 = vmatpush2.bf16.msra.mxu0 0
      %2247 = vmatprep.subr.bf16.mxu0 0
      %2248 = vmatpush2.bf16.msra.mxu0 0
      %2249 = vmatprep.subr.bf16.mxu0 0
      %2250 = vmatpush2.bf16.msra.mxu0 0
      %2251 = vmatprep.mubr.bf16.mxu0 0
      %2252 = vmatmul.mubr.bf16.gmra.mxu0 %v2172
      %v2253 = vpop.f32.mrf.mxu0
      %v2254 = vadd.f32 0.0, %v2253
      %v2255 = vpop.f32.mrf.mxu0
      %v2256 = vpop.f32.mrf.mxu0
      %v2257 = vadd.f32 0.0, %v2256
      %v2258 = vpop.f32.mrf.mxu0
      %2259 = vmatprep.mubr.bf16.mxu0 0
      %2260 = vmatmul.mubr.bf16.gmra.mxu0 %v2175
      %v2261 = vpop.f32.mrf.mxu0
      %v2262 = vadd.f32 0.0, %v2261
      %v2263 = vpop.f32.mrf.mxu0
      %v2264 = vpop.f32.mrf.mxu0
      %v2265 = vadd.f32 0.0, %v2264
      %v2266 = vpop.f32.mrf.mxu0
      %2267 = vmatprep.mubr.bf16.mxu0 0
      %2268 = vmatmul.mubr.bf16.gmra.mxu0 %v2178
      %v2269 = vpop.f32.mrf.mxu0
      %v2270 = vadd.f32 0.0, %v2269
      %v2271 = vpop.f32.mrf.mxu0
      %v2272 = vpop.f32.mrf.mxu0
      %v2273 = vadd.f32 0.0, %v2272
      %v2274 = vpop.f32.mrf.mxu0
      %2275 = vmatprep.mubr.bf16.mxu0 0
      %2276 = vmatmul.mubr.bf16.gmra.mxu0 %v2181
      %v2277 = vpop.f32.mrf.mxu0
      %v2278 = vadd.f32 0.0, %v2277
      %v2279 = vpop.f32.mrf.mxu0
      %v2280 = vpop.f32.mrf.mxu0
      %v2281 = vadd.f32 0.0, %v2280
      %v2282 = vpop.f32.mrf.mxu0
      %2283 = vmatprep.mubr.bf16.mxu0 0
      %2284 = vmatmul.mubr.bf16.gmra.mxu0 %v2184
      %v2285 = vpop.f32.mrf.mxu0
      %v2286 = vadd.f32 0.0, %v2285
      %v2287 = vpop.f32.mrf.mxu0
      %v2288 = vpop.f32.mrf.mxu0
      %v2289 = vadd.f32 0.0, %v2288
      %v2290 = vpop.f32.mrf.mxu0
      %2291 = vmatprep.mubr.bf16.mxu0 0
      %2292 = vmatmul.mubr.bf16.gmra.mxu0 %v2187
      %v2293 = vpop.f32.mrf.mxu0
      %v2294 = vadd.f32 0.0, %v2293
      %v2295 = vpop.f32.mrf.mxu0
      %v2296 = vpop.f32.mrf.mxu0
      %v2297 = vadd.f32 0.0, %v2296
      %v2298 = vpop.f32.mrf.mxu0
      %2299 = vmatprep.mubr.bf16.mxu0 0
      %2300 = vmatmul.mubr.bf16.gmra.mxu0 %v2190
      %v2301 = vpop.f32.mrf.mxu0
      %v2302 = vadd.f32 0.0, %v2301
      %v2303 = vpop.f32.mrf.mxu0
      %v2304 = vpop.f32.mrf.mxu0
      %v2305 = vadd.f32 0.0, %v2304
      %v2306 = vpop.f32.mrf.mxu0
      %2307 = vmatprep.mubr.bf16.mxu0 0
      %2308 = vmatmul.mubr.bf16.gmra.mxu0 %v2193
      %v2309 = vpop.f32.mrf.mxu0
      %v2310 = vadd.f32 0.0, %v2309
      %v2311 = vpop.f32.mrf.mxu0
      %v2312 = vpop.f32.mrf.mxu0
      %v2313 = vadd.f32 0.0, %v2312
      %v2314 = vpop.f32.mrf.mxu0
      %2315 = vmatprep.mubr.bf16.mxu0 0
      %2316 = vmatmul.mubr.bf16.gmra.mxu0 %v2196
      %v2317 = vpop.f32.mrf.mxu0
      %v2318 = vadd.f32 0.0, %v2317
      %v2319 = vpop.f32.mrf.mxu0
      %v2320 = vpop.f32.mrf.mxu0
      %v2321 = vadd.f32 0.0, %v2320
      %v2322 = vpop.f32.mrf.mxu0
      %2323 = vmatprep.mubr.bf16.mxu0 0
      %2324 = vmatmul.mubr.bf16.gmra.mxu0 %v2199
      %v2325 = vpop.f32.mrf.mxu0
      %v2326 = vadd.f32 0.0, %v2325
      %v2327 = vpop.f32.mrf.mxu0
      %v2328 = vpop.f32.mrf.mxu0
      %v2329 = vadd.f32 0.0, %v2328
      %v2330 = vpop.f32.mrf.mxu0
      %2331 = vmatprep.mubr.bf16.mxu0 0
      %2332 = vmatmul.mubr.bf16.gmra.mxu0 %v2202
      %v2333 = vpop.f32.mrf.mxu0
      %v2334 = vadd.f32 0.0, %v2333
      %v2335 = vpop.f32.mrf.mxu0
      %v2336 = vpop.f32.mrf.mxu0
      %v2337 = vadd.f32 0.0, %v2336
      %v2338 = vpop.f32.mrf.mxu0
      %2339 = vmatprep.mubr.bf16.mxu0 0
      %2340 = vmatmul.mubr.bf16.gmra.mxu0 %v2205
      %v2341 = vpop.f32.mrf.mxu0
      %v2342 = vadd.f32 0.0, %v2341
      %v2343 = vpop.f32.mrf.mxu0
      %v2344 = vpop.f32.mrf.mxu0
      %v2345 = vadd.f32 0.0, %v2344
      %v2346 = vpop.f32.mrf.mxu0
      %2347 = vmatprep.mubr.bf16.mxu0 0
      %2348 = vmatmul.mubr.bf16.gmra.mxu0 %v2208
      %v2349 = vpop.f32.mrf.mxu0
      %v2350 = vadd.f32 0.0, %v2349
      %v2351 = vpop.f32.mrf.mxu0
      %v2352 = vpop.f32.mrf.mxu0
      %v2353 = vadd.f32 0.0, %v2352
      %v2354 = vpop.f32.mrf.mxu0
      %2355 = vmatprep.mubr.bf16.mxu0 0
      %2356 = vmatmul.mubr.bf16.gmra.mxu0 %v2211
      %v2357 = vpop.f32.mrf.mxu0
      %v2358 = vadd.f32 0.0, %v2357
      %v2359 = vpop.f32.mrf.mxu0
      %v2360 = vpop.f32.mrf.mxu0
      %v2361 = vadd.f32 0.0, %v2360
      %v2362 = vpop.f32.mrf.mxu0
      %2363 = vmatprep.mubr.bf16.mxu0 0
      %2364 = vmatmul.mubr.bf16.gmra.mxu0 %v2214
      %v2365 = vpop.f32.mrf.mxu0
      %v2366 = vadd.f32 0.0, %v2365
      %v2367 = vpop.f32.mrf.mxu0
      %v2368 = vpop.f32.mrf.mxu0
      %v2369 = vadd.f32 0.0, %v2368
      %v2370 = vpop.f32.mrf.mxu0
      %2371 = vmatprep.mubr.bf16.mxu0 0
      %2372 = vmatmul.mubr.bf16.gmra.mxu0 %v2217
      %v2373 = vpop.f32.mrf.mxu0
      %v2374 = vadd.f32 0.0, %v2373
      %v2375 = vpop.f32.mrf.mxu0
      %v2376 = vpop.f32.mrf.mxu0
      %v2377 = vadd.f32 0.0, %v2376
      %v2378 = vpop.f32.mrf.mxu0
      %2379 = vdwg.mxu0
      %v2380 = vadd.f32 %v2076, %v2254
      %v2381 = vadd.f32 %v2077, %v2257
      %v2382 = vadd.f32 %v2078, %v2262
      %v2383 = vadd.f32 %v2079, %v2265
      %v2384 = vadd.f32 %v2080, %v2270
      %v2385 = vadd.f32 %v2081, %v2273
      %v2386 = vadd.f32 %v2082, %v2278
      %v2387 = vadd.f32 %v2083, %v2281
      %v2388 = vadd.f32 %v2084, %v2286
      %v2389 = vadd.f32 %v2085, %v2289
      %v2390 = vadd.f32 %v2086, %v2294
      %v2391 = vadd.f32 %v2087, %v2297
      %v2392 = vadd.f32 %v2088, %v2302
      %v2393 = vadd.f32 %v2089, %v2305
      %v2394 = vadd.f32 %v2090, %v2310
      %v2395 = vadd.f32 %v2091, %v2313
      %v2396 = vadd.f32 %v2092, %v2318
      %v2397 = vadd.f32 %v2093, %v2321
      %v2398 = vadd.f32 %v2094, %v2326
      %v2399 = vadd.f32 %v2095, %v2329
      %v2400 = vadd.f32 %v2096, %v2334
      %v2401 = vadd.f32 %v2097, %v2337
      %v2402 = vadd.f32 %v2098, %v2342
      %v2403 = vadd.f32 %v2099, %v2345
      %v2404 = vadd.f32 %v2100, %v2350
      %v2405 = vadd.f32 %v2101, %v2353
      %v2406 = vadd.f32 %v2102, %v2358
      %v2407 = vadd.f32 %v2103, %v2361
      %v2408 = vadd.f32 %v2104, %v2366
      %v2409 = vadd.f32 %v2105, %v2369
      %v2410 = vadd.f32 %v2106, %v2374
      %v2411 = vadd.f32 %v2107, %v2377
      %v2412 = vld [vmem:[%s242 + $0x10] sm:$0xc]
      %v2413 = vld [vmem:[%s242 + $0x14] sm:$0xf]
      %v2414 = vld [vmem:[%s242 + $0x18] sm:$0xf]
      %v2415 = vld [vmem:[%s242 + $0x1c] sm:$0xf]
      %v2416 = vld [vmem:[%s242 + $0x20] sm:$0xf]
      %v2417 = vld [vmem:[%s242 + $0x24] sm:$0xf]
      %v2418 = vld [vmem:[%s242 + $0x28] sm:$0xf]
      %v2419 = vld [vmem:[%s242 + $0x2c] sm:$0xf]
      %v2420 = vld [vmem:[%s242 + $0x30] sm:$0xf]
      %v2421 = vld [vmem:[%s242 + $0x34] sm:$0xf]
      %v2422 = vld [vmem:[%s242 + $0x38] sm:$0xf]
      %v2423 = vld [vmem:[%s242 + $0x3c] sm:$0xf]
      %v2424 = vld [vmem:[%s242 + $0x40] sm:$0xf]
      %v2425 = vld [vmem:[%s242 + $0x44] sm:$0xf]
      %v2426 = vld [vmem:[%s242 + $0x48] sm:$0xf]
      %v2427 = vld [vmem:[%s242 + $0x4c] sm:$0xf]
      %v2428 = vld [vmem:[%s242 + $0x50] sm:$0xf]
      %v2429 = vld [vmem:[%s242 + $0x54] sm:$0xf]
      %v2430 = vld [vmem:[%s242 + $0x58] sm:$0xf]
      %v2431 = vld [vmem:[%s242 + $0x5c] sm:$0xf]
      %v2432 = vld [vmem:[%s242 + $0x60] sm:$0xf]
      %v2433 = vld [vmem:[%s242 + $0x64] sm:$0xf]
      %v2434 = vld [vmem:[%s242 + $0x68] sm:$0xf]
      %v2435 = vld [vmem:[%s242 + $0x6c] sm:$0xf]
      %v2436 = vld [vmem:[%s242 + $0x70] sm:$0xf]
      %v2437 = vld [vmem:[%s242 + $0x74] sm:$0xf]
      %v2438 = vld [vmem:[%s242 + $0x78] sm:$0xf]
      %v2439 = vld [vmem:[%s242 + $0x7c] sm:$0xf]
      %v2440 = vld [vmem:[%s242 + $0x80] sm:$0xf]
      %v2441 = vld [vmem:[%s242 + $0x84] sm:$0xf]
      %v2442 = vld [vmem:[%s242 + $0x88] sm:$0xf]
      %v2443 = vld [vmem:[%s242 + $0x8c] sm:$0xf]
      %v2444 = vld [vmem:[%s242 + $0x90] sm:$0x3]
      %s2445 = scalar_lea.vmem %s2, 144
      %v2446 = vld [vmem:[%s2445] sm:$0xf]
      %v2447 = vld [vmem:[%s2445 + $0x4] sm:$0xf]
      %v2448 = vld [vmem:[%s2445 + $0x8] sm:$0xf]
      %v2449 = vld [vmem:[%s2445 + $0xc] sm:$0xf]
      %v2450 = vld [vmem:[%s2445 + $0x10] sm:$0xf]
      %v2451 = vld [vmem:[%s2445 + $0x14] sm:$0xf]
      %v2485 = vunpack.c.l.b16 %v2412
      %v2486 = vunpack.c.l.b16 %v2413
      %v2487 = vunpack.c.l.b16 %v2414
      %v2488 = vunpack.c.l.b16 %v2415
      %v2489 = vunpack.c.l.b16 %v2416
      %v2490 = vunpack.c.l.b16 %v2417
      %v2491 = vunpack.c.l.b16 %v2418
      %v2492 = vunpack.c.l.b16 %v2419
      %v2493 = vunpack.c.l.b16 %v2420
      %v2494 = vunpack.c.l.b16 %v2421
      %v2495 = vunpack.c.l.b16 %v2422
      %v2496 = vunpack.c.l.b16 %v2423
      %v2497 = vunpack.c.l.b16 %v2424
      %v2498 = vunpack.c.l.b16 %v2425
      %v2499 = vunpack.c.l.b16 %v2426
      %v2500 = vunpack.c.l.b16 %v2427
      %v2501 = vunpack.c.l.b16 %v2428
      %v2502 = vunpack.c.l.b16 %v2429
      %v2503 = vunpack.c.l.b16 %v2430
      %v2504 = vunpack.c.l.b16 %v2431
      %v2505 = vunpack.c.l.b16 %v2432
      %v2506 = vunpack.c.l.b16 %v2433
      %v2507 = vunpack.c.l.b16 %v2434
      %v2508 = vunpack.c.l.b16 %v2435
      %v2509 = vunpack.c.l.b16 %v2436
      %v2510 = vunpack.c.l.b16 %v2437
      %v2511 = vunpack.c.l.b16 %v2438
      %v2512 = vunpack.c.l.b16 %v2439
      %v2513 = vunpack.c.l.b16 %v2440
      %v2514 = vunpack.c.l.b16 %v2441
      %v2515 = vunpack.c.l.b16 %v2442
      %v2516 = vunpack.c.l.b16 %v2443
      %v2517 = vunpack.c.l.b16 %v2444
      %v2518 = vpack.c.b16 %v2486, %v2485
      %v2519 = vpack.c.b16 %v2488, %v2487
      %v2520 = vpack.c.b16 %v2490, %v2489
      %v2521 = vpack.c.b16 %v2492, %v2491
      %v2522 = vpack.c.b16 %v2494, %v2493
      %v2523 = vpack.c.b16 %v2496, %v2495
      %v2524 = vpack.c.b16 %v2498, %v2497
      %v2525 = vpack.c.b16 %v2500, %v2499
      %v2526 = vpack.c.b16 %v2502, %v2501
      %v2527 = vpack.c.b16 %v2504, %v2503
      %v2528 = vpack.c.b16 %v2506, %v2505
      %v2529 = vpack.c.b16 %v2508, %v2507
      %v2530 = vpack.c.b16 %v2510, %v2509
      %v2531 = vpack.c.b16 %v2512, %v2511
      %v2532 = vpack.c.b16 %v2514, %v2513
      %v2533 = vpack.c.b16 %v2516, %v2515
      %v2534 = vpack.c.b16 %v2517, %v2517
      %v2535 = vrot.slane %v2518, 2
      %v2536 = vrot.slane %v2519, 2
      %v2537 = vsel %vm2119, %v2535, %v2536
      %v2538 = vrot.slane %v2520, 2
      %v2539 = vsel %vm2119, %v2536, %v2538
      %v2540 = vrot.slane %v2521, 2
      %v2541 = vsel %vm2119, %v2538, %v2540
      %v2542 = vrot.slane %v2522, 2
      %v2543 = vsel %vm2119, %v2540, %v2542
      %v2544 = vrot.slane %v2523, 2
      %v2545 = vsel %vm2119, %v2542, %v2544
      %v2546 = vrot.slane %v2524, 2
      %v2547 = vsel %vm2119, %v2544, %v2546
      %v2548 = vrot.slane %v2525, 2
      %v2549 = vsel %vm2119, %v2546, %v2548
      %v2550 = vrot.slane %v2526, 2
      %v2551 = vsel %vm2119, %v2548, %v2550
      %v2552 = vrot.slane %v2527, 2
      %v2553 = vsel %vm2119, %v2550, %v2552
      %v2554 = vrot.slane %v2528, 2
      %v2555 = vsel %vm2119, %v2552, %v2554
      %v2556 = vrot.slane %v2529, 2
      %v2557 = vsel %vm2119, %v2554, %v2556
      %v2558 = vrot.slane %v2530, 2
      %v2559 = vsel %vm2119, %v2556, %v2558
      %v2560 = vrot.slane %v2531, 2
      %v2561 = vsel %vm2119, %v2558, %v2560
      %v2562 = vrot.slane %v2532, 2
      %v2563 = vsel %vm2119, %v2560, %v2562
      %v2564 = vrot.slane %v2533, 2
      %v2565 = vsel %vm2119, %v2562, %v2564
      %v2566 = vrot.slane %v2534, 2
      %v2567 = vsel %vm2119, %v2564, %v2566
      %v2574 = vunpack.c.l.b16 %v2446
      %v2575 = vunpack.c.l.b16 %v2447
      %v2576 = vunpack.c.l.b16 %v2448
      %v2577 = vunpack.c.l.b16 %v2449
      %v2578 = vunpack.c.l.b16 %v2450
      %v2579 = vunpack.c.l.b16 %v2451
      %v2580 = vpack.c.b16 %v2575, %v2574
      %v2581 = vpack.c.b16 %v2577, %v2576
      %v2582 = vpack.c.b16 %v2579, %v2578
      %v2587 = vsel %vm545, %v2537, 0
      %v2590 = vsel %vm545, %v2539, 0
      %v2593 = vsel %vm545, %v2541, 0
      %v2596 = vsel %vm545, %v2543, 0
      %v2599 = vsel %vm545, %v2545, 0
      %v2602 = vsel %vm545, %v2547, 0
      %v2605 = vsel %vm545, %v2549, 0
      %v2608 = vsel %vm545, %v2551, 0
      %v2611 = vsel %vm545, %v2553, 0
      %v2614 = vsel %vm545, %v2555, 0
      %v2617 = vsel %vm545, %v2557, 0
      %v2620 = vsel %vm545, %v2559, 0
      %v2623 = vsel %vm545, %v2561, 0
      %v2626 = vsel %vm545, %v2563, 0
      %v2629 = vsel %vm545, %v2565, 0
      %v2632 = vsel %vm545, %v2567, 0
      %2634 = vmatprep.subr.bf16.mxu0 0
      %2635 = vmatpush1.bf16.msra.mxu0 0
      %2636 = vmatprep.subr.bf16.mxu0 0
      %2637 = vmatpush1.bf16.msra.mxu0 0
      %2638 = vmatprep.subr.bf16.mxu0 0
      %2639 = vmatpush1.bf16.msra.mxu0 0
      %2640 = vmatprep.subr.bf16.mxu0 0
      %2641 = vmatpush1.bf16.msra.mxu0 0
      %2642 = vmatprep.subr.bf16.mxu0 0
      %2643 = vmatpush1.bf16.msra.mxu0 0
      %2644 = vmatprep.subr.bf16.mxu0 0
      %2645 = vmatpush1.bf16.msra.mxu0 %v2582
      %2646 = vmatprep.subr.bf16.mxu0 0
      %2647 = vmatpush1.bf16.msra.mxu0 %v2581
      %2648 = vmatprep.subr.bf16.mxu0 0
      %2649 = vmatpush1.bf16.msra.mxu0 %v2580
      %2650 = vmatprep.subr.bf16.mxu0 0
      %2651 = vmatpush2.bf16.msra.mxu0 0
      %2652 = vmatprep.subr.bf16.mxu0 0
      %2653 = vmatpush2.bf16.msra.mxu0 0
      %2654 = vmatprep.subr.bf16.mxu0 0
      %2655 = vmatpush2.bf16.msra.mxu0 0
      %2656 = vmatprep.subr.bf16.mxu0 0
      %2657 = vmatpush2.bf16.msra.mxu0 0
      %2658 = vmatprep.subr.bf16.mxu0 0
      %2659 = vmatpush2.bf16.msra.mxu0 0
      %2660 = vmatprep.subr.bf16.mxu0 0
      %2661 = vmatpush2.bf16.msra.mxu0 0
      %2662 = vmatprep.subr.bf16.mxu0 0
      %2663 = vmatpush2.bf16.msra.mxu0 0
      %2664 = vmatprep.subr.bf16.mxu0 0
      %2665 = vmatpush2.bf16.msra.mxu0 0
      %2666 = vmatprep.mubr.bf16.mxu0 0
      %2667 = vmatmul.mubr.bf16.gmra.mxu0 %v2587
      %v2668 = vpop.f32.mrf.mxu0
      %v2669 = vadd.f32 0.0, %v2668
      %v2670 = vpop.f32.mrf.mxu0
      %v2671 = vpop.f32.mrf.mxu0
      %v2672 = vadd.f32 0.0, %v2671
      %v2673 = vpop.f32.mrf.mxu0
      %2674 = vmatprep.mubr.bf16.mxu0 0
      %2675 = vmatmul.mubr.bf16.gmra.mxu0 %v2590
      %v2676 = vpop.f32.mrf.mxu0
      %v2677 = vadd.f32 0.0, %v2676
      %v2678 = vpop.f32.mrf.mxu0
      %v2679 = vpop.f32.mrf.mxu0
      %v2680 = vadd.f32 0.0, %v2679
      %v2681 = vpop.f32.mrf.mxu0
      %2682 = vmatprep.mubr.bf16.mxu0 0
      %2683 = vmatmul.mubr.bf16.gmra.mxu0 %v2593
      %v2684 = vpop.f32.mrf.mxu0
      %v2685 = vadd.f32 0.0, %v2684
      %v2686 = vpop.f32.mrf.mxu0
      %v2687 = vpop.f32.mrf.mxu0
      %v2688 = vadd.f32 0.0, %v2687
      %v2689 = vpop.f32.mrf.mxu0
      %2690 = vmatprep.mubr.bf16.mxu0 0
      %2691 = vmatmul.mubr.bf16.gmra.mxu0 %v2596
      %v2692 = vpop.f32.mrf.mxu0
      %v2693 = vadd.f32 0.0, %v2692
      %v2694 = vpop.f32.mrf.mxu0
      %v2695 = vpop.f32.mrf.mxu0
      %v2696 = vadd.f32 0.0, %v2695
      %v2697 = vpop.f32.mrf.mxu0
      %2698 = vmatprep.mubr.bf16.mxu0 0
      %2699 = vmatmul.mubr.bf16.gmra.mxu0 %v2599
      %v2700 = vpop.f32.mrf.mxu0
      %v2701 = vadd.f32 0.0, %v2700
      %v2702 = vpop.f32.mrf.mxu0
      %v2703 = vpop.f32.mrf.mxu0
      %v2704 = vadd.f32 0.0, %v2703
      %v2705 = vpop.f32.mrf.mxu0
      %2706 = vmatprep.mubr.bf16.mxu0 0
      %2707 = vmatmul.mubr.bf16.gmra.mxu0 %v2602
      %v2708 = vpop.f32.mrf.mxu0
      %v2709 = vadd.f32 0.0, %v2708
      %v2710 = vpop.f32.mrf.mxu0
      %v2711 = vpop.f32.mrf.mxu0
      %v2712 = vadd.f32 0.0, %v2711
      %v2713 = vpop.f32.mrf.mxu0
      %2714 = vmatprep.mubr.bf16.mxu0 0
      %2715 = vmatmul.mubr.bf16.gmra.mxu0 %v2605
      %v2716 = vpop.f32.mrf.mxu0
      %v2717 = vadd.f32 0.0, %v2716
      %v2718 = vpop.f32.mrf.mxu0
      %v2719 = vpop.f32.mrf.mxu0
      %v2720 = vadd.f32 0.0, %v2719
      %v2721 = vpop.f32.mrf.mxu0
      %2722 = vmatprep.mubr.bf16.mxu0 0
      %2723 = vmatmul.mubr.bf16.gmra.mxu0 %v2608
      %v2724 = vpop.f32.mrf.mxu0
      %v2725 = vadd.f32 0.0, %v2724
      %v2726 = vpop.f32.mrf.mxu0
      %v2727 = vpop.f32.mrf.mxu0
      %v2728 = vadd.f32 0.0, %v2727
      %v2729 = vpop.f32.mrf.mxu0
      %2730 = vmatprep.mubr.bf16.mxu0 0
      %2731 = vmatmul.mubr.bf16.gmra.mxu0 %v2611
      %v2732 = vpop.f32.mrf.mxu0
      %v2733 = vadd.f32 0.0, %v2732
      %v2734 = vpop.f32.mrf.mxu0
      %v2735 = vpop.f32.mrf.mxu0
      %v2736 = vadd.f32 0.0, %v2735
      %v2737 = vpop.f32.mrf.mxu0
      %2738 = vmatprep.mubr.bf16.mxu0 0
      %2739 = vmatmul.mubr.bf16.gmra.mxu0 %v2614
      %v2740 = vpop.f32.mrf.mxu0
      %v2741 = vadd.f32 0.0, %v2740
      %v2742 = vpop.f32.mrf.mxu0
      %v2743 = vpop.f32.mrf.mxu0
      %v2744 = vadd.f32 0.0, %v2743
      %v2745 = vpop.f32.mrf.mxu0
      %2746 = vmatprep.mubr.bf16.mxu0 0
      %2747 = vmatmul.mubr.bf16.gmra.mxu0 %v2617
      %v2748 = vpop.f32.mrf.mxu0
      %v2749 = vadd.f32 0.0, %v2748
      %v2750 = vpop.f32.mrf.mxu0
      %v2751 = vpop.f32.mrf.mxu0
      %v2752 = vadd.f32 0.0, %v2751
      %v2753 = vpop.f32.mrf.mxu0
      %2754 = vmatprep.mubr.bf16.mxu0 0
      %2755 = vmatmul.mubr.bf16.gmra.mxu0 %v2620
      %v2756 = vpop.f32.mrf.mxu0
      %v2757 = vadd.f32 0.0, %v2756
      %v2758 = vpop.f32.mrf.mxu0
      %v2759 = vpop.f32.mrf.mxu0
      %v2760 = vadd.f32 0.0, %v2759
      %v2761 = vpop.f32.mrf.mxu0
      %2762 = vmatprep.mubr.bf16.mxu0 0
      %2763 = vmatmul.mubr.bf16.gmra.mxu0 %v2623
      %v2764 = vpop.f32.mrf.mxu0
      %v2765 = vadd.f32 0.0, %v2764
      %v2766 = vpop.f32.mrf.mxu0
      %v2767 = vpop.f32.mrf.mxu0
      %v2768 = vadd.f32 0.0, %v2767
      %v2769 = vpop.f32.mrf.mxu0
      %2770 = vmatprep.mubr.bf16.mxu0 0
      %2771 = vmatmul.mubr.bf16.gmra.mxu0 %v2626
      %v2772 = vpop.f32.mrf.mxu0
      %v2773 = vadd.f32 0.0, %v2772
      %v2774 = vpop.f32.mrf.mxu0
      %v2775 = vpop.f32.mrf.mxu0
      %v2776 = vadd.f32 0.0, %v2775
      %v2777 = vpop.f32.mrf.mxu0
      %2778 = vmatprep.mubr.bf16.mxu0 0
      %2779 = vmatmul.mubr.bf16.gmra.mxu0 %v2629
      %v2780 = vpop.f32.mrf.mxu0
      %v2781 = vadd.f32 0.0, %v2780
      %v2782 = vpop.f32.mrf.mxu0
      %v2783 = vpop.f32.mrf.mxu0
      %v2784 = vadd.f32 0.0, %v2783
      %v2785 = vpop.f32.mrf.mxu0
      %2786 = vmatprep.mubr.bf16.mxu0 0
      %2787 = vmatmul.mubr.bf16.gmra.mxu0 %v2632
      %v2788 = vpop.f32.mrf.mxu0
      %v2789 = vadd.f32 0.0, %v2788
      %v2790 = vpop.f32.mrf.mxu0
      %v2791 = vpop.f32.mrf.mxu0
      %v2792 = vadd.f32 0.0, %v2791
      %v2793 = vpop.f32.mrf.mxu0
      %2794 = vdwg.mxu0
      %v2795 = vadd.f32 %v2380, %v2669
      %v2796 = vadd.f32 %v2381, %v2672
      %v2797 = vadd.f32 %v2382, %v2677
      %v2798 = vadd.f32 %v2383, %v2680
      %v2799 = vadd.f32 %v2384, %v2685
      %v2800 = vadd.f32 %v2385, %v2688
      %v2801 = vadd.f32 %v2386, %v2693
      %v2802 = vadd.f32 %v2387, %v2696
      %v2803 = vadd.f32 %v2388, %v2701
      %v2804 = vadd.f32 %v2389, %v2704
      %v2805 = vadd.f32 %v2390, %v2709
      %v2806 = vadd.f32 %v2391, %v2712
      %v2807 = vadd.f32 %v2392, %v2717
      %v2808 = vadd.f32 %v2393, %v2720
      %v2809 = vadd.f32 %v2394, %v2725
      %v2810 = vadd.f32 %v2395, %v2728
      %v2811 = vadd.f32 %v2396, %v2733
      %v2812 = vadd.f32 %v2397, %v2736
      %v2813 = vadd.f32 %v2398, %v2741
      %v2814 = vadd.f32 %v2399, %v2744
      %v2815 = vadd.f32 %v2400, %v2749
      %v2816 = vadd.f32 %v2401, %v2752
      %v2817 = vadd.f32 %v2402, %v2757
      %v2818 = vadd.f32 %v2403, %v2760
      %v2819 = vadd.f32 %v2404, %v2765
      %v2820 = vadd.f32 %v2405, %v2768
      %v2821 = vadd.f32 %v2406, %v2773
      %v2822 = vadd.f32 %v2407, %v2776
      %v2823 = vadd.f32 %v2408, %v2781
      %v2824 = vadd.f32 %v2409, %v2784
      %v2825 = vadd.f32 %v2410, %v2789
      %v2826 = vadd.f32 %v2411, %v2792
      %v2827 = vld [vmem:[%s242 + $0x90] sm:$0x7]
      %s2828 = scalar_lea.vmem %s2, 168
      %v2829 = vld [vmem:[%s2828] sm:$0xf]
      %v2830 = vld [vmem:[%s2828 + $0x4] sm:$0xf]
      %v2831 = vld [vmem:[%s2828 + $0x8] sm:$0xf]
      %v2832 = vld [vmem:[%s2828 + $0xc] sm:$0xf]
      %v2833 = vld [vmem:[%s2828 + $0x10] sm:$0xf]
      %v2834 = vld [vmem:[%s2828 + $0x14] sm:$0xf]
      %v2836 = vunpack.c.l.b16 %v2827
      %v2837 = vpack.c.b16 %v2836, %v2836
      %vm2838 = vsmask.f32 5376
      %v2840 = vshrl.u32 %v2518, 16
      %v2842 = vrot.slane %v2840, 2
      %v2843 = vshll.u32 %v2518, 16
      %v2845 = vrot.slane %v2843, 3
      %v2846 = vor.u32 %v2842, %v2845
      %v2848 = vshrl.u32 %v2519, 16
      %v2850 = vrot.slane %v2848, 2
      %v2851 = vshll.u32 %v2519, 16
      %v2853 = vrot.slane %v2851, 3
      %v2854 = vor.u32 %v2850, %v2853
      %v2855 = vsel %vm2838, %v2846, %v2854
      %v2857 = vshrl.u32 %v2520, 16
      %v2859 = vrot.slane %v2857, 2
      %v2860 = vshll.u32 %v2520, 16
      %v2862 = vrot.slane %v2860, 3
      %v2863 = vor.u32 %v2859, %v2862
      %v2864 = vsel %vm2838, %v2854, %v2863
      %v2866 = vshrl.u32 %v2521, 16
      %v2868 = vrot.slane %v2866, 2
      %v2869 = vshll.u32 %v2521, 16
      %v2871 = vrot.slane %v2869, 3
      %v2872 = vor.u32 %v2868, %v2871
      %v2873 = vsel %vm2838, %v2863, %v2872
      %v2875 = vshrl.u32 %v2522, 16
      %v2877 = vrot.slane %v2875, 2
      %v2878 = vshll.u32 %v2522, 16
      %v2880 = vrot.slane %v2878, 3
      %v2881 = vor.u32 %v2877, %v2880
      %v2882 = vsel %vm2838, %v2872, %v2881
      %v2884 = vshrl.u32 %v2523, 16
      %v2886 = vrot.slane %v2884, 2
      %v2887 = vshll.u32 %v2523, 16
      %v2889 = vrot.slane %v2887, 3
      %v2890 = vor.u32 %v2886, %v2889
      %v2891 = vsel %vm2838, %v2881, %v2890
      %v2893 = vshrl.u32 %v2524, 16
      %v2895 = vrot.slane %v2893, 2
      %v2896 = vshll.u32 %v2524, 16
      %v2898 = vrot.slane %v2896, 3
      %v2899 = vor.u32 %v2895, %v2898
      %v2900 = vsel %vm2838, %v2890, %v2899
      %v2902 = vshrl.u32 %v2525, 16
      %v2904 = vrot.slane %v2902, 2
      %v2905 = vshll.u32 %v2525, 16
      %v2907 = vrot.slane %v2905, 3
      %v2908 = vor.u32 %v2904, %v2907
      %v2909 = vsel %vm2838, %v2899, %v2908
      %v2911 = vshrl.u32 %v2526, 16
      %v2913 = vrot.slane %v2911, 2
      %v2914 = vshll.u32 %v2526, 16
      %v2916 = vrot.slane %v2914, 3
      %v2917 = vor.u32 %v2913, %v2916
      %v2918 = vsel %vm2838, %v2908, %v2917
      %v2920 = vshrl.u32 %v2527, 16
      %v2922 = vrot.slane %v2920, 2
      %v2923 = vshll.u32 %v2527, 16
      %v2925 = vrot.slane %v2923, 3
      %v2926 = vor.u32 %v2922, %v2925
      %v2927 = vsel %vm2838, %v2917, %v2926
      %v2929 = vshrl.u32 %v2528, 16
      %v2931 = vrot.slane %v2929, 2
      %v2932 = vshll.u32 %v2528, 16
      %v2934 = vrot.slane %v2932, 3
      %v2935 = vor.u32 %v2931, %v2934
      %v2936 = vsel %vm2838, %v2926, %v2935
      %v2938 = vshrl.u32 %v2529, 16
      %v2940 = vrot.slane %v2938, 2
      %v2941 = vshll.u32 %v2529, 16
      %v2943 = vrot.slane %v2941, 3
      %v2944 = vor.u32 %v2940, %v2943
      %v2945 = vsel %vm2838, %v2935, %v2944
      %v2947 = vshrl.u32 %v2530, 16
      %v2949 = vrot.slane %v2947, 2
      %v2950 = vshll.u32 %v2530, 16
      %v2952 = vrot.slane %v2950, 3
      %v2953 = vor.u32 %v2949, %v2952
      %v2954 = vsel %vm2838, %v2944, %v2953
      %v2956 = vshrl.u32 %v2531, 16
      %v2958 = vrot.slane %v2956, 2
      %v2959 = vshll.u32 %v2531, 16
      %v2961 = vrot.slane %v2959, 3
      %v2962 = vor.u32 %v2958, %v2961
      %v2963 = vsel %vm2838, %v2953, %v2962
      %v2965 = vshrl.u32 %v2532, 16
      %v2967 = vrot.slane %v2965, 2
      %v2968 = vshll.u32 %v2532, 16
      %v2970 = vrot.slane %v2968, 3
      %v2971 = vor.u32 %v2967, %v2970
      %v2972 = vsel %vm2838, %v2962, %v2971
      %v2974 = vshrl.u32 %v2533, 16
      %v2976 = vrot.slane %v2974, 2
      %v2977 = vshll.u32 %v2533, 16
      %v2979 = vrot.slane %v2977, 3
      %v2980 = vor.u32 %v2976, %v2979
      %v2981 = vsel %vm2838, %v2971, %v2980
      %v2983 = vshrl.u32 %v2837, 16
      %v2985 = vrot.slane %v2983, 2
      %v2986 = vshll.u32 %v2837, 16
      %v2988 = vrot.slane %v2986, 3
      %v2989 = vor.u32 %v2985, %v2988
      %v2990 = vsel %vm2838, %v2980, %v2989
      %v2997 = vunpack.c.l.b16 %v2829
      %v2998 = vunpack.c.l.b16 %v2830
      %v2999 = vunpack.c.l.b16 %v2831
      %v3000 = vunpack.c.l.b16 %v2832
      %v3001 = vunpack.c.l.b16 %v2833
      %v3002 = vunpack.c.l.b16 %v2834
      %v3003 = vpack.c.b16 %v2998, %v2997
      %v3004 = vpack.c.b16 %v3000, %v2999
      %v3005 = vpack.c.b16 %v3002, %v3001
      %v3010 = vsel %vm545, %v2855, 0
      %v3013 = vsel %vm545, %v2864, 0
      %v3016 = vsel %vm545, %v2873, 0
      %v3019 = vsel %vm545, %v2882, 0
      %v3022 = vsel %vm545, %v2891, 0
      %v3025 = vsel %vm545, %v2900, 0
      %v3028 = vsel %vm545, %v2909, 0
      %v3031 = vsel %vm545, %v2918, 0
      %v3034 = vsel %vm545, %v2927, 0
      %v3037 = vsel %vm545, %v2936, 0
      %v3040 = vsel %vm545, %v2945, 0
      %v3043 = vsel %vm545, %v2954, 0
      %v3046 = vsel %vm545, %v2963, 0
      %v3049 = vsel %vm545, %v2972, 0
      %v3052 = vsel %vm545, %v2981, 0
      %v3055 = vsel %vm545, %v2990, 0
      %3057 = vmatprep.subr.bf16.mxu0 0
      %3058 = vmatpush1.bf16.msra.mxu0 0
      %3059 = vmatprep.subr.bf16.mxu0 0
      %3060 = vmatpush1.bf16.msra.mxu0 0
      %3061 = vmatprep.subr.bf16.mxu0 0
      %3062 = vmatpush1.bf16.msra.mxu0 0
      %3063 = vmatprep.subr.bf16.mxu0 0
      %3064 = vmatpush1.bf16.msra.mxu0 0
      %3065 = vmatprep.subr.bf16.mxu0 0
      %3066 = vmatpush1.bf16.msra.mxu0 0
      %3067 = vmatprep.subr.bf16.mxu0 0
      %3068 = vmatpush1.bf16.msra.mxu0 %v3005
      %3069 = vmatprep.subr.bf16.mxu0 0
      %3070 = vmatpush1.bf16.msra.mxu0 %v3004
      %3071 = vmatprep.subr.bf16.mxu0 0
      %3072 = vmatpush1.bf16.msra.mxu0 %v3003
      %3073 = vmatprep.subr.bf16.mxu0 0
      %3074 = vmatpush2.bf16.msra.mxu0 0
      %3075 = vmatprep.subr.bf16.mxu0 0
      %3076 = vmatpush2.bf16.msra.mxu0 0
      %3077 = vmatprep.subr.bf16.mxu0 0
      %3078 = vmatpush2.bf16.msra.mxu0 0
      %3079 = vmatprep.subr.bf16.mxu0 0
      %3080 = vmatpush2.bf16.msra.mxu0 0
      %3081 = vmatprep.subr.bf16.mxu0 0
      %3082 = vmatpush2.bf16.msra.mxu0 0
      %3083 = vmatprep.subr.bf16.mxu0 0
      %3084 = vmatpush2.bf16.msra.mxu0 0
      %3085 = vmatprep.subr.bf16.mxu0 0
      %3086 = vmatpush2.bf16.msra.mxu0 0
      %3087 = vmatprep.subr.bf16.mxu0 0
      %3088 = vmatpush2.bf16.msra.mxu0 0
      %3089 = vmatprep.mubr.bf16.mxu0 0
      %3090 = vmatmul.mubr.bf16.gmra.mxu0 %v3010
      %v3091 = vpop.f32.mrf.mxu0
      %v3092 = vadd.f32 0.0, %v3091
      %v3093 = vpop.f32.mrf.mxu0
      %v3094 = vpop.f32.mrf.mxu0
      %v3095 = vadd.f32 0.0, %v3094
      %v3096 = vpop.f32.mrf.mxu0
      %3097 = vmatprep.mubr.bf16.mxu0 0
      %3098 = vmatmul.mubr.bf16.gmra.mxu0 %v3013
      %v3099 = vpop.f32.mrf.mxu0
      %v3100 = vadd.f32 0.0, %v3099
      %v3101 = vpop.f32.mrf.mxu0
      %v3102 = vpop.f32.mrf.mxu0
      %v3103 = vadd.f32 0.0, %v3102
      %v3104 = vpop.f32.mrf.mxu0
      %3105 = vmatprep.mubr.bf16.mxu0 0
      %3106 = vmatmul.mubr.bf16.gmra.mxu0 %v3016
      %v3107 = vpop.f32.mrf.mxu0
      %v3108 = vadd.f32 0.0, %v3107
      %v3109 = vpop.f32.mrf.mxu0
      %v3110 = vpop.f32.mrf.mxu0
      %v3111 = vadd.f32 0.0, %v3110
      %v3112 = vpop.f32.mrf.mxu0
      %3113 = vmatprep.mubr.bf16.mxu0 0
      %3114 = vmatmul.mubr.bf16.gmra.mxu0 %v3019
      %v3115 = vpop.f32.mrf.mxu0
      %v3116 = vadd.f32 0.0, %v3115
      %v3117 = vpop.f32.mrf.mxu0
      %v3118 = vpop.f32.mrf.mxu0
      %v3119 = vadd.f32 0.0, %v3118
      %v3120 = vpop.f32.mrf.mxu0
      %3121 = vmatprep.mubr.bf16.mxu0 0
      %3122 = vmatmul.mubr.bf16.gmra.mxu0 %v3022
      %v3123 = vpop.f32.mrf.mxu0
      %v3124 = vadd.f32 0.0, %v3123
      %v3125 = vpop.f32.mrf.mxu0
      %v3126 = vpop.f32.mrf.mxu0
      %v3127 = vadd.f32 0.0, %v3126
      %v3128 = vpop.f32.mrf.mxu0
      %3129 = vmatprep.mubr.bf16.mxu0 0
      %3130 = vmatmul.mubr.bf16.gmra.mxu0 %v3025
      %v3131 = vpop.f32.mrf.mxu0
      %v3132 = vadd.f32 0.0, %v3131
      %v3133 = vpop.f32.mrf.mxu0
      %v3134 = vpop.f32.mrf.mxu0
      %v3135 = vadd.f32 0.0, %v3134
      %v3136 = vpop.f32.mrf.mxu0
      %3137 = vmatprep.mubr.bf16.mxu0 0
      %3138 = vmatmul.mubr.bf16.gmra.mxu0 %v3028
      %v3139 = vpop.f32.mrf.mxu0
      %v3140 = vadd.f32 0.0, %v3139
      %v3141 = vpop.f32.mrf.mxu0
      %v3142 = vpop.f32.mrf.mxu0
      %v3143 = vadd.f32 0.0, %v3142
      %v3144 = vpop.f32.mrf.mxu0
      %3145 = vmatprep.mubr.bf16.mxu0 0
      %3146 = vmatmul.mubr.bf16.gmra.mxu0 %v3031
      %v3147 = vpop.f32.mrf.mxu0
      %v3148 = vadd.f32 0.0, %v3147
      %v3149 = vpop.f32.mrf.mxu0
      %v3150 = vpop.f32.mrf.mxu0
      %v3151 = vadd.f32 0.0, %v3150
      %v3152 = vpop.f32.mrf.mxu0
      %3153 = vmatprep.mubr.bf16.mxu0 0
      %3154 = vmatmul.mubr.bf16.gmra.mxu0 %v3034
      %v3155 = vpop.f32.mrf.mxu0
      %v3156 = vadd.f32 0.0, %v3155
      %v3157 = vpop.f32.mrf.mxu0
      %v3158 = vpop.f32.mrf.mxu0
      %v3159 = vadd.f32 0.0, %v3158
      %v3160 = vpop.f32.mrf.mxu0
      %3161 = vmatprep.mubr.bf16.mxu0 0
      %3162 = vmatmul.mubr.bf16.gmra.mxu0 %v3037
      %v3163 = vpop.f32.mrf.mxu0
      %v3164 = vadd.f32 0.0, %v3163
      %v3165 = vpop.f32.mrf.mxu0
      %v3166 = vpop.f32.mrf.mxu0
      %v3167 = vadd.f32 0.0, %v3166
      %v3168 = vpop.f32.mrf.mxu0
      %3169 = vmatprep.mubr.bf16.mxu0 0
      %3170 = vmatmul.mubr.bf16.gmra.mxu0 %v3040
      %v3171 = vpop.f32.mrf.mxu0
      %v3172 = vadd.f32 0.0, %v3171
      %v3173 = vpop.f32.mrf.mxu0
      %v3174 = vpop.f32.mrf.mxu0
      %v3175 = vadd.f32 0.0, %v3174
      %v3176 = vpop.f32.mrf.mxu0
      %3177 = vmatprep.mubr.bf16.mxu0 0
      %3178 = vmatmul.mubr.bf16.gmra.mxu0 %v3043
      %v3179 = vpop.f32.mrf.mxu0
      %v3180 = vadd.f32 0.0, %v3179
      %v3181 = vpop.f32.mrf.mxu0
      %v3182 = vpop.f32.mrf.mxu0
      %v3183 = vadd.f32 0.0, %v3182
      %v3184 = vpop.f32.mrf.mxu0
      %3185 = vmatprep.mubr.bf16.mxu0 0
      %3186 = vmatmul.mubr.bf16.gmra.mxu0 %v3046
      %v3187 = vpop.f32.mrf.mxu0
      %v3188 = vadd.f32 0.0, %v3187
      %v3189 = vpop.f32.mrf.mxu0
      %v3190 = vpop.f32.mrf.mxu0
      %v3191 = vadd.f32 0.0, %v3190
      %v3192 = vpop.f32.mrf.mxu0
      %3193 = vmatprep.mubr.bf16.mxu0 0
      %3194 = vmatmul.mubr.bf16.gmra.mxu0 %v3049
      %v3195 = vpop.f32.mrf.mxu0
      %v3196 = vadd.f32 0.0, %v3195
      %v3197 = vpop.f32.mrf.mxu0
      %v3198 = vpop.f32.mrf.mxu0
      %v3199 = vadd.f32 0.0, %v3198
      %v3200 = vpop.f32.mrf.mxu0
      %3201 = vmatprep.mubr.bf16.mxu0 0
      %3202 = vmatmul.mubr.bf16.gmra.mxu0 %v3052
      %v3203 = vpop.f32.mrf.mxu0
      %v3204 = vadd.f32 0.0, %v3203
      %v3205 = vpop.f32.mrf.mxu0
      %v3206 = vpop.f32.mrf.mxu0
      %v3207 = vadd.f32 0.0, %v3206
      %v3208 = vpop.f32.mrf.mxu0
      %3209 = vmatprep.mubr.bf16.mxu0 0
      %3210 = vmatmul.mubr.bf16.gmra.mxu0 %v3055
      %v3211 = vpop.f32.mrf.mxu0
      %v3212 = vadd.f32 0.0, %v3211
      %v3213 = vpop.f32.mrf.mxu0
      %v3214 = vpop.f32.mrf.mxu0
      %v3215 = vadd.f32 0.0, %v3214
      %v3216 = vpop.f32.mrf.mxu0
      %3217 = vdwg.mxu0
      %v3218 = vadd.f32 %v2795, %v3092
      %v3219 = vadd.f32 %v2796, %v3095
      %v3220 = vadd.f32 %v2797, %v3100
      %v3221 = vadd.f32 %v2798, %v3103
      %v3222 = vadd.f32 %v2799, %v3108
      %v3223 = vadd.f32 %v2800, %v3111
      %v3224 = vadd.f32 %v2801, %v3116
      %v3225 = vadd.f32 %v2802, %v3119
      %v3226 = vadd.f32 %v2803, %v3124
      %v3227 = vadd.f32 %v2804, %v3127
      %v3228 = vadd.f32 %v2805, %v3132
      %v3229 = vadd.f32 %v2806, %v3135
      %v3230 = vadd.f32 %v2807, %v3140
      %v3231 = vadd.f32 %v2808, %v3143
      %v3232 = vadd.f32 %v2809, %v3148
      %v3233 = vadd.f32 %v2810, %v3151
      %v3234 = vadd.f32 %v2811, %v3156
      %v3235 = vadd.f32 %v2812, %v3159
      %v3236 = vadd.f32 %v2813, %v3164
      %v3237 = vadd.f32 %v2814, %v3167
      %v3238 = vadd.f32 %v2815, %v3172
      %v3239 = vadd.f32 %v2816, %v3175
      %v3240 = vadd.f32 %v2817, %v3180
      %v3241 = vadd.f32 %v2818, %v3183
      %v3242 = vadd.f32 %v2819, %v3188
      %v3243 = vadd.f32 %v2820, %v3191
      %v3244 = vadd.f32 %v2821, %v3196
      %v3245 = vadd.f32 %v2822, %v3199
      %v3246 = vadd.f32 %v2823, %v3204
      %v3247 = vadd.f32 %v2824, %v3207
      %v3248 = vadd.f32 %v2825, %v3212
      %v3249 = vadd.f32 %v2826, %v3215
      %v3250 = vld [vmem:[%s242 + $0x10] sm:$0x8]
      %s3251 = scalar_lea.vmem %s2, 192
      %v3252 = vld [vmem:[%s3251] sm:$0xf]
      %v3253 = vld [vmem:[%s3251 + $0x4] sm:$0xf]
      %v3254 = vld [vmem:[%s3251 + $0x8] sm:$0xf]
      %v3255 = vld [vmem:[%s3251 + $0xc] sm:$0xf]
      %v3256 = vld [vmem:[%s3251 + $0x10] sm:$0xf]
      %v3257 = vld [vmem:[%s3251 + $0x14] sm:$0xf]
      %v3259 = vunpack.c.l.b16 %v3250
      %v3260 = vpack.c.b16 %v2486, %v3259
      %vm3261 = vcmask 1044480
      %v3262 = vrot.slane %v3260, 3
      %v3263 = vrot.slane %v2519, 3
      %v3264 = vsel %vm3261, %v3262, %v3263
      %v3265 = vrot.slane %v2520, 3
      %v3266 = vsel %vm3261, %v3263, %v3265
      %v3267 = vrot.slane %v2521, 3
      %v3268 = vsel %vm3261, %v3265, %v3267
      %v3269 = vrot.slane %v2522, 3
      %v3270 = vsel %vm3261, %v3267, %v3269
      %v3271 = vrot.slane %v2523, 3
      %v3272 = vsel %vm3261, %v3269, %v3271
      %v3273 = vrot.slane %v2524, 3
      %v3274 = vsel %vm3261, %v3271, %v3273
      %v3275 = vrot.slane %v2525, 3
      %v3276 = vsel %vm3261, %v3273, %v3275
      %v3277 = vrot.slane %v2526, 3
      %v3278 = vsel %vm3261, %v3275, %v3277
      %v3279 = vrot.slane %v2527, 3
      %v3280 = vsel %vm3261, %v3277, %v3279
      %v3281 = vrot.slane %v2528, 3
      %v3282 = vsel %vm3261, %v3279, %v3281
      %v3283 = vrot.slane %v2529, 3
      %v3284 = vsel %vm3261, %v3281, %v3283
      %v3285 = vrot.slane %v2530, 3
      %v3286 = vsel %vm3261, %v3283, %v3285
      %v3287 = vrot.slane %v2531, 3
      %v3288 = vsel %vm3261, %v3285, %v3287
      %v3289 = vrot.slane %v2532, 3
      %v3290 = vsel %vm3261, %v3287, %v3289
      %v3291 = vrot.slane %v2533, 3
      %v3292 = vsel %vm3261, %v3289, %v3291
      %v3293 = vrot.slane %v2837, 3
      %v3294 = vsel %vm3261, %v3291, %v3293
      %v3301 = vunpack.c.l.b16 %v3252
      %v3302 = vunpack.c.l.b16 %v3253
      %v3303 = vunpack.c.l.b16 %v3254
      %v3304 = vunpack.c.l.b16 %v3255
      %v3305 = vunpack.c.l.b16 %v3256
      %v3306 = vunpack.c.l.b16 %v3257
      %v3307 = vpack.c.b16 %v3302, %v3301
      %v3308 = vpack.c.b16 %v3304, %v3303
      %v3309 = vpack.c.b16 %v3306, %v3305
      %v3314 = vsel %vm545, %v3264, 0
      %v3317 = vsel %vm545, %v3266, 0
      %v3320 = vsel %vm545, %v3268, 0
      %v3323 = vsel %vm545, %v3270, 0
      %v3326 = vsel %vm545, %v3272, 0
      %v3329 = vsel %vm545, %v3274, 0
      %v3332 = vsel %vm545, %v3276, 0
      %v3335 = vsel %vm545, %v3278, 0
      %v3338 = vsel %vm545, %v3280, 0
      %v3341 = vsel %vm545, %v3282, 0
      %v3344 = vsel %vm545, %v3284, 0
      %v3347 = vsel %vm545, %v3286, 0
      %v3350 = vsel %vm545, %v3288, 0
      %v3353 = vsel %vm545, %v3290, 0
      %v3356 = vsel %vm545, %v3292, 0
      %v3359 = vsel %vm545, %v3294, 0
      %3361 = vmatprep.subr.bf16.mxu0 0
      %3362 = vmatpush1.bf16.msra.mxu0 0
      %3363 = vmatprep.subr.bf16.mxu0 0
      %3364 = vmatpush1.bf16.msra.mxu0 0
      %3365 = vmatprep.subr.bf16.mxu0 0
      %3366 = vmatpush1.bf16.msra.mxu0 0
      %3367 = vmatprep.subr.bf16.mxu0 0
      %3368 = vmatpush1.bf16.msra.mxu0 0
      %3369 = vmatprep.subr.bf16.mxu0 0
      %3370 = vmatpush1.bf16.msra.mxu0 0
      %3371 = vmatprep.subr.bf16.mxu0 0
      %3372 = vmatpush1.bf16.msra.mxu0 %v3309
      %3373 = vmatprep.subr.bf16.mxu0 0
      %3374 = vmatpush1.bf16.msra.mxu0 %v3308
      %3375 = vmatprep.subr.bf16.mxu0 0
      %3376 = vmatpush1.bf16.msra.mxu0 %v3307
      %3377 = vmatprep.subr.bf16.mxu0 0
      %3378 = vmatpush2.bf16.msra.mxu0 0
      %3379 = vmatprep.subr.bf16.mxu0 0
      %3380 = vmatpush2.bf16.msra.mxu0 0
      %3381 = vmatprep.subr.bf16.mxu0 0
      %3382 = vmatpush2.bf16.msra.mxu0 0
      %3383 = vmatprep.subr.bf16.mxu0 0
      %3384 = vmatpush2.bf16.msra.mxu0 0
      %3385 = vmatprep.subr.bf16.mxu0 0
      %3386 = vmatpush2.bf16.msra.mxu0 0
      %3387 = vmatprep.subr.bf16.mxu0 0
      %3388 = vmatpush2.bf16.msra.mxu0 0
      %3389 = vmatprep.subr.bf16.mxu0 0
      %3390 = vmatpush2.bf16.msra.mxu0 0
      %3391 = vmatprep.subr.bf16.mxu0 0
      %3392 = vmatpush2.bf16.msra.mxu0 0
      %3393 = vmatprep.mubr.bf16.mxu0 0
      %3394 = vmatmul.mubr.bf16.gmra.mxu0 %v3314
      %v3395 = vpop.f32.mrf.mxu0
      %v3396 = vadd.f32 0.0, %v3395
      %v3397 = vpop.f32.mrf.mxu0
      %v3398 = vpop.f32.mrf.mxu0
      %v3399 = vadd.f32 0.0, %v3398
      %v3400 = vpop.f32.mrf.mxu0
      %3401 = vmatprep.mubr.bf16.mxu0 0
      %3402 = vmatmul.mubr.bf16.gmra.mxu0 %v3317
      %v3403 = vpop.f32.mrf.mxu0
      %v3404 = vadd.f32 0.0, %v3403
      %v3405 = vpop.f32.mrf.mxu0
      %v3406 = vpop.f32.mrf.mxu0
      %v3407 = vadd.f32 0.0, %v3406
      %v3408 = vpop.f32.mrf.mxu0
      %3409 = vmatprep.mubr.bf16.mxu0 0
      %3410 = vmatmul.mubr.bf16.gmra.mxu0 %v3320
      %v3411 = vpop.f32.mrf.mxu0
      %v3412 = vadd.f32 0.0, %v3411
      %v3413 = vpop.f32.mrf.mxu0
      %v3414 = vpop.f32.mrf.mxu0
      %v3415 = vadd.f32 0.0, %v3414
      %v3416 = vpop.f32.mrf.mxu0
      %3417 = vmatprep.mubr.bf16.mxu0 0
      %3418 = vmatmul.mubr.bf16.gmra.mxu0 %v3323
      %v3419 = vpop.f32.mrf.mxu0
      %v3420 = vadd.f32 0.0, %v3419
      %v3421 = vpop.f32.mrf.mxu0
      %v3422 = vpop.f32.mrf.mxu0
      %v3423 = vadd.f32 0.0, %v3422
      %v3424 = vpop.f32.mrf.mxu0
      %3425 = vmatprep.mubr.bf16.mxu0 0
      %3426 = vmatmul.mubr.bf16.gmra.mxu0 %v3326
      %v3427 = vpop.f32.mrf.mxu0
      %v3428 = vadd.f32 0.0, %v3427
      %v3429 = vpop.f32.mrf.mxu0
      %v3430 = vpop.f32.mrf.mxu0
      %v3431 = vadd.f32 0.0, %v3430
      %v3432 = vpop.f32.mrf.mxu0
      %3433 = vmatprep.mubr.bf16.mxu0 0
      %3434 = vmatmul.mubr.bf16.gmra.mxu0 %v3329
      %v3435 = vpop.f32.mrf.mxu0
      %v3436 = vadd.f32 0.0, %v3435
      %v3437 = vpop.f32.mrf.mxu0
      %v3438 = vpop.f32.mrf.mxu0
      %v3439 = vadd.f32 0.0, %v3438
      %v3440 = vpop.f32.mrf.mxu0
      %3441 = vmatprep.mubr.bf16.mxu0 0
      %3442 = vmatmul.mubr.bf16.gmra.mxu0 %v3332
      %v3443 = vpop.f32.mrf.mxu0
      %v3444 = vadd.f32 0.0, %v3443
      %v3445 = vpop.f32.mrf.mxu0
      %v3446 = vpop.f32.mrf.mxu0
      %v3447 = vadd.f32 0.0, %v3446
      %v3448 = vpop.f32.mrf.mxu0
      %3449 = vmatprep.mubr.bf16.mxu0 0
      %3450 = vmatmul.mubr.bf16.gmra.mxu0 %v3335
      %v3451 = vpop.f32.mrf.mxu0
      %v3452 = vadd.f32 0.0, %v3451
      %v3453 = vpop.f32.mrf.mxu0
      %v3454 = vpop.f32.mrf.mxu0
      %v3455 = vadd.f32 0.0, %v3454
      %v3456 = vpop.f32.mrf.mxu0
      %3457 = vmatprep.mubr.bf16.mxu0 0
      %3458 = vmatmul.mubr.bf16.gmra.mxu0 %v3338
      %v3459 = vpop.f32.mrf.mxu0
      %v3460 = vadd.f32 0.0, %v3459
      %v3461 = vpop.f32.mrf.mxu0
      %v3462 = vpop.f32.mrf.mxu0
      %v3463 = vadd.f32 0.0, %v3462
      %v3464 = vpop.f32.mrf.mxu0
      %3465 = vmatprep.mubr.bf16.mxu0 0
      %3466 = vmatmul.mubr.bf16.gmra.mxu0 %v3341
      %v3467 = vpop.f32.mrf.mxu0
      %v3468 = vadd.f32 0.0, %v3467
      %v3469 = vpop.f32.mrf.mxu0
      %v3470 = vpop.f32.mrf.mxu0
      %v3471 = vadd.f32 0.0, %v3470
      %v3472 = vpop.f32.mrf.mxu0
      %3473 = vmatprep.mubr.bf16.mxu0 0
      %3474 = vmatmul.mubr.bf16.gmra.mxu0 %v3344
      %v3475 = vpop.f32.mrf.mxu0
      %v3476 = vadd.f32 0.0, %v3475
      %v3477 = vpop.f32.mrf.mxu0
      %v3478 = vpop.f32.mrf.mxu0
      %v3479 = vadd.f32 0.0, %v3478
      %v3480 = vpop.f32.mrf.mxu0
      %3481 = vmatprep.mubr.bf16.mxu0 0
      %3482 = vmatmul.mubr.bf16.gmra.mxu0 %v3347
      %v3483 = vpop.f32.mrf.mxu0
      %v3484 = vadd.f32 0.0, %v3483
      %v3485 = vpop.f32.mrf.mxu0
      %v3486 = vpop.f32.mrf.mxu0
      %v3487 = vadd.f32 0.0, %v3486
      %v3488 = vpop.f32.mrf.mxu0
      %3489 = vmatprep.mubr.bf16.mxu0 0
      %3490 = vmatmul.mubr.bf16.gmra.mxu0 %v3350
      %v3491 = vpop.f32.mrf.mxu0
      %v3492 = vadd.f32 0.0, %v3491
      %v3493 = vpop.f32.mrf.mxu0
      %v3494 = vpop.f32.mrf.mxu0
      %v3495 = vadd.f32 0.0, %v3494
      %v3496 = vpop.f32.mrf.mxu0
      %3497 = vmatprep.mubr.bf16.mxu0 0
      %3498 = vmatmul.mubr.bf16.gmra.mxu0 %v3353
      %v3499 = vpop.f32.mrf.mxu0
      %v3500 = vadd.f32 0.0, %v3499
      %v3501 = vpop.f32.mrf.mxu0
      %v3502 = vpop.f32.mrf.mxu0
      %v3503 = vadd.f32 0.0, %v3502
      %v3504 = vpop.f32.mrf.mxu0
      %3505 = vmatprep.mubr.bf16.mxu0 0
      %3506 = vmatmul.mubr.bf16.gmra.mxu0 %v3356
      %v3507 = vpop.f32.mrf.mxu0
      %v3508 = vadd.f32 0.0, %v3507
      %v3509 = vpop.f32.mrf.mxu0
      %v3510 = vpop.f32.mrf.mxu0
      %v3511 = vadd.f32 0.0, %v3510
      %v3512 = vpop.f32.mrf.mxu0
      %3513 = vmatprep.mubr.bf16.mxu0 0
      %3514 = vmatmul.mubr.bf16.gmra.mxu0 %v3359
      %v3515 = vpop.f32.mrf.mxu0
      %v3516 = vadd.f32 0.0, %v3515
      %v3517 = vpop.f32.mrf.mxu0
      %v3518 = vpop.f32.mrf.mxu0
      %v3519 = vadd.f32 0.0, %v3518
      %v3520 = vpop.f32.mrf.mxu0
      %3521 = vdwg.mxu0
      %v3522 = vadd.f32 %v3218, %v3396
      %v3523 = vadd.f32 %v3219, %v3399
      %v3524 = vadd.f32 %v3220, %v3404
      %v3525 = vadd.f32 %v3221, %v3407
      %v3526 = vadd.f32 %v3222, %v3412
      %v3527 = vadd.f32 %v3223, %v3415
      %v3528 = vadd.f32 %v3224, %v3420
      %v3529 = vadd.f32 %v3225, %v3423
      %v3530 = vadd.f32 %v3226, %v3428
      %v3531 = vadd.f32 %v3227, %v3431
      %v3532 = vadd.f32 %v3228, %v3436
      %v3533 = vadd.f32 %v3229, %v3439
      %v3534 = vadd.f32 %v3230, %v3444
      %v3535 = vadd.f32 %v3231, %v3447
      %v3536 = vadd.f32 %v3232, %v3452
      %v3537 = vadd.f32 %v3233, %v3455
      %v3538 = vadd.f32 %v3234, %v3460
      %v3539 = vadd.f32 %v3235, %v3463
      %v3540 = vadd.f32 %v3236, %v3468
      %v3541 = vadd.f32 %v3237, %v3471
      %v3542 = vadd.f32 %v3238, %v3476
      %v3543 = vadd.f32 %v3239, %v3479
      %v3544 = vadd.f32 %v3240, %v3484
      %v3545 = vadd.f32 %v3241, %v3487
      %v3546 = vadd.f32 %v3242, %v3492
      %v3547 = vadd.f32 %v3243, %v3495
      %v3548 = vadd.f32 %v3244, %v3500
      %v3549 = vadd.f32 %v3245, %v3503
      %v3550 = vadd.f32 %v3246, %v3508
      %v3551 = vadd.f32 %v3247, %v3511
      %v3552 = vadd.f32 %v3248, %v3516
      %v3553 = vadd.f32 %v3249, %v3519
      %v3555 = vlaneseq
      %v3556 = vshrl.u32 %v3555, 7
      %v3557 = vsub.s32 0, %v3556
      %v3558 = vrot.slane %v264, %v3557
      %v3560 = vadd.f32 %v3522, %v3558
      %v3561 = vadd.f32 %v3523, %v3558
      %v3562 = vadd.f32 %v3524, %v3558
      %v3563 = vadd.f32 %v3525, %v3558
      %v3564 = vadd.f32 %v3526, %v3558
      %v3565 = vadd.f32 %v3527, %v3558
      %v3566 = vadd.f32 %v3528, %v3558
      %v3567 = vadd.f32 %v3529, %v3558
      %v3568 = vadd.f32 %v3530, %v3558
      %v3569 = vadd.f32 %v3531, %v3558
      %v3570 = vadd.f32 %v3532, %v3558
      %v3571 = vadd.f32 %v3533, %v3558
      %v3572 = vadd.f32 %v3534, %v3558
      %v3573 = vadd.f32 %v3535, %v3558
      %v3574 = vadd.f32 %v3536, %v3558
      %v3575 = vadd.f32 %v3537, %v3558
      %v3576 = vadd.f32 %v3538, %v3558
      %v3577 = vadd.f32 %v3539, %v3558
      %v3578 = vadd.f32 %v3540, %v3558
      %v3579 = vadd.f32 %v3541, %v3558
      %v3580 = vadd.f32 %v3542, %v3558
      %v3581 = vadd.f32 %v3543, %v3558
      %v3582 = vadd.f32 %v3544, %v3558
      %v3583 = vadd.f32 %v3545, %v3558
      %v3584 = vadd.f32 %v3546, %v3558
      %v3585 = vadd.f32 %v3547, %v3558
      %v3586 = vadd.f32 %v3548, %v3558
      %v3587 = vadd.f32 %v3549, %v3558
      %v3588 = vadd.f32 %v3550, %v3558
      %v3589 = vadd.f32 %v3551, %v3558
      %v3590 = vadd.f32 %v3552, %v3558
      %v3591 = vadd.f32 %v3553, %v3558
      %v3592 = vmul.f32 %v262, %v3560
      %v3593 = vmul.f32 %v262, %v3561
      %v3594 = vmul.f32 %v262, %v3562
      %v3595 = vmul.f32 %v262, %v3563
      %v3596 = vmul.f32 %v262, %v3564
      %v3597 = vmul.f32 %v262, %v3565
      %v3598 = vmul.f32 %v262, %v3566
      %v3599 = vmul.f32 %v262, %v3567
      %v3600 = vmul.f32 %v262, %v3568
      %v3601 = vmul.f32 %v262, %v3569
      %v3602 = vmul.f32 %v262, %v3570
      %v3603 = vmul.f32 %v262, %v3571
      %v3604 = vmul.f32 %v262, %v3572
      %v3605 = vmul.f32 %v262, %v3573
      %v3606 = vmul.f32 %v262, %v3574
      %v3607 = vmul.f32 %v262, %v3575
      %v3608 = vmul.f32 %v262, %v3576
      %v3609 = vmul.f32 %v262, %v3577
      %v3610 = vmul.f32 %v262, %v3578
      %v3611 = vmul.f32 %v262, %v3579
      %v3612 = vmul.f32 %v262, %v3580
      %v3613 = vmul.f32 %v262, %v3581
      %v3614 = vmul.f32 %v262, %v3582
      %v3615 = vmul.f32 %v262, %v3583
      %v3616 = vmul.f32 %v262, %v3584
      %v3617 = vmul.f32 %v262, %v3585
      %v3618 = vmul.f32 %v262, %v3586
      %v3619 = vmul.f32 %v262, %v3587
      %v3620 = vmul.f32 %v262, %v3588
      %v3621 = vmul.f32 %v262, %v3589
      %v3622 = vmul.f32 %v262, %v3590
      %v3623 = vmul.f32 %v262, %v3591
      %v3624 = vtanh.pop %v3592
      %v3625 = vtanh.pop %v3593
      %v3626 = vtanh.pop %v3594
      %v3627 = vtanh.pop %v3595
      %v3628 = vtanh.pop %v3596
      %v3629 = vtanh.pop %v3597
      %v3630 = vtanh.pop %v3598
      %v3631 = vtanh.pop %v3599
      %v3632 = vtanh.pop %v3600
      %v3633 = vtanh.pop %v3601
      %v3634 = vtanh.pop %v3602
      %v3635 = vtanh.pop %v3603
      %v3636 = vtanh.pop %v3604
      %v3637 = vtanh.pop %v3605
      %v3638 = vtanh.pop %v3606
      %v3639 = vtanh.pop %v3607
      %v3640 = vtanh.pop %v3608
      %v3641 = vtanh.pop %v3609
      %v3642 = vtanh.pop %v3610
      %v3643 = vtanh.pop %v3611
      %v3644 = vtanh.pop %v3612
      %v3645 = vtanh.pop %v3613
      %v3646 = vtanh.pop %v3614
      %v3647 = vtanh.pop %v3615
      %v3648 = vtanh.pop %v3616
      %v3649 = vtanh.pop %v3617
      %v3650 = vtanh.pop %v3618
      %v3651 = vtanh.pop %v3619
      %v3652 = vtanh.pop %v3620
      %v3653 = vtanh.pop %v3621
      %v3654 = vtanh.pop %v3622
      %v3655 = vtanh.pop %v3623
      %v3656 = vmul.f32 %v262, %v3624
      %v3657 = vmul.f32 %v262, %v3625
      %v3658 = vmul.f32 %v262, %v3626
      %v3659 = vmul.f32 %v262, %v3627
      %v3660 = vmul.f32 %v262, %v3628
      %v3661 = vmul.f32 %v262, %v3629
      %v3662 = vmul.f32 %v262, %v3630
      %v3663 = vmul.f32 %v262, %v3631
      %v3664 = vmul.f32 %v262, %v3632
      %v3665 = vmul.f32 %v262, %v3633
      %v3666 = vmul.f32 %v262, %v3634
      %v3667 = vmul.f32 %v262, %v3635
      %v3668 = vmul.f32 %v262, %v3636
      %v3669 = vmul.f32 %v262, %v3637
      %v3670 = vmul.f32 %v262, %v3638
      %v3671 = vmul.f32 %v262, %v3639
      %v3672 = vmul.f32 %v262, %v3640
      %v3673 = vmul.f32 %v262, %v3641
      %v3674 = vmul.f32 %v262, %v3642
      %v3675 = vmul.f32 %v262, %v3643
      %v3676 = vmul.f32 %v262, %v3644
      %v3677 = vmul.f32 %v262, %v3645
      %v3678 = vmul.f32 %v262, %v3646
      %v3679 = vmul.f32 %v262, %v3647
      %v3680 = vmul.f32 %v262, %v3648
      %v3681 = vmul.f32 %v262, %v3649
      %v3682 = vmul.f32 %v262, %v3650
      %v3683 = vmul.f32 %v262, %v3651
      %v3684 = vmul.f32 %v262, %v3652
      %v3685 = vmul.f32 %v262, %v3653
      %v3686 = vmul.f32 %v262, %v3654
      %v3687 = vmul.f32 %v262, %v3655
      %v3688 = vadd.f32 %v3656, %v263
      %v3689 = vadd.f32 %v3657, %v263
      %v3690 = vadd.f32 %v3658, %v263
      %v3691 = vadd.f32 %v3659, %v263
      %v3692 = vadd.f32 %v3660, %v263
      %v3693 = vadd.f32 %v3661, %v263
      %v3694 = vadd.f32 %v3662, %v263
      %v3695 = vadd.f32 %v3663, %v263
      %v3696 = vadd.f32 %v3664, %v263
      %v3697 = vadd.f32 %v3665, %v263
      %v3698 = vadd.f32 %v3666, %v263
      %v3699 = vadd.f32 %v3667, %v263
      %v3700 = vadd.f32 %v3668, %v263
      %v3701 = vadd.f32 %v3669, %v263
      %v3702 = vadd.f32 %v3670, %v263
      %v3703 = vadd.f32 %v3671, %v263
      %v3704 = vadd.f32 %v3672, %v263
      %v3705 = vadd.f32 %v3673, %v263
      %v3706 = vadd.f32 %v3674, %v263
      %v3707 = vadd.f32 %v3675, %v263
      %v3708 = vadd.f32 %v3676, %v263
      %v3709 = vadd.f32 %v3677, %v263
      %v3710 = vadd.f32 %v3678, %v263
      %v3711 = vadd.f32 %v3679, %v263
      %v3712 = vadd.f32 %v3680, %v263
      %v3713 = vadd.f32 %v3681, %v263
      %v3714 = vadd.f32 %v3682, %v263
      %v3715 = vadd.f32 %v3683, %v263
      %v3716 = vadd.f32 %v3684, %v263
      %v3717 = vadd.f32 %v3685, %v263
      %v3718 = vadd.f32 %v3686, %v263
      %v3719 = vadd.f32 %v3687, %v263
      %v3720 = vld [vmem:[%s247] sm:$0xff]
      %v3721 = vld [vmem:[%s247 + $0x8] sm:$0xff]
      %v3722 = vld [vmem:[%s247 + $0x10] sm:$0xff]
      %v3723 = vld [vmem:[%s247 + $0x18] sm:$0xff]
      %v3724 = vld [vmem:[%s247 + $0x20] sm:$0xff]
      %v3725 = vld [vmem:[%s247 + $0x28] sm:$0xff]
      %v3726 = vld [vmem:[%s247 + $0x30] sm:$0xff]
      %v3727 = vld [vmem:[%s247 + $0x38] sm:$0xff]
      %v3728 = vld [vmem:[%s247 + $0x40] sm:$0xff]
      %v3729 = vld [vmem:[%s247 + $0x48] sm:$0xff]
      %v3730 = vld [vmem:[%s247 + $0x50] sm:$0xff]
      %v3731 = vld [vmem:[%s247 + $0x58] sm:$0xff]
      %v3732 = vld [vmem:[%s247 + $0x60] sm:$0xff]
      %v3733 = vld [vmem:[%s247 + $0x68] sm:$0xff]
      %v3734 = vld [vmem:[%s247 + $0x70] sm:$0xff]
      %v3735 = vld [vmem:[%s247 + $0x78] sm:$0xff]
      %v3736 = vld [vmem:[%s247 + $0x80] sm:$0xff]
      %v3737 = vld [vmem:[%s247 + $0x88] sm:$0xff]
      %v3738 = vld [vmem:[%s247 + $0x90] sm:$0xff]
      %v3739 = vld [vmem:[%s247 + $0x98] sm:$0xff]
      %v3740 = vld [vmem:[%s247 + $0xa0] sm:$0xff]
      %v3741 = vld [vmem:[%s247 + $0xa8] sm:$0xff]
      %v3742 = vld [vmem:[%s247 + $0xb0] sm:$0xff]
      %v3743 = vld [vmem:[%s247 + $0xb8] sm:$0xff]
      %v3744 = vld [vmem:[%s247 + $0xc0] sm:$0xff]
      %v3745 = vld [vmem:[%s247 + $0xc8] sm:$0xff]
      %v3746 = vld [vmem:[%s247 + $0xd0] sm:$0xff]
      %v3747 = vld [vmem:[%s247 + $0xd8] sm:$0xff]
      %v3748 = vld [vmem:[%s247 + $0xe0] sm:$0xff]
      %v3749 = vld [vmem:[%s247 + $0xe8] sm:$0xff]
      %v3750 = vld [vmem:[%s247 + $0xf0] sm:$0xff]
      %v3751 = vld [vmem:[%s247 + $0xf8] sm:$0xff]
      %3784 = vrot.lane.b32.xlu0 %v3720, 64
      %v3785 = vpop.permute.xlu0 %3784
      %3786 = vrot.lane.b32.xlu0 %v3721, 64
      %v3787 = vpop.permute.xlu0 %3786
      %3788 = vrot.lane.b32.xlu0 %v3722, 64
      %v3789 = vpop.permute.xlu0 %3788
      %3790 = vrot.lane.b32.xlu0 %v3723, 64
      %v3791 = vpop.permute.xlu0 %3790
      %3792 = vrot.lane.b32.xlu0 %v3724, 64
      %v3793 = vpop.permute.xlu0 %3792
      %3794 = vrot.lane.b32.xlu0 %v3725, 64
      %v3795 = vpop.permute.xlu0 %3794
      %3796 = vrot.lane.b32.xlu0 %v3726, 64
      %v3797 = vpop.permute.xlu0 %3796
      %3798 = vrot.lane.b32.xlu0 %v3727, 64
      %v3799 = vpop.permute.xlu0 %3798
      %3800 = vrot.lane.b32.xlu0 %v3728, 64
      %v3801 = vpop.permute.xlu0 %3800
      %3802 = vrot.lane.b32.xlu0 %v3729, 64
      %v3803 = vpop.permute.xlu0 %3802
      %3804 = vrot.lane.b32.xlu0 %v3730, 64
      %v3805 = vpop.permute.xlu0 %3804
      %3806 = vrot.lane.b32.xlu0 %v3731, 64
      %v3807 = vpop.permute.xlu0 %3806
      %3808 = vrot.lane.b32.xlu0 %v3732, 64
      %v3809 = vpop.permute.xlu0 %3808
      %3810 = vrot.lane.b32.xlu0 %v3733, 64
      %v3811 = vpop.permute.xlu0 %3810
      %3812 = vrot.lane.b32.xlu0 %v3734, 64
      %v3813 = vpop.permute.xlu0 %3812
      %3814 = vrot.lane.b32.xlu0 %v3735, 64
      %v3815 = vpop.permute.xlu0 %3814
      %3816 = vrot.lane.b32.xlu0 %v3736, 64
      %v3817 = vpop.permute.xlu0 %3816
      %3818 = vrot.lane.b32.xlu0 %v3737, 64
      %v3819 = vpop.permute.xlu0 %3818
      %3820 = vrot.lane.b32.xlu0 %v3738, 64
      %v3821 = vpop.permute.xlu0 %3820
      %3822 = vrot.lane.b32.xlu0 %v3739, 64
      %v3823 = vpop.permute.xlu0 %3822
      %3824 = vrot.lane.b32.xlu0 %v3740, 64
      %v3825 = vpop.permute.xlu0 %3824
      %3826 = vrot.lane.b32.xlu0 %v3741, 64
      %v3827 = vpop.permute.xlu0 %3826
      %3828 = vrot.lane.b32.xlu0 %v3742, 64
      %v3829 = vpop.permute.xlu0 %3828
      %3830 = vrot.lane.b32.xlu0 %v3743, 64
      %v3831 = vpop.permute.xlu0 %3830
      %3832 = vrot.lane.b32.xlu0 %v3744, 64
      %v3833 = vpop.permute.xlu0 %3832
      %3834 = vrot.lane.b32.xlu0 %v3745, 64
      %v3835 = vpop.permute.xlu0 %3834
      %3836 = vrot.lane.b32.xlu0 %v3746, 64
      %v3837 = vpop.permute.xlu0 %3836
      %3838 = vrot.lane.b32.xlu0 %v3747, 64
      %v3839 = vpop.permute.xlu0 %3838
      %3840 = vrot.lane.b32.xlu0 %v3748, 64
      %v3841 = vpop.permute.xlu0 %3840
      %3842 = vrot.lane.b32.xlu0 %v3749, 64
      %v3843 = vpop.permute.xlu0 %3842
      %3844 = vrot.lane.b32.xlu0 %v3750, 64
      %v3845 = vpop.permute.xlu0 %3844
      %3846 = vrot.lane.b32.xlu0 %v3751, 64
      %v3847 = vpop.permute.xlu0 %3846
      %v3880 = vmul.f32 %v3688, %v3785
      %v3881 = vmul.f32 %v3689, %v3787
      %v3882 = vmul.f32 %v3690, %v3789
      %v3883 = vmul.f32 %v3691, %v3791
      %v3884 = vmul.f32 %v3692, %v3793
      %v3885 = vmul.f32 %v3693, %v3795
      %v3886 = vmul.f32 %v3694, %v3797
      %v3887 = vmul.f32 %v3695, %v3799
      %v3888 = vmul.f32 %v3696, %v3801
      %v3889 = vmul.f32 %v3697, %v3803
      %v3890 = vmul.f32 %v3698, %v3805
      %v3891 = vmul.f32 %v3699, %v3807
      %v3892 = vmul.f32 %v3700, %v3809
      %v3893 = vmul.f32 %v3701, %v3811
      %v3894 = vmul.f32 %v3702, %v3813
      %v3895 = vmul.f32 %v3703, %v3815
      %v3896 = vmul.f32 %v3704, %v3817
      %v3897 = vmul.f32 %v3705, %v3819
      %v3898 = vmul.f32 %v3706, %v3821
      %v3899 = vmul.f32 %v3707, %v3823
      %v3900 = vmul.f32 %v3708, %v3825
      %v3901 = vmul.f32 %v3709, %v3827
      %v3902 = vmul.f32 %v3710, %v3829
      %v3903 = vmul.f32 %v3711, %v3831
      %v3904 = vmul.f32 %v3712, %v3833
      %v3905 = vmul.f32 %v3713, %v3835
      %v3906 = vmul.f32 %v3714, %v3837
      %v3907 = vmul.f32 %v3715, %v3839
      %v3908 = vmul.f32 %v3716, %v3841
      %v3909 = vmul.f32 %v3717, %v3843
      %v3910 = vmul.f32 %v3718, %v3845
      %v3911 = vmul.f32 %v3719, %v3847
      %3944 = vrot.lane.b32.xlu0 %v3688, 32
      %v3945 = vpop.permute.xlu0 %3944
      %3946 = vrot.lane.b32.xlu0 %v3689, 32
      %v3947 = vpop.permute.xlu0 %3946
      %3948 = vrot.lane.b32.xlu0 %v3690, 32
      %v3949 = vpop.permute.xlu0 %3948
      %3950 = vrot.lane.b32.xlu0 %v3691, 32
      %v3951 = vpop.permute.xlu0 %3950
      %3952 = vrot.lane.b32.xlu0 %v3692, 32
      %v3953 = vpop.permute.xlu0 %3952
      %3954 = vrot.lane.b32.xlu0 %v3693, 32
      %v3955 = vpop.permute.xlu0 %3954
      %3956 = vrot.lane.b32.xlu0 %v3694, 32
      %v3957 = vpop.permute.xlu0 %3956
      %3958 = vrot.lane.b32.xlu0 %v3695, 32
      %v3959 = vpop.permute.xlu0 %3958
      %3960 = vrot.lane.b32.xlu0 %v3696, 32
      %v3961 = vpop.permute.xlu0 %3960
      %3962 = vrot.lane.b32.xlu0 %v3697, 32
      %v3963 = vpop.permute.xlu0 %3962
      %3964 = vrot.lane.b32.xlu0 %v3698, 32
      %v3965 = vpop.permute.xlu0 %3964
      %3966 = vrot.lane.b32.xlu0 %v3699, 32
      %v3967 = vpop.permute.xlu0 %3966
      %3968 = vrot.lane.b32.xlu0 %v3700, 32
      %v3969 = vpop.permute.xlu0 %3968
      %3970 = vrot.lane.b32.xlu0 %v3701, 32
      %v3971 = vpop.permute.xlu0 %3970
      %3972 = vrot.lane.b32.xlu0 %v3702, 32
      %v3973 = vpop.permute.xlu0 %3972
      %3974 = vrot.lane.b32.xlu0 %v3703, 32
      %v3975 = vpop.permute.xlu0 %3974
      %3976 = vrot.lane.b32.xlu0 %v3704, 32
      %v3977 = vpop.permute.xlu0 %3976
      %3978 = vrot.lane.b32.xlu0 %v3705, 32
      %v3979 = vpop.permute.xlu0 %3978
      %3980 = vrot.lane.b32.xlu0 %v3706, 32
      %v3981 = vpop.permute.xlu0 %3980
      %3982 = vrot.lane.b32.xlu0 %v3707, 32
      %v3983 = vpop.permute.xlu0 %3982
      %3984 = vrot.lane.b32.xlu0 %v3708, 32
      %v3985 = vpop.permute.xlu0 %3984
      %3986 = vrot.lane.b32.xlu0 %v3709, 32
      %v3987 = vpop.permute.xlu0 %3986
      %3988 = vrot.lane.b32.xlu0 %v3710, 32
      %v3989 = vpop.permute.xlu0 %3988
      %3990 = vrot.lane.b32.xlu0 %v3711, 32
      %v3991 = vpop.permute.xlu0 %3990
      %3992 = vrot.lane.b32.xlu0 %v3712, 32
      %v3993 = vpop.permute.xlu0 %3992
      %3994 = vrot.lane.b32.xlu0 %v3713, 32
      %v3995 = vpop.permute.xlu0 %3994
      %3996 = vrot.lane.b32.xlu0 %v3714, 32
      %v3997 = vpop.permute.xlu0 %3996
      %3998 = vrot.lane.b32.xlu0 %v3715, 32
      %v3999 = vpop.permute.xlu0 %3998
      %4000 = vrot.lane.b32.xlu0 %v3716, 32
      %v4001 = vpop.permute.xlu0 %4000
      %4002 = vrot.lane.b32.xlu0 %v3717, 32
      %v4003 = vpop.permute.xlu0 %4002
      %4004 = vrot.lane.b32.xlu0 %v3718, 32
      %v4005 = vpop.permute.xlu0 %4004
      %4006 = vrot.lane.b32.xlu0 %v3719, 32
      %v4007 = vpop.permute.xlu0 %4006
      %v4040 = vmul.f32 %v3688, %v3945
      %v4041 = vmul.f32 %v3689, %v3947
      %v4042 = vmul.f32 %v3690, %v3949
      %v4043 = vmul.f32 %v3691, %v3951
      %v4044 = vmul.f32 %v3692, %v3953
      %v4045 = vmul.f32 %v3693, %v3955
      %v4046 = vmul.f32 %v3694, %v3957
      %v4047 = vmul.f32 %v3695, %v3959
      %v4048 = vmul.f32 %v3696, %v3961
      %v4049 = vmul.f32 %v3697, %v3963
      %v4050 = vmul.f32 %v3698, %v3965
      %v4051 = vmul.f32 %v3699, %v3967
      %v4052 = vmul.f32 %v3700, %v3969
      %v4053 = vmul.f32 %v3701, %v3971
      %v4054 = vmul.f32 %v3702, %v3973
      %v4055 = vmul.f32 %v3703, %v3975
      %v4056 = vmul.f32 %v3704, %v3977
      %v4057 = vmul.f32 %v3705, %v3979
      %v4058 = vmul.f32 %v3706, %v3981
      %v4059 = vmul.f32 %v3707, %v3983
      %v4060 = vmul.f32 %v3708, %v3985
      %v4061 = vmul.f32 %v3709, %v3987
      %v4062 = vmul.f32 %v3710, %v3989
      %v4063 = vmul.f32 %v3711, %v3991
      %v4064 = vmul.f32 %v3712, %v3993
      %v4065 = vmul.f32 %v3713, %v3995
      %v4066 = vmul.f32 %v3714, %v3997
      %v4067 = vmul.f32 %v3715, %v3999
      %v4068 = vmul.f32 %v3716, %v4001
      %v4069 = vmul.f32 %v3717, %v4003
      %v4070 = vmul.f32 %v3718, %v4005
      %v4071 = vmul.f32 %v3719, %v4007
      %4104 = vrot.lane.b32.xlu0 %v4040, 32
      %v4105 = vpop.permute.xlu0 %4104
      %4106 = vrot.lane.b32.xlu0 %v4041, 32
      %v4107 = vpop.permute.xlu0 %4106
      %4108 = vrot.lane.b32.xlu0 %v4042, 32
      %v4109 = vpop.permute.xlu0 %4108
      %4110 = vrot.lane.b32.xlu0 %v4043, 32
      %v4111 = vpop.permute.xlu0 %4110
      %4112 = vrot.lane.b32.xlu0 %v4044, 32
      %v4113 = vpop.permute.xlu0 %4112
      %4114 = vrot.lane.b32.xlu0 %v4045, 32
      %v4115 = vpop.permute.xlu0 %4114
      %4116 = vrot.lane.b32.xlu0 %v4046, 32
      %v4117 = vpop.permute.xlu0 %4116
      %4118 = vrot.lane.b32.xlu0 %v4047, 32
      %v4119 = vpop.permute.xlu0 %4118
      %4120 = vrot.lane.b32.xlu0 %v4048, 32
      %v4121 = vpop.permute.xlu0 %4120
      %4122 = vrot.lane.b32.xlu0 %v4049, 32
      %v4123 = vpop.permute.xlu0 %4122
      %4124 = vrot.lane.b32.xlu0 %v4050, 32
      %v4125 = vpop.permute.xlu0 %4124
      %4126 = vrot.lane.b32.xlu0 %v4051, 32
      %v4127 = vpop.permute.xlu0 %4126
      %4128 = vrot.lane.b32.xlu0 %v4052, 32
      %v4129 = vpop.permute.xlu0 %4128
      %4130 = vrot.lane.b32.xlu0 %v4053, 32
      %v4131 = vpop.permute.xlu0 %4130
      %4132 = vrot.lane.b32.xlu0 %v4054, 32
      %v4133 = vpop.permute.xlu0 %4132
      %4134 = vrot.lane.b32.xlu0 %v4055, 32
      %v4135 = vpop.permute.xlu0 %4134
      %4136 = vrot.lane.b32.xlu0 %v4056, 32
      %v4137 = vpop.permute.xlu0 %4136
      %4138 = vrot.lane.b32.xlu0 %v4057, 32
      %v4139 = vpop.permute.xlu0 %4138
      %4140 = vrot.lane.b32.xlu0 %v4058, 32
      %v4141 = vpop.permute.xlu0 %4140
      %4142 = vrot.lane.b32.xlu0 %v4059, 32
      %v4143 = vpop.permute.xlu0 %4142
      %4144 = vrot.lane.b32.xlu0 %v4060, 32
      %v4145 = vpop.permute.xlu0 %4144
      %4146 = vrot.lane.b32.xlu0 %v4061, 32
      %v4147 = vpop.permute.xlu0 %4146
      %4148 = vrot.lane.b32.xlu0 %v4062, 32
      %v4149 = vpop.permute.xlu0 %4148
      %4150 = vrot.lane.b32.xlu0 %v4063, 32
      %v4151 = vpop.permute.xlu0 %4150
      %4152 = vrot.lane.b32.xlu0 %v4064, 32
      %v4153 = vpop.permute.xlu0 %4152
      %4154 = vrot.lane.b32.xlu0 %v4065, 32
      %v4155 = vpop.permute.xlu0 %4154
      %4156 = vrot.lane.b32.xlu0 %v4066, 32
      %v4157 = vpop.permute.xlu0 %4156
      %4158 = vrot.lane.b32.xlu0 %v4067, 32
      %v4159 = vpop.permute.xlu0 %4158
      %4160 = vrot.lane.b32.xlu0 %v4068, 32
      %v4161 = vpop.permute.xlu0 %4160
      %4162 = vrot.lane.b32.xlu0 %v4069, 32
      %v4163 = vpop.permute.xlu0 %4162
      %4164 = vrot.lane.b32.xlu0 %v4070, 32
      %v4165 = vpop.permute.xlu0 %4164
      %4166 = vrot.lane.b32.xlu0 %v4071, 32
      %v4167 = vpop.permute.xlu0 %4166
      %v4200 = vadd.f32 %v3880, %v4105
      %v4201 = vadd.f32 %v3881, %v4107
      %v4202 = vadd.f32 %v3882, %v4109
      %v4203 = vadd.f32 %v3883, %v4111
      %v4204 = vadd.f32 %v3884, %v4113
      %v4205 = vadd.f32 %v3885, %v4115
      %v4206 = vadd.f32 %v3886, %v4117
      %v4207 = vadd.f32 %v3887, %v4119
      %v4208 = vadd.f32 %v3888, %v4121
      %v4209 = vadd.f32 %v3889, %v4123
      %v4210 = vadd.f32 %v3890, %v4125
      %v4211 = vadd.f32 %v3891, %v4127
      %v4212 = vadd.f32 %v3892, %v4129
      %v4213 = vadd.f32 %v3893, %v4131
      %v4214 = vadd.f32 %v3894, %v4133
      %v4215 = vadd.f32 %v3895, %v4135
      %v4216 = vadd.f32 %v3896, %v4137
      %v4217 = vadd.f32 %v3897, %v4139
      %v4218 = vadd.f32 %v3898, %v4141
      %v4219 = vadd.f32 %v3899, %v4143
      %v4220 = vadd.f32 %v3900, %v4145
      %v4221 = vadd.f32 %v3901, %v4147
      %v4222 = vadd.f32 %v3902, %v4149
      %v4223 = vadd.f32 %v3903, %v4151
      %v4224 = vadd.f32 %v3904, %v4153
      %v4225 = vadd.f32 %v3905, %v4155
      %v4226 = vadd.f32 %v3906, %v4157
      %v4227 = vadd.f32 %v3907, %v4159
      %v4228 = vadd.f32 %v3908, %v4161
      %v4229 = vadd.f32 %v3909, %v4163
      %v4230 = vadd.f32 %v3910, %v4165
      %v4231 = vadd.f32 %v3911, %v4167
      %v4232 = vtanh.pop %v4200
      %v4233 = vtanh.pop %v4201
      %v4234 = vtanh.pop %v4202
      %v4235 = vtanh.pop %v4203
      %v4236 = vtanh.pop %v4204
      %v4237 = vtanh.pop %v4205
      %v4238 = vtanh.pop %v4206
      %v4239 = vtanh.pop %v4207
      %v4240 = vtanh.pop %v4208
      %v4241 = vtanh.pop %v4209
      %v4242 = vtanh.pop %v4210
      %v4243 = vtanh.pop %v4211
      %v4244 = vtanh.pop %v4212
      %v4245 = vtanh.pop %v4213
      %v4246 = vtanh.pop %v4214
      %v4247 = vtanh.pop %v4215
      %v4248 = vtanh.pop %v4216
      %v4249 = vtanh.pop %v4217
      %v4250 = vtanh.pop %v4218
      %v4251 = vtanh.pop %v4219
      %v4252 = vtanh.pop %v4220
      %v4253 = vtanh.pop %v4221
      %v4254 = vtanh.pop %v4222
      %v4255 = vtanh.pop %v4223
      %v4256 = vtanh.pop %v4224
      %v4257 = vtanh.pop %v4225
      %v4258 = vtanh.pop %v4226
      %v4259 = vtanh.pop %v4227
      %v4260 = vtanh.pop %v4228
      %v4261 = vtanh.pop %v4229
      %v4262 = vtanh.pop %v4230
      %v4263 = vtanh.pop %v4231
      %4296 = vrot.lane.b32.xlu0 %v4232, 32
      %v4297 = vpop.permute.xlu0 %4296
      %4298 = vrot.lane.b32.xlu0 %v4233, 32
      %v4299 = vpop.permute.xlu0 %4298
      %4300 = vrot.lane.b32.xlu0 %v4234, 32
      %v4301 = vpop.permute.xlu0 %4300
      %4302 = vrot.lane.b32.xlu0 %v4235, 32
      %v4303 = vpop.permute.xlu0 %4302
      %4304 = vrot.lane.b32.xlu0 %v4236, 32
      %v4305 = vpop.permute.xlu0 %4304
      %4306 = vrot.lane.b32.xlu0 %v4237, 32
      %v4307 = vpop.permute.xlu0 %4306
      %4308 = vrot.lane.b32.xlu0 %v4238, 32
      %v4309 = vpop.permute.xlu0 %4308
      %4310 = vrot.lane.b32.xlu0 %v4239, 32
      %v4311 = vpop.permute.xlu0 %4310
      %4312 = vrot.lane.b32.xlu0 %v4240, 32
      %v4313 = vpop.permute.xlu0 %4312
      %4314 = vrot.lane.b32.xlu0 %v4241, 32
      %v4315 = vpop.permute.xlu0 %4314
      %4316 = vrot.lane.b32.xlu0 %v4242, 32
      %v4317 = vpop.permute.xlu0 %4316
      %4318 = vrot.lane.b32.xlu0 %v4243, 32
      %v4319 = vpop.permute.xlu0 %4318
      %4320 = vrot.lane.b32.xlu0 %v4244, 32
      %v4321 = vpop.permute.xlu0 %4320
      %4322 = vrot.lane.b32.xlu0 %v4245, 32
      %v4323 = vpop.permute.xlu0 %4322
      %4324 = vrot.lane.b32.xlu0 %v4246, 32
      %v4325 = vpop.permute.xlu0 %4324
      %4326 = vrot.lane.b32.xlu0 %v4247, 32
      %v4327 = vpop.permute.xlu0 %4326
      %4328 = vrot.lane.b32.xlu0 %v4248, 32
      %v4329 = vpop.permute.xlu0 %4328
      %4330 = vrot.lane.b32.xlu0 %v4249, 32
      %v4331 = vpop.permute.xlu0 %4330
      %4332 = vrot.lane.b32.xlu0 %v4250, 32
      %v4333 = vpop.permute.xlu0 %4332
      %4334 = vrot.lane.b32.xlu0 %v4251, 32
      %v4335 = vpop.permute.xlu0 %4334
      %4336 = vrot.lane.b32.xlu0 %v4252, 32
      %v4337 = vpop.permute.xlu0 %4336
      %4338 = vrot.lane.b32.xlu0 %v4253, 32
      %v4339 = vpop.permute.xlu0 %4338
      %4340 = vrot.lane.b32.xlu0 %v4254, 32
      %v4341 = vpop.permute.xlu0 %4340
      %4342 = vrot.lane.b32.xlu0 %v4255, 32
      %v4343 = vpop.permute.xlu0 %4342
      %4344 = vrot.lane.b32.xlu0 %v4256, 32
      %v4345 = vpop.permute.xlu0 %4344
      %4346 = vrot.lane.b32.xlu0 %v4257, 32
      %v4347 = vpop.permute.xlu0 %4346
      %4348 = vrot.lane.b32.xlu0 %v4258, 32
      %v4349 = vpop.permute.xlu0 %4348
      %4350 = vrot.lane.b32.xlu0 %v4259, 32
      %v4351 = vpop.permute.xlu0 %4350
      %4352 = vrot.lane.b32.xlu0 %v4260, 32
      %v4353 = vpop.permute.xlu0 %4352
      %4354 = vrot.lane.b32.xlu0 %v4261, 32
      %v4355 = vpop.permute.xlu0 %4354
      %4356 = vrot.lane.b32.xlu0 %v4262, 32
      %v4357 = vpop.permute.xlu0 %4356
      %4358 = vrot.lane.b32.xlu0 %v4263, 32
      %v4359 = vpop.permute.xlu0 %4358
      %v4392 = vmul.f32 %v3688, %v4297
      %v4393 = vmul.f32 %v3689, %v4299
      %v4394 = vmul.f32 %v3690, %v4301
      %v4395 = vmul.f32 %v3691, %v4303
      %v4396 = vmul.f32 %v3692, %v4305
      %v4397 = vmul.f32 %v3693, %v4307
      %v4398 = vmul.f32 %v3694, %v4309
      %v4399 = vmul.f32 %v3695, %v4311
      %v4400 = vmul.f32 %v3696, %v4313
      %v4401 = vmul.f32 %v3697, %v4315
      %v4402 = vmul.f32 %v3698, %v4317
      %v4403 = vmul.f32 %v3699, %v4319
      %v4404 = vmul.f32 %v3700, %v4321
      %v4405 = vmul.f32 %v3701, %v4323
      %v4406 = vmul.f32 %v3702, %v4325
      %v4407 = vmul.f32 %v3703, %v4327
      %v4408 = vmul.f32 %v3704, %v4329
      %v4409 = vmul.f32 %v3705, %v4331
      %v4410 = vmul.f32 %v3706, %v4333
      %v4411 = vmul.f32 %v3707, %v4335
      %v4412 = vmul.f32 %v3708, %v4337
      %v4413 = vmul.f32 %v3709, %v4339
      %v4414 = vmul.f32 %v3710, %v4341
      %v4415 = vmul.f32 %v3711, %v4343
      %v4416 = vmul.f32 %v3712, %v4345
      %v4417 = vmul.f32 %v3713, %v4347
      %v4418 = vmul.f32 %v3714, %v4349
      %v4419 = vmul.f32 %v3715, %v4351
      %v4420 = vmul.f32 %v3716, %v4353
      %v4421 = vmul.f32 %v3717, %v4355
      %v4422 = vmul.f32 %v3718, %v4357
      %v4423 = vmul.f32 %v3719, %v4359
      %4456 = vrot.lane.b32.xlu0 %v4200, 64
      %v4457 = vpop.permute.xlu0 %4456
      %4458 = vrot.lane.b32.xlu0 %v4201, 64
      %v4459 = vpop.permute.xlu0 %4458
      %4460 = vrot.lane.b32.xlu0 %v4202, 64
      %v4461 = vpop.permute.xlu0 %4460
      %4462 = vrot.lane.b32.xlu0 %v4203, 64
      %v4463 = vpop.permute.xlu0 %4462
      %4464 = vrot.lane.b32.xlu0 %v4204, 64
      %v4465 = vpop.permute.xlu0 %4464
      %4466 = vrot.lane.b32.xlu0 %v4205, 64
      %v4467 = vpop.permute.xlu0 %4466
      %4468 = vrot.lane.b32.xlu0 %v4206, 64
      %v4469 = vpop.permute.xlu0 %4468
      %4470 = vrot.lane.b32.xlu0 %v4207, 64
      %v4471 = vpop.permute.xlu0 %4470
      %4472 = vrot.lane.b32.xlu0 %v4208, 64
      %v4473 = vpop.permute.xlu0 %4472
      %4474 = vrot.lane.b32.xlu0 %v4209, 64
      %v4475 = vpop.permute.xlu0 %4474
      %4476 = vrot.lane.b32.xlu0 %v4210, 64
      %v4477 = vpop.permute.xlu0 %4476
      %4478 = vrot.lane.b32.xlu0 %v4211, 64
      %v4479 = vpop.permute.xlu0 %4478
      %4480 = vrot.lane.b32.xlu0 %v4212, 64
      %v4481 = vpop.permute.xlu0 %4480
      %4482 = vrot.lane.b32.xlu0 %v4213, 64
      %v4483 = vpop.permute.xlu0 %4482
      %4484 = vrot.lane.b32.xlu0 %v4214, 64
      %v4485 = vpop.permute.xlu0 %4484
      %4486 = vrot.lane.b32.xlu0 %v4215, 64
      %v4487 = vpop.permute.xlu0 %4486
      %4488 = vrot.lane.b32.xlu0 %v4216, 64
      %v4489 = vpop.permute.xlu0 %4488
      %4490 = vrot.lane.b32.xlu0 %v4217, 64
      %v4491 = vpop.permute.xlu0 %4490
      %4492 = vrot.lane.b32.xlu0 %v4218, 64
      %v4493 = vpop.permute.xlu0 %4492
      %4494 = vrot.lane.b32.xlu0 %v4219, 64
      %v4495 = vpop.permute.xlu0 %4494
      %4496 = vrot.lane.b32.xlu0 %v4220, 64
      %v4497 = vpop.permute.xlu0 %4496
      %4498 = vrot.lane.b32.xlu0 %v4221, 64
      %v4499 = vpop.permute.xlu0 %4498
      %4500 = vrot.lane.b32.xlu0 %v4222, 64
      %v4501 = vpop.permute.xlu0 %4500
      %4502 = vrot.lane.b32.xlu0 %v4223, 64
      %v4503 = vpop.permute.xlu0 %4502
      %4504 = vrot.lane.b32.xlu0 %v4224, 64
      %v4505 = vpop.permute.xlu0 %4504
      %4506 = vrot.lane.b32.xlu0 %v4225, 64
      %v4507 = vpop.permute.xlu0 %4506
      %4508 = vrot.lane.b32.xlu0 %v4226, 64
      %v4509 = vpop.permute.xlu0 %4508
      %4510 = vrot.lane.b32.xlu0 %v4227, 64
      %v4511 = vpop.permute.xlu0 %4510
      %4512 = vrot.lane.b32.xlu0 %v4228, 64
      %v4513 = vpop.permute.xlu0 %4512
      %4514 = vrot.lane.b32.xlu0 %v4229, 64
      %v4515 = vpop.permute.xlu0 %4514
      %4516 = vrot.lane.b32.xlu0 %v4230, 64
      %v4517 = vpop.permute.xlu0 %4516
      %4518 = vrot.lane.b32.xlu0 %v4231, 64
      %v4519 = vpop.permute.xlu0 %4518
      %vm4552 = vcmask 261120
      %4553 = vst.msk [vmem:[%s257] sm:$0xff] %vm4552, %v4457
      %4554 = vst.msk [vmem:[%s257 + $0x8] sm:$0xff] %vm4552, %v4459
      %4555 = vst.msk [vmem:[%s257 + $0x10] sm:$0xff] %vm4552, %v4461
      %4556 = vst.msk [vmem:[%s257 + $0x18] sm:$0xff] %vm4552, %v4463
      %4557 = vst.msk [vmem:[%s257 + $0x20] sm:$0xff] %vm4552, %v4465
      %4558 = vst.msk [vmem:[%s257 + $0x28] sm:$0xff] %vm4552, %v4467
      %4559 = vst.msk [vmem:[%s257 + $0x30] sm:$0xff] %vm4552, %v4469
      %4560 = vst.msk [vmem:[%s257 + $0x38] sm:$0xff] %vm4552, %v4471
      %4561 = vst.msk [vmem:[%s257 + $0x40] sm:$0xff] %vm4552, %v4473
      %4562 = vst.msk [vmem:[%s257 + $0x48] sm:$0xff] %vm4552, %v4475
      %4563 = vst.msk [vmem:[%s257 + $0x50] sm:$0xff] %vm4552, %v4477
      %4564 = vst.msk [vmem:[%s257 + $0x58] sm:$0xff] %vm4552, %v4479
      %4565 = vst.msk [vmem:[%s257 + $0x60] sm:$0xff] %vm4552, %v4481
      %4566 = vst.msk [vmem:[%s257 + $0x68] sm:$0xff] %vm4552, %v4483
      %4567 = vst.msk [vmem:[%s257 + $0x70] sm:$0xff] %vm4552, %v4485
      %4568 = vst.msk [vmem:[%s257 + $0x78] sm:$0xff] %vm4552, %v4487
      %4569 = vst.msk [vmem:[%s257 + $0x80] sm:$0xff] %vm4552, %v4489
      %4570 = vst.msk [vmem:[%s257 + $0x88] sm:$0xff] %vm4552, %v4491
      %4571 = vst.msk [vmem:[%s257 + $0x90] sm:$0xff] %vm4552, %v4493
      %4572 = vst.msk [vmem:[%s257 + $0x98] sm:$0xff] %vm4552, %v4495
      %4573 = vst.msk [vmem:[%s257 + $0xa0] sm:$0xff] %vm4552, %v4497
      %4574 = vst.msk [vmem:[%s257 + $0xa8] sm:$0xff] %vm4552, %v4499
      %4575 = vst.msk [vmem:[%s257 + $0xb0] sm:$0xff] %vm4552, %v4501
      %4576 = vst.msk [vmem:[%s257 + $0xb8] sm:$0xff] %vm4552, %v4503
      %4577 = vst.msk [vmem:[%s257 + $0xc0] sm:$0xff] %vm4552, %v4505
      %4578 = vst.msk [vmem:[%s257 + $0xc8] sm:$0xff] %vm4552, %v4507
      %4579 = vst.msk [vmem:[%s257 + $0xd0] sm:$0xff] %vm4552, %v4509
      %4580 = vst.msk [vmem:[%s257 + $0xd8] sm:$0xff] %vm4552, %v4511
      %4581 = vst.msk [vmem:[%s257 + $0xe0] sm:$0xff] %vm4552, %v4513
      %4582 = vst.msk [vmem:[%s257 + $0xe8] sm:$0xff] %vm4552, %v4515
      %4583 = vst.msk [vmem:[%s257 + $0xf0] sm:$0xff] %vm4552, %v4517
      %4584 = vst.msk [vmem:[%s257 + $0xf8] sm:$0xff] %vm4552, %v4519
      %4617 = vrot.lane.b32.xlu0 %v4392, 32
      %v4618 = vpop.permute.xlu0 %4617
      %4619 = vrot.lane.b32.xlu0 %v4393, 32
      %v4620 = vpop.permute.xlu0 %4619
      %4621 = vrot.lane.b32.xlu0 %v4394, 32
      %v4622 = vpop.permute.xlu0 %4621
      %4623 = vrot.lane.b32.xlu0 %v4395, 32
      %v4624 = vpop.permute.xlu0 %4623
      %4625 = vrot.lane.b32.xlu0 %v4396, 32
      %v4626 = vpop.permute.xlu0 %4625
      %4627 = vrot.lane.b32.xlu0 %v4397, 32
      %v4628 = vpop.permute.xlu0 %4627
      %4629 = vrot.lane.b32.xlu0 %v4398, 32
      %v4630 = vpop.permute.xlu0 %4629
      %4631 = vrot.lane.b32.xlu0 %v4399, 32
      %v4632 = vpop.permute.xlu0 %4631
      %4633 = vrot.lane.b32.xlu0 %v4400, 32
      %v4634 = vpop.permute.xlu0 %4633
      %4635 = vrot.lane.b32.xlu0 %v4401, 32
      %v4636 = vpop.permute.xlu0 %4635
      %4637 = vrot.lane.b32.xlu0 %v4402, 32
      %v4638 = vpop.permute.xlu0 %4637
      %4639 = vrot.lane.b32.xlu0 %v4403, 32
      %v4640 = vpop.permute.xlu0 %4639
      %4641 = vrot.lane.b32.xlu0 %v4404, 32
      %v4642 = vpop.permute.xlu0 %4641
      %4643 = vrot.lane.b32.xlu0 %v4405, 32
      %v4644 = vpop.permute.xlu0 %4643
      %4645 = vrot.lane.b32.xlu0 %v4406, 32
      %v4646 = vpop.permute.xlu0 %4645
      %4647 = vrot.lane.b32.xlu0 %v4407, 32
      %v4648 = vpop.permute.xlu0 %4647
      %4649 = vrot.lane.b32.xlu0 %v4408, 32
      %v4650 = vpop.permute.xlu0 %4649
      %4651 = vrot.lane.b32.xlu0 %v4409, 32
      %v4652 = vpop.permute.xlu0 %4651
      %4653 = vrot.lane.b32.xlu0 %v4410, 32
      %v4654 = vpop.permute.xlu0 %4653
      %4655 = vrot.lane.b32.xlu0 %v4411, 32
      %v4656 = vpop.permute.xlu0 %4655
      %4657 = vrot.lane.b32.xlu0 %v4412, 32
      %v4658 = vpop.permute.xlu0 %4657
      %4659 = vrot.lane.b32.xlu0 %v4413, 32
      %v4660 = vpop.permute.xlu0 %4659
      %4661 = vrot.lane.b32.xlu0 %v4414, 32
      %v4662 = vpop.permute.xlu0 %4661
      %4663 = vrot.lane.b32.xlu0 %v4415, 32
      %v4664 = vpop.permute.xlu0 %4663
      %4665 = vrot.lane.b32.xlu0 %v4416, 32
      %v4666 = vpop.permute.xlu0 %4665
      %4667 = vrot.lane.b32.xlu0 %v4417, 32
      %v4668 = vpop.permute.xlu0 %4667
      %4669 = vrot.lane.b32.xlu0 %v4418, 32
      %v4670 = vpop.permute.xlu0 %4669
      %4671 = vrot.lane.b32.xlu0 %v4419, 32
      %v4672 = vpop.permute.xlu0 %4671
      %4673 = vrot.lane.b32.xlu0 %v4420, 32
      %v4674 = vpop.permute.xlu0 %4673
      %4675 = vrot.lane.b32.xlu0 %v4421, 32
      %v4676 = vpop.permute.xlu0 %4675
      %4677 = vrot.lane.b32.xlu0 %v4422, 32
      %v4678 = vpop.permute.xlu0 %4677
      %4679 = vrot.lane.b32.xlu0 %v4423, 32
      %v4680 = vpop.permute.xlu0 %4679
      %4713 = vst.msk [vmem:[%s252] sm:$0xff] %vm4552, %v4618
      %4714 = vst.msk [vmem:[%s252 + $0x8] sm:$0xff] %vm4552, %v4620
      %4715 = vst.msk [vmem:[%s252 + $0x10] sm:$0xff] %vm4552, %v4622
      %4716 = vst.msk [vmem:[%s252 + $0x18] sm:$0xff] %vm4552, %v4624
      %4717 = vst.msk [vmem:[%s252 + $0x20] sm:$0xff] %vm4552, %v4626
      %4718 = vst.msk [vmem:[%s252 + $0x28] sm:$0xff] %vm4552, %v4628
      %4719 = vst.msk [vmem:[%s252 + $0x30] sm:$0xff] %vm4552, %v4630
      %4720 = vst.msk [vmem:[%s252 + $0x38] sm:$0xff] %vm4552, %v4632
      %4721 = vst.msk [vmem:[%s252 + $0x40] sm:$0xff] %vm4552, %v4634
      %4722 = vst.msk [vmem:[%s252 + $0x48] sm:$0xff] %vm4552, %v4636
      %4723 = vst.msk [vmem:[%s252 + $0x50] sm:$0xff] %vm4552, %v4638
      %4724 = vst.msk [vmem:[%s252 + $0x58] sm:$0xff] %vm4552, %v4640
      %4725 = vst.msk [vmem:[%s252 + $0x60] sm:$0xff] %vm4552, %v4642
      %4726 = vst.msk [vmem:[%s252 + $0x68] sm:$0xff] %vm4552, %v4644
      %4727 = vst.msk [vmem:[%s252 + $0x70] sm:$0xff] %vm4552, %v4646
      %4728 = vst.msk [vmem:[%s252 + $0x78] sm:$0xff] %vm4552, %v4648
      %4729 = vst.msk [vmem:[%s252 + $0x80] sm:$0xff] %vm4552, %v4650
      %4730 = vst.msk [vmem:[%s252 + $0x88] sm:$0xff] %vm4552, %v4652
      %4731 = vst.msk [vmem:[%s252 + $0x90] sm:$0xff] %vm4552, %v4654
      %4732 = vst.msk [vmem:[%s252 + $0x98] sm:$0xff] %vm4552, %v4656
      %4733 = vst.msk [vmem:[%s252 + $0xa0] sm:$0xff] %vm4552, %v4658
      %4734 = vst.msk [vmem:[%s252 + $0xa8] sm:$0xff] %vm4552, %v4660
      %4735 = vst.msk [vmem:[%s252 + $0xb0] sm:$0xff] %vm4552, %v4662
      %4736 = vst.msk [vmem:[%s252 + $0xb8] sm:$0xff] %vm4552, %v4664
      %4737 = vst.msk [vmem:[%s252 + $0xc0] sm:$0xff] %vm4552, %v4666
      %4738 = vst.msk [vmem:[%s252 + $0xc8] sm:$0xff] %vm4552, %v4668
      %4739 = vst.msk [vmem:[%s252 + $0xd0] sm:$0xff] %vm4552, %v4670
      %4740 = vst.msk [vmem:[%s252 + $0xd8] sm:$0xff] %vm4552, %v4672
      %4741 = vst.msk [vmem:[%s252 + $0xe0] sm:$0xff] %vm4552, %v4674
      %4742 = vst.msk [vmem:[%s252 + $0xe8] sm:$0xff] %vm4552, %v4676
      %4743 = vst.msk [vmem:[%s252 + $0xf0] sm:$0xff] %vm4552, %v4678
      %4744 = vst.msk [vmem:[%s252 + $0xf8] sm:$0xff] %vm4552, %v4680
      %v4745 = vld [vmem:[%s242 + $0x80] sm:$0xf]
      %v4746 = vld [vmem:[%s242 + $0x84] sm:$0xf]
      %v4747 = vld [vmem:[%s242 + $0x88] sm:$0xf]
      %v4748 = vld [vmem:[%s242 + $0x8c] sm:$0xf]
      %v4749 = vld [vmem:[%s2] sm:$0xf]
      %v4750 = vld [vmem:[%s2 + $0x4] sm:$0xf]
      %v4751 = vld [vmem:[%s2 + $0x8] sm:$0xf]
      %v4752 = vld [vmem:[%s2 + $0xc] sm:$0xf]
      %v4753 = vld [vmem:[%s2 + $0x10] sm:$0xf]
      %v4754 = vld [vmem:[%s2 + $0x14] sm:$0xf]
      %v4755 = vld [vmem:[%s242 + $0x90] sm:$0x1]
      %v4756 = vld [vmem:[%s304] sm:$0xf]
      %v4757 = vld [vmem:[%s304 + $0x4] sm:$0xf]
      %v4758 = vld [vmem:[%s304 + $0x8] sm:$0xf]
      %v4759 = vld [vmem:[%s304 + $0xc] sm:$0xf]
      %v4760 = vld [vmem:[%s304 + $0x10] sm:$0xf]
      %v4761 = vld [vmem:[%s304 + $0x14] sm:$0xf]
      %v4767 = vunpack.c.l.b16 %v4745
      %v4768 = vunpack.c.l.b16 %v4746
      %v4769 = vunpack.c.l.b16 %v4747
      %v4770 = vunpack.c.l.b16 %v4748
      %v4771 = vunpack.c.l.b16 %v4755
      %v4772 = vpack.c.b16 %v4768, %v4767
      %v4773 = vpack.c.b16 %v4770, %v4769
      %v4774 = vpack.c.b16 %v4771, %v4771
      %v4776 = vshrl.u32 %v4772, 16
      %v4778 = vshll.u32 %v4772, 16
      %v4780 = vrot.slane %v4778, 1
      %v4781 = vor.u32 %v4776, %v4780
      %v4783 = vshll.u32 %v4773, 16
      %v4785 = vrot.slane %v4783, 1
      %v4786 = vsel %vm394, %v4781, %v4785
      %v4787 = vshrl.u32 %v4773, 16
      %v4789 = vor.u32 %v4787, %v4785
      %v4791 = vshll.u32 %v4774, 16
      %v4793 = vrot.slane %v4791, 1
      %v4794 = vsel %vm394, %v4789, %v4793
      %v4801 = vunpack.c.l.b16 %v4756
      %v4802 = vunpack.c.l.b16 %v4757
      %v4803 = vunpack.c.l.b16 %v4758
      %v4804 = vunpack.c.l.b16 %v4759
      %v4805 = vunpack.c.l.b16 %v4760
      %v4806 = vunpack.c.l.b16 %v4761
      %v4807 = vpack.c.b16 %v4802, %v4801
      %v4808 = vpack.c.b16 %v4804, %v4803
      %v4809 = vpack.c.b16 %v4806, %v4805
      %v4814 = vsel %vm545, %v4786, 0
      %v4817 = vsel %vm545, %v4794, 0
      %4819 = vmatprep.subr.bf16.mxu0 0
      %4820 = vmatpush1.bf16.msra.mxu0 0
      %4821 = vmatprep.subr.bf16.mxu0 0
      %4822 = vmatpush1.bf16.msra.mxu0 0
      %4823 = vmatprep.subr.bf16.mxu0 0
      %4824 = vmatpush1.bf16.msra.mxu0 0
      %4825 = vmatprep.subr.bf16.mxu0 0
      %4826 = vmatpush1.bf16.msra.mxu0 0
      %4827 = vmatprep.subr.bf16.mxu0 0
      %4828 = vmatpush1.bf16.msra.mxu0 0
      %4829 = vmatprep.subr.bf16.mxu0 0
      %4830 = vmatpush1.bf16.msra.mxu0 %v4809
      %4831 = vmatprep.subr.bf16.mxu0 0
      %4832 = vmatpush1.bf16.msra.mxu0 %v4808
      %4833 = vmatprep.subr.bf16.mxu0 0
      %4834 = vmatpush1.bf16.msra.mxu0 %v4807
      %4835 = vmatprep.subr.bf16.mxu0 0
      %4836 = vmatpush2.bf16.msra.mxu0 0
      %4837 = vmatprep.subr.bf16.mxu0 0
      %4838 = vmatpush2.bf16.msra.mxu0 0
      %4839 = vmatprep.subr.bf16.mxu0 0
      %4840 = vmatpush2.bf16.msra.mxu0 0
      %4841 = vmatprep.subr.bf16.mxu0 0
      %4842 = vmatpush2.bf16.msra.mxu0 0
      %4843 = vmatprep.subr.bf16.mxu0 0
      %4844 = vmatpush2.bf16.msra.mxu0 0
      %4845 = vmatprep.subr.bf16.mxu0 0
      %4846 = vmatpush2.bf16.msra.mxu0 0
      %4847 = vmatprep.subr.bf16.mxu0 0
      %4848 = vmatpush2.bf16.msra.mxu0 0
      %4849 = vmatprep.subr.bf16.mxu0 0
      %4850 = vmatpush2.bf16.msra.mxu0 0
      %4851 = vmatprep.mubr.bf16.mxu0 0
      %4852 = vmatmul.mubr.bf16.gmra.mxu0 %v4814
      %v4853 = vpop.f32.mrf.mxu0
      %v4854 = vadd.f32 0.0, %v4853
      %v4855 = vpop.f32.mrf.mxu0
      %v4856 = vpop.f32.mrf.mxu0
      %v4857 = vadd.f32 0.0, %v4856
      %v4858 = vpop.f32.mrf.mxu0
      %4859 = vmatprep.mubr.bf16.mxu0 0
      %4860 = vmatmul.mubr.bf16.gmra.mxu0 %v4817
      %v4861 = vpop.f32.mrf.mxu0
      %v4862 = vadd.f32 0.0, %v4861
      %v4863 = vpop.f32.mrf.mxu0
      %v4864 = vpop.f32.mrf.mxu0
      %v4865 = vadd.f32 0.0, %v4864
      %v4866 = vpop.f32.mrf.mxu0
      %4867 = vdwg.mxu0
      %v4874 = vunpack.c.l.b16 %v4749
      %v4875 = vunpack.c.l.b16 %v4750
      %v4876 = vunpack.c.l.b16 %v4751
      %v4877 = vunpack.c.l.b16 %v4752
      %v4878 = vunpack.c.l.b16 %v4753
      %v4879 = vunpack.c.l.b16 %v4754
      %v4880 = vpack.c.b16 %v4875, %v4874
      %v4881 = vpack.c.b16 %v4877, %v4876
      %v4882 = vpack.c.b16 %v4879, %v4878
      %v4886 = vsel %vm545, %v4772, 0
      %v4888 = vsel %vm545, %v4773, 0
      %4890 = vmatprep.subr.bf16.mxu0 0
      %4891 = vmatpush1.bf16.msra.mxu0 0
      %4892 = vmatprep.subr.bf16.mxu0 0
      %4893 = vmatpush1.bf16.msra.mxu0 0
      %4894 = vmatprep.subr.bf16.mxu0 0
      %4895 = vmatpush1.bf16.msra.mxu0 0
      %4896 = vmatprep.subr.bf16.mxu0 0
      %4897 = vmatpush1.bf16.msra.mxu0 0
      %4898 = vmatprep.subr.bf16.mxu0 0
      %4899 = vmatpush1.bf16.msra.mxu0 0
      %4900 = vmatprep.subr.bf16.mxu0 0
      %4901 = vmatpush1.bf16.msra.mxu0 %v4882
      %4902 = vmatprep.subr.bf16.mxu0 0
      %4903 = vmatpush1.bf16.msra.mxu0 %v4881
      %4904 = vmatprep.subr.bf16.mxu0 0
      %4905 = vmatpush1.bf16.msra.mxu0 %v4880
      %4906 = vmatprep.subr.bf16.mxu0 0
      %4907 = vmatpush2.bf16.msra.mxu0 0
      %4908 = vmatprep.subr.bf16.mxu0 0
      %4909 = vmatpush2.bf16.msra.mxu0 0
      %4910 = vmatprep.subr.bf16.mxu0 0
      %4911 = vmatpush2.bf16.msra.mxu0 0
      %4912 = vmatprep.subr.bf16.mxu0 0
      %4913 = vmatpush2.bf16.msra.mxu0 0
      %4914 = vmatprep.subr.bf16.mxu0 0
      %4915 = vmatpush2.bf16.msra.mxu0 0
      %4916 = vmatprep.subr.bf16.mxu0 0
      %4917 = vmatpush2.bf16.msra.mxu0 0
      %4918 = vmatprep.subr.bf16.mxu0 0
      %4919 = vmatpush2.bf16.msra.mxu0 0
      %4920 = vmatprep.subr.bf16.mxu0 0
      %4921 = vmatpush2.bf16.msra.mxu0 0
      %4922 = vmatprep.mubr.bf16.mxu0 0
      %4923 = vmatmul.mubr.bf16.gmra.mxu0 %v4886
      %v4924 = vpop.f32.mrf.mxu0
      %v4925 = vadd.f32 %v4854, %v4924
      %v4926 = vpop.f32.mrf.mxu0
      %v4927 = vpop.f32.mrf.mxu0
      %v4928 = vadd.f32 %v4857, %v4927
      %v4929 = vpop.f32.mrf.mxu0
      %4930 = vmatprep.mubr.bf16.mxu0 0
      %4931 = vmatmul.mubr.bf16.gmra.mxu0 %v4888
      %v4932 = vpop.f32.mrf.mxu0
      %v4933 = vadd.f32 %v4862, %v4932
      %v4934 = vpop.f32.mrf.mxu0
      %v4935 = vpop.f32.mrf.mxu0
      %v4936 = vadd.f32 %v4865, %v4935
      %v4937 = vpop.f32.mrf.mxu0
      %4938 = vdwg.mxu0
      %v4939 = vld [vmem:[%s242 + $0x80] sm:$0xe]
      %v4940 = vld [vmem:[%s967] sm:$0xf]
      %v4941 = vld [vmem:[%s967 + $0x4] sm:$0xf]
      %v4942 = vld [vmem:[%s967 + $0x8] sm:$0xf]
      %v4943 = vld [vmem:[%s967 + $0xc] sm:$0xf]
      %v4944 = vld [vmem:[%s967 + $0x10] sm:$0xf]
      %v4945 = vld [vmem:[%s967 + $0x14] sm:$0xf]
      %v4947 = vunpack.c.l.b16 %v4939
      %v4948 = vpack.c.b16 %v4768, %v4947
      %v4949 = vrot.slane %v4948, 1
      %v4950 = vrot.slane %v4773, 1
      %v4951 = vsel %vm977, %v4949, %v4950
      %v4952 = vrot.slane %v4774, 1
      %v4953 = vsel %vm977, %v4950, %v4952
      %v4960 = vunpack.c.l.b16 %v4940
      %v4961 = vunpack.c.l.b16 %v4941
      %v4962 = vunpack.c.l.b16 %v4942
      %v4963 = vunpack.c.l.b16 %v4943
      %v4964 = vunpack.c.l.b16 %v4944
      %v4965 = vunpack.c.l.b16 %v4945
      %v4966 = vpack.c.b16 %v4961, %v4960
      %v4967 = vpack.c.b16 %v4963, %v4962
      %v4968 = vpack.c.b16 %v4965, %v4964
      %v4973 = vsel %vm545, %v4951, 0
      %v4976 = vsel %vm545, %v4953, 0
      %4978 = vmatprep.subr.bf16.mxu0 0
      %4979 = vmatpush1.bf16.msra.mxu0 0
      %4980 = vmatprep.subr.bf16.mxu0 0
      %4981 = vmatpush1.bf16.msra.mxu0 0
      %4982 = vmatprep.subr.bf16.mxu0 0
      %4983 = vmatpush1.bf16.msra.mxu0 0
      %4984 = vmatprep.subr.bf16.mxu0 0
      %4985 = vmatpush1.bf16.msra.mxu0 0
      %4986 = vmatprep.subr.bf16.mxu0 0
      %4987 = vmatpush1.bf16.msra.mxu0 0
      %4988 = vmatprep.subr.bf16.mxu0 0
      %4989 = vmatpush1.bf16.msra.mxu0 %v4968
      %4990 = vmatprep.subr.bf16.mxu0 0
      %4991 = vmatpush1.bf16.msra.mxu0 %v4967
      %4992 = vmatprep.subr.bf16.mxu0 0
      %4993 = vmatpush1.bf16.msra.mxu0 %v4966
      %4994 = vmatprep.subr.bf16.mxu0 0
      %4995 = vmatpush2.bf16.msra.mxu0 0
      %4996 = vmatprep.subr.bf16.mxu0 0
      %4997 = vmatpush2.bf16.msra.mxu0 0
      %4998 = vmatprep.subr.bf16.mxu0 0
      %4999 = vmatpush2.bf16.msra.mxu0 0
      %5000 = vmatprep.subr.bf16.mxu0 0
      %5001 = vmatpush2.bf16.msra.mxu0 0
      %5002 = vmatprep.subr.bf16.mxu0 0
      %5003 = vmatpush2.bf16.msra.mxu0 0
      %5004 = vmatprep.subr.bf16.mxu0 0
      %5005 = vmatpush2.bf16.msra.mxu0 0
      %5006 = vmatprep.subr.bf16.mxu0 0
      %5007 = vmatpush2.bf16.msra.mxu0 0
      %5008 = vmatprep.subr.bf16.mxu0 0
      %5009 = vmatpush2.bf16.msra.mxu0 0
      %5010 = vmatprep.mubr.bf16.mxu0 0
      %5011 = vmatmul.mubr.bf16.gmra.mxu0 %v4973
      %v5012 = vpop.f32.mrf.mxu0
      %v5013 = vadd.f32 0.0, %v5012
      %v5014 = vpop.f32.mrf.mxu0
      %v5015 = vpop.f32.mrf.mxu0
      %v5016 = vadd.f32 0.0, %v5015
      %v5017 = vpop.f32.mrf.mxu0
      %5018 = vmatprep.mubr.bf16.mxu0 0
      %5019 = vmatmul.mubr.bf16.gmra.mxu0 %v4976
      %v5020 = vpop.f32.mrf.mxu0
      %v5021 = vadd.f32 0.0, %v5020
      %v5022 = vpop.f32.mrf.mxu0
      %v5023 = vpop.f32.mrf.mxu0
      %v5024 = vadd.f32 0.0, %v5023
      %v5025 = vpop.f32.mrf.mxu0
      %5026 = vdwg.mxu0
      %v5027 = vadd.f32 %v4925, %v5013
      %v5028 = vadd.f32 %v4928, %v5016
      %v5029 = vadd.f32 %v4933, %v5021
      %v5030 = vadd.f32 %v4936, %v5024
      %v5031 = vld [vmem:[%s242 + $0x88] sm:$0xe]
      %v5032 = vld [vmem:[%s242 + $0x8c] sm:$0xf]
      %v5033 = vld [vmem:[%s242 + $0x90] sm:$0xf]
      %v5034 = vld [vmem:[%s242 + $0x94] sm:$0xf]
      %v5035 = vld [vmem:[%s242 + $0x98] sm:$0x1]
      %v5036 = vld [vmem:[%s1303] sm:$0xf]
      %v5037 = vld [vmem:[%s1303 + $0x4] sm:$0xf]
      %v5038 = vld [vmem:[%s1303 + $0x8] sm:$0xf]
      %v5039 = vld [vmem:[%s1303 + $0xc] sm:$0xf]
      %v5040 = vld [vmem:[%s1303 + $0x10] sm:$0xf]
      %v5041 = vld [vmem:[%s1303 + $0x14] sm:$0xf]
      %v5047 = vunpack.c.l.b16 %v5031
      %v5048 = vunpack.c.l.b16 %v5032
      %v5049 = vunpack.c.l.b16 %v5033
      %v5050 = vunpack.c.l.b16 %v5034
      %v5051 = vunpack.c.l.b16 %v5035
      %v5052 = vpack.c.b16 %v5048, %v5047
      %v5053 = vpack.c.b16 %v5050, %v5049
      %v5054 = vpack.c.b16 %v5051, %v5051
      %v5055 = vrot.slane %v5052, 1
      %v5056 = vrot.slane %v5053, 1
      %v5057 = vsel %vm977, %v5055, %v5056
      %v5058 = vrot.slane %v5054, 1
      %v5059 = vsel %vm977, %v5056, %v5058
      %v5066 = vunpack.c.l.b16 %v5036
      %v5067 = vunpack.c.l.b16 %v5037
      %v5068 = vunpack.c.l.b16 %v5038
      %v5069 = vunpack.c.l.b16 %v5039
      %v5070 = vunpack.c.l.b16 %v5040
      %v5071 = vunpack.c.l.b16 %v5041
      %v5072 = vpack.c.b16 %v5067, %v5066
      %v5073 = vpack.c.b16 %v5069, %v5068
      %v5074 = vpack.c.b16 %v5071, %v5070
      %v5079 = vsel %vm545, %v5057, 0
      %v5082 = vsel %vm545, %v5059, 0
      %5084 = vmatprep.subr.bf16.mxu0 0
      %5085 = vmatpush1.bf16.msra.mxu0 0
      %5086 = vmatprep.subr.bf16.mxu0 0
      %5087 = vmatpush1.bf16.msra.mxu0 0
      %5088 = vmatprep.subr.bf16.mxu0 0
      %5089 = vmatpush1.bf16.msra.mxu0 0
      %5090 = vmatprep.subr.bf16.mxu0 0
      %5091 = vmatpush1.bf16.msra.mxu0 0
      %5092 = vmatprep.subr.bf16.mxu0 0
      %5093 = vmatpush1.bf16.msra.mxu0 0
      %5094 = vmatprep.subr.bf16.mxu0 0
      %5095 = vmatpush1.bf16.msra.mxu0 %v5074
      %5096 = vmatprep.subr.bf16.mxu0 0
      %5097 = vmatpush1.bf16.msra.mxu0 %v5073
      %5098 = vmatprep.subr.bf16.mxu0 0
      %5099 = vmatpush1.bf16.msra.mxu0 %v5072
      %5100 = vmatprep.subr.bf16.mxu0 0
      %5101 = vmatpush2.bf16.msra.mxu0 0
      %5102 = vmatprep.subr.bf16.mxu0 0
      %5103 = vmatpush2.bf16.msra.mxu0 0
      %5104 = vmatprep.subr.bf16.mxu0 0
      %5105 = vmatpush2.bf16.msra.mxu0 0
      %5106 = vmatprep.subr.bf16.mxu0 0
      %5107 = vmatpush2.bf16.msra.mxu0 0
      %5108 = vmatprep.subr.bf16.mxu0 0
      %5109 = vmatpush2.bf16.msra.mxu0 0
      %5110 = vmatprep.subr.bf16.mxu0 0
      %5111 = vmatpush2.bf16.msra.mxu0 0
      %5112 = vmatprep.subr.bf16.mxu0 0
      %5113 = vmatpush2.bf16.msra.mxu0 0
      %5114 = vmatprep.subr.bf16.mxu0 0
      %5115 = vmatpush2.bf16.msra.mxu0 0
      %5116 = vmatprep.mubr.bf16.mxu0 0
      %5117 = vmatmul.mubr.bf16.gmra.mxu0 %v5079
      %v5118 = vpop.f32.mrf.mxu0
      %v5119 = vadd.f32 0.0, %v5118
      %v5120 = vpop.f32.mrf.mxu0
      %v5121 = vpop.f32.mrf.mxu0
      %v5122 = vadd.f32 0.0, %v5121
      %v5123 = vpop.f32.mrf.mxu0
      %5124 = vmatprep.mubr.bf16.mxu0 0
      %5125 = vmatmul.mubr.bf16.gmra.mxu0 %v5082
      %v5126 = vpop.f32.mrf.mxu0
      %v5127 = vadd.f32 0.0, %v5126
      %v5128 = vpop.f32.mrf.mxu0
      %v5129 = vpop.f32.mrf.mxu0
      %v5130 = vadd.f32 0.0, %v5129
      %v5131 = vpop.f32.mrf.mxu0
      %5132 = vdwg.mxu0
      %v5133 = vadd.f32 %v5027, %v5119
      %v5134 = vadd.f32 %v5028, %v5122
      %v5135 = vadd.f32 %v5029, %v5127
      %v5136 = vadd.f32 %v5030, %v5130
      %v5137 = vld [vmem:[%s242 + $0x98] sm:$0x3]
      %v5138 = vld [vmem:[%s1686] sm:$0xf]
      %v5139 = vld [vmem:[%s1686 + $0x4] sm:$0xf]
      %v5140 = vld [vmem:[%s1686 + $0x8] sm:$0xf]
      %v5141 = vld [vmem:[%s1686 + $0xc] sm:$0xf]
      %v5142 = vld [vmem:[%s1686 + $0x10] sm:$0xf]
      %v5143 = vld [vmem:[%s1686 + $0x14] sm:$0xf]
      %v5145 = vunpack.c.l.b16 %v5137
      %v5146 = vpack.c.b16 %v5145, %v5145
      %v5148 = vshrl.u32 %v5052, 16
      %v5150 = vrot.slane %v5148, 1
      %v5151 = vshll.u32 %v5052, 16
      %v5153 = vrot.slane %v5151, 2
      %v5154 = vor.u32 %v5150, %v5153
      %v5156 = vshrl.u32 %v5053, 16
      %v5158 = vrot.slane %v5156, 1
      %v5159 = vshll.u32 %v5053, 16
      %v5161 = vrot.slane %v5159, 2
      %v5162 = vor.u32 %v5158, %v5161
      %v5163 = vsel %vm1696, %v5154, %v5162
      %v5165 = vshrl.u32 %v5146, 16
      %v5167 = vrot.slane %v5165, 1
      %v5168 = vshll.u32 %v5146, 16
      %v5170 = vrot.slane %v5168, 2
      %v5171 = vor.u32 %v5167, %v5170
      %v5172 = vsel %vm1696, %v5162, %v5171
      %v5179 = vunpack.c.l.b16 %v5138
      %v5180 = vunpack.c.l.b16 %v5139
      %v5181 = vunpack.c.l.b16 %v5140
      %v5182 = vunpack.c.l.b16 %v5141
      %v5183 = vunpack.c.l.b16 %v5142
      %v5184 = vunpack.c.l.b16 %v5143
      %v5185 = vpack.c.b16 %v5180, %v5179
      %v5186 = vpack.c.b16 %v5182, %v5181
      %v5187 = vpack.c.b16 %v5184, %v5183
      %v5192 = vsel %vm545, %v5163, 0
      %v5195 = vsel %vm545, %v5172, 0
      %5197 = vmatprep.subr.bf16.mxu0 0
      %5198 = vmatpush1.bf16.msra.mxu0 0
      %5199 = vmatprep.subr.bf16.mxu0 0
      %5200 = vmatpush1.bf16.msra.mxu0 0
      %5201 = vmatprep.subr.bf16.mxu0 0
      %5202 = vmatpush1.bf16.msra.mxu0 0
      %5203 = vmatprep.subr.bf16.mxu0 0
      %5204 = vmatpush1.bf16.msra.mxu0 0
      %5205 = vmatprep.subr.bf16.mxu0 0
      %5206 = vmatpush1.bf16.msra.mxu0 0
      %5207 = vmatprep.subr.bf16.mxu0 0
      %5208 = vmatpush1.bf16.msra.mxu0 %v5187
      %5209 = vmatprep.subr.bf16.mxu0 0
      %5210 = vmatpush1.bf16.msra.mxu0 %v5186
      %5211 = vmatprep.subr.bf16.mxu0 0
      %5212 = vmatpush1.bf16.msra.mxu0 %v5185
      %5213 = vmatprep.subr.bf16.mxu0 0
      %5214 = vmatpush2.bf16.msra.mxu0 0
      %5215 = vmatprep.subr.bf16.mxu0 0
      %5216 = vmatpush2.bf16.msra.mxu0 0
      %5217 = vmatprep.subr.bf16.mxu0 0
      %5218 = vmatpush2.bf16.msra.mxu0 0
      %5219 = vmatprep.subr.bf16.mxu0 0
      %5220 = vmatpush2.bf16.msra.mxu0 0
      %5221 = vmatprep.subr.bf16.mxu0 0
      %5222 = vmatpush2.bf16.msra.mxu0 0
      %5223 = vmatprep.subr.bf16.mxu0 0
      %5224 = vmatpush2.bf16.msra.mxu0 0
      %5225 = vmatprep.subr.bf16.mxu0 0
      %5226 = vmatpush2.bf16.msra.mxu0 0
      %5227 = vmatprep.subr.bf16.mxu0 0
      %5228 = vmatpush2.bf16.msra.mxu0 0
      %5229 = vmatprep.mubr.bf16.mxu0 0
      %5230 = vmatmul.mubr.bf16.gmra.mxu0 %v5192
      %v5231 = vpop.f32.mrf.mxu0
      %v5232 = vadd.f32 0.0, %v5231
      %v5233 = vpop.f32.mrf.mxu0
      %v5234 = vpop.f32.mrf.mxu0
      %v5235 = vadd.f32 0.0, %v5234
      %v5236 = vpop.f32.mrf.mxu0
      %5237 = vmatprep.mubr.bf16.mxu0 0
      %5238 = vmatmul.mubr.bf16.gmra.mxu0 %v5195
      %v5239 = vpop.f32.mrf.mxu0
      %v5240 = vadd.f32 0.0, %v5239
      %v5241 = vpop.f32.mrf.mxu0
      %v5242 = vpop.f32.mrf.mxu0
      %v5243 = vadd.f32 0.0, %v5242
      %v5244 = vpop.f32.mrf.mxu0
      %5245 = vdwg.mxu0
      %v5246 = vadd.f32 %v5133, %v5232
      %v5247 = vadd.f32 %v5134, %v5235
      %v5248 = vadd.f32 %v5135, %v5240
      %v5249 = vadd.f32 %v5136, %v5243
      %v5250 = vld [vmem:[%s242 + $0x88] sm:$0xc]
      %v5251 = vld [vmem:[%s2109] sm:$0xf]
      %v5252 = vld [vmem:[%s2109 + $0x4] sm:$0xf]
      %v5253 = vld [vmem:[%s2109 + $0x8] sm:$0xf]
      %v5254 = vld [vmem:[%s2109 + $0xc] sm:$0xf]
      %v5255 = vld [vmem:[%s2109 + $0x10] sm:$0xf]
      %v5256 = vld [vmem:[%s2109 + $0x14] sm:$0xf]
      %v5258 = vunpack.c.l.b16 %v5250
      %v5259 = vpack.c.b16 %v5048, %v5258
      %v5260 = vrot.slane %v5259, 2
      %v5261 = vrot.slane %v5053, 2
      %v5262 = vsel %vm2119, %v5260, %v5261
      %v5263 = vrot.slane %v5146, 2
      %v5264 = vsel %vm2119, %v5261, %v5263
      %v5271 = vunpack.c.l.b16 %v5251
      %v5272 = vunpack.c.l.b16 %v5252
      %v5273 = vunpack.c.l.b16 %v5253
      %v5274 = vunpack.c.l.b16 %v5254
      %v5275 = vunpack.c.l.b16 %v5255
      %v5276 = vunpack.c.l.b16 %v5256
      %v5277 = vpack.c.b16 %v5272, %v5271
      %v5278 = vpack.c.b16 %v5274, %v5273
      %v5279 = vpack.c.b16 %v5276, %v5275
      %v5284 = vsel %vm545, %v5262, 0
      %v5287 = vsel %vm545, %v5264, 0
      %5289 = vmatprep.subr.bf16.mxu0 0
      %5290 = vmatpush1.bf16.msra.mxu0 0
      %5291 = vmatprep.subr.bf16.mxu0 0
      %5292 = vmatpush1.bf16.msra.mxu0 0
      %5293 = vmatprep.subr.bf16.mxu0 0
      %5294 = vmatpush1.bf16.msra.mxu0 0
      %5295 = vmatprep.subr.bf16.mxu0 0
      %5296 = vmatpush1.bf16.msra.mxu0 0
      %5297 = vmatprep.subr.bf16.mxu0 0
      %5298 = vmatpush1.bf16.msra.mxu0 0
      %5299 = vmatprep.subr.bf16.mxu0 0
      %5300 = vmatpush1.bf16.msra.mxu0 %v5279
      %5301 = vmatprep.subr.bf16.mxu0 0
      %5302 = vmatpush1.bf16.msra.mxu0 %v5278
      %5303 = vmatprep.subr.bf16.mxu0 0
      %5304 = vmatpush1.bf16.msra.mxu0 %v5277
      %5305 = vmatprep.subr.bf16.mxu0 0
      %5306 = vmatpush2.bf16.msra.mxu0 0
      %5307 = vmatprep.subr.bf16.mxu0 0
      %5308 = vmatpush2.bf16.msra.mxu0 0
      %5309 = vmatprep.subr.bf16.mxu0 0
      %5310 = vmatpush2.bf16.msra.mxu0 0
      %5311 = vmatprep.subr.bf16.mxu0 0
      %5312 = vmatpush2.bf16.msra.mxu0 0
      %5313 = vmatprep.subr.bf16.mxu0 0
      %5314 = vmatpush2.bf16.msra.mxu0 0
      %5315 = vmatprep.subr.bf16.mxu0 0
      %5316 = vmatpush2.bf16.msra.mxu0 0
      %5317 = vmatprep.subr.bf16.mxu0 0
      %5318 = vmatpush2.bf16.msra.mxu0 0
      %5319 = vmatprep.subr.bf16.mxu0 0
      %5320 = vmatpush2.bf16.msra.mxu0 0
      %5321 = vmatprep.mubr.bf16.mxu0 0
      %5322 = vmatmul.mubr.bf16.gmra.mxu0 %v5284
      %v5323 = vpop.f32.mrf.mxu0
      %v5324 = vadd.f32 0.0, %v5323
      %v5325 = vpop.f32.mrf.mxu0
      %v5326 = vpop.f32.mrf.mxu0
      %v5327 = vadd.f32 0.0, %v5326
      %v5328 = vpop.f32.mrf.mxu0
      %5329 = vmatprep.mubr.bf16.mxu0 0
      %5330 = vmatmul.mubr.bf16.gmra.mxu0 %v5287
      %v5331 = vpop.f32.mrf.mxu0
      %v5332 = vadd.f32 0.0, %v5331
      %v5333 = vpop.f32.mrf.mxu0
      %v5334 = vpop.f32.mrf.mxu0
      %v5335 = vadd.f32 0.0, %v5334
      %v5336 = vpop.f32.mrf.mxu0
      %5337 = vdwg.mxu0
      %v5338 = vadd.f32 %v5246, %v5324
      %v5339 = vadd.f32 %v5247, %v5327
      %v5340 = vadd.f32 %v5248, %v5332
      %v5341 = vadd.f32 %v5249, %v5335
      %v5342 = vld [vmem:[%s242 + $0x90] sm:$0xc]
      %v5343 = vld [vmem:[%s242 + $0x94] sm:$0xf]
      %v5344 = vld [vmem:[%s242 + $0x98] sm:$0xf]
      %v5345 = vld [vmem:[%s242 + $0x9c] sm:$0xf]
      %v5346 = vld [vmem:[%s242 + $0xa0] sm:$0x3]
      %v5347 = vld [vmem:[%s2445] sm:$0xf]
      %v5348 = vld [vmem:[%s2445 + $0x4] sm:$0xf]
      %v5349 = vld [vmem:[%s2445 + $0x8] sm:$0xf]
      %v5350 = vld [vmem:[%s2445 + $0xc] sm:$0xf]
      %v5351 = vld [vmem:[%s2445 + $0x10] sm:$0xf]
      %v5352 = vld [vmem:[%s2445 + $0x14] sm:$0xf]
      %v5358 = vunpack.c.l.b16 %v5342
      %v5359 = vunpack.c.l.b16 %v5343
      %v5360 = vunpack.c.l.b16 %v5344
      %v5361 = vunpack.c.l.b16 %v5345
      %v5362 = vunpack.c.l.b16 %v5346
      %v5363 = vpack.c.b16 %v5359, %v5358
      %v5364 = vpack.c.b16 %v5361, %v5360
      %v5365 = vpack.c.b16 %v5362, %v5362
      %v5366 = vrot.slane %v5363, 2
      %v5367 = vrot.slane %v5364, 2
      %v5368 = vsel %vm2119, %v5366, %v5367
      %v5369 = vrot.slane %v5365, 2
      %v5370 = vsel %vm2119, %v5367, %v5369
      %v5377 = vunpack.c.l.b16 %v5347
      %v5378 = vunpack.c.l.b16 %v5348
      %v5379 = vunpack.c.l.b16 %v5349
      %v5380 = vunpack.c.l.b16 %v5350
      %v5381 = vunpack.c.l.b16 %v5351
      %v5382 = vunpack.c.l.b16 %v5352
      %v5383 = vpack.c.b16 %v5378, %v5377
      %v5384 = vpack.c.b16 %v5380, %v5379
      %v5385 = vpack.c.b16 %v5382, %v5381
      %v5390 = vsel %vm545, %v5368, 0
      %v5393 = vsel %vm545, %v5370, 0
      %5395 = vmatprep.subr.bf16.mxu0 0
      %5396 = vmatpush1.bf16.msra.mxu0 0
      %5397 = vmatprep.subr.bf16.mxu0 0
      %5398 = vmatpush1.bf16.msra.mxu0 0
      %5399 = vmatprep.subr.bf16.mxu0 0
      %5400 = vmatpush1.bf16.msra.mxu0 0
      %5401 = vmatprep.subr.bf16.mxu0 0
      %5402 = vmatpush1.bf16.msra.mxu0 0
      %5403 = vmatprep.subr.bf16.mxu0 0
      %5404 = vmatpush1.bf16.msra.mxu0 0
      %5405 = vmatprep.subr.bf16.mxu0 0
      %5406 = vmatpush1.bf16.msra.mxu0 %v5385
      %5407 = vmatprep.subr.bf16.mxu0 0
      %5408 = vmatpush1.bf16.msra.mxu0 %v5384
      %5409 = vmatprep.subr.bf16.mxu0 0
      %5410 = vmatpush1.bf16.msra.mxu0 %v5383
      %5411 = vmatprep.subr.bf16.mxu0 0
      %5412 = vmatpush2.bf16.msra.mxu0 0
      %5413 = vmatprep.subr.bf16.mxu0 0
      %5414 = vmatpush2.bf16.msra.mxu0 0
      %5415 = vmatprep.subr.bf16.mxu0 0
      %5416 = vmatpush2.bf16.msra.mxu0 0
      %5417 = vmatprep.subr.bf16.mxu0 0
      %5418 = vmatpush2.bf16.msra.mxu0 0
      %5419 = vmatprep.subr.bf16.mxu0 0
      %5420 = vmatpush2.bf16.msra.mxu0 0
      %5421 = vmatprep.subr.bf16.mxu0 0
      %5422 = vmatpush2.bf16.msra.mxu0 0
      %5423 = vmatprep.subr.bf16.mxu0 0
      %5424 = vmatpush2.bf16.msra.mxu0 0
      %5425 = vmatprep.subr.bf16.mxu0 0
      %5426 = vmatpush2.bf16.msra.mxu0 0
      %5427 = vmatprep.mubr.bf16.mxu0 0
      %5428 = vmatmul.mubr.bf16.gmra.mxu0 %v5390
      %v5429 = vpop.f32.mrf.mxu0
      %v5430 = vadd.f32 0.0, %v5429
      %v5431 = vpop.f32.mrf.mxu0
      %v5432 = vpop.f32.mrf.mxu0
      %v5433 = vadd.f32 0.0, %v5432
      %v5434 = vpop.f32.mrf.mxu0
      %5435 = vmatprep.mubr.bf16.mxu0 0
      %5436 = vmatmul.mubr.bf16.gmra.mxu0 %v5393
      %v5437 = vpop.f32.mrf.mxu0
      %v5438 = vadd.f32 0.0, %v5437
      %v5439 = vpop.f32.mrf.mxu0
      %v5440 = vpop.f32.mrf.mxu0
      %v5441 = vadd.f32 0.0, %v5440
      %v5442 = vpop.f32.mrf.mxu0
      %5443 = vdwg.mxu0
      %v5444 = vadd.f32 %v5338, %v5430
      %v5445 = vadd.f32 %v5339, %v5433
      %v5446 = vadd.f32 %v5340, %v5438
      %v5447 = vadd.f32 %v5341, %v5441
      %v5448 = vld [vmem:[%s242 + $0xa0] sm:$0x7]
      %v5449 = vld [vmem:[%s2828] sm:$0xf]
      %v5450 = vld [vmem:[%s2828 + $0x4] sm:$0xf]
      %v5451 = vld [vmem:[%s2828 + $0x8] sm:$0xf]
      %v5452 = vld [vmem:[%s2828 + $0xc] sm:$0xf]
      %v5453 = vld [vmem:[%s2828 + $0x10] sm:$0xf]
      %v5454 = vld [vmem:[%s2828 + $0x14] sm:$0xf]
      %v5456 = vunpack.c.l.b16 %v5448
      %v5457 = vpack.c.b16 %v5456, %v5456
      %v5459 = vshrl.u32 %v5363, 16
      %v5461 = vrot.slane %v5459, 2
      %v5462 = vshll.u32 %v5363, 16
      %v5464 = vrot.slane %v5462, 3
      %v5465 = vor.u32 %v5461, %v5464
      %v5467 = vshrl.u32 %v5364, 16
      %v5469 = vrot.slane %v5467, 2
      %v5470 = vshll.u32 %v5364, 16
      %v5472 = vrot.slane %v5470, 3
      %v5473 = vor.u32 %v5469, %v5472
      %v5474 = vsel %vm2838, %v5465, %v5473
      %v5476 = vshrl.u32 %v5457, 16
      %v5478 = vrot.slane %v5476, 2
      %v5479 = vshll.u32 %v5457, 16
      %v5481 = vrot.slane %v5479, 3
      %v5482 = vor.u32 %v5478, %v5481
      %v5483 = vsel %vm2838, %v5473, %v5482
      %v5490 = vunpack.c.l.b16 %v5449
      %v5491 = vunpack.c.l.b16 %v5450
      %v5492 = vunpack.c.l.b16 %v5451
      %v5493 = vunpack.c.l.b16 %v5452
      %v5494 = vunpack.c.l.b16 %v5453
      %v5495 = vunpack.c.l.b16 %v5454
      %v5496 = vpack.c.b16 %v5491, %v5490
      %v5497 = vpack.c.b16 %v5493, %v5492
      %v5498 = vpack.c.b16 %v5495, %v5494
      %v5503 = vsel %vm545, %v5474, 0
      %v5506 = vsel %vm545, %v5483, 0
      %5508 = vmatprep.subr.bf16.mxu0 0
      %5509 = vmatpush1.bf16.msra.mxu0 0
      %5510 = vmatprep.subr.bf16.mxu0 0
      %5511 = vmatpush1.bf16.msra.mxu0 0
      %5512 = vmatprep.subr.bf16.mxu0 0
      %5513 = vmatpush1.bf16.msra.mxu0 0
      %5514 = vmatprep.subr.bf16.mxu0 0
      %5515 = vmatpush1.bf16.msra.mxu0 0
      %5516 = vmatprep.subr.bf16.mxu0 0
      %5517 = vmatpush1.bf16.msra.mxu0 0
      %5518 = vmatprep.subr.bf16.mxu0 0
      %5519 = vmatpush1.bf16.msra.mxu0 %v5498
      %5520 = vmatprep.subr.bf16.mxu0 0
      %5521 = vmatpush1.bf16.msra.mxu0 %v5497
      %5522 = vmatprep.subr.bf16.mxu0 0
      %5523 = vmatpush1.bf16.msra.mxu0 %v5496
      %5524 = vmatprep.subr.bf16.mxu0 0
      %5525 = vmatpush2.bf16.msra.mxu0 0
      %5526 = vmatprep.subr.bf16.mxu0 0
      %5527 = vmatpush2.bf16.msra.mxu0 0
      %5528 = vmatprep.subr.bf16.mxu0 0
      %5529 = vmatpush2.bf16.msra.mxu0 0
      %5530 = vmatprep.subr.bf16.mxu0 0
      %5531 = vmatpush2.bf16.msra.mxu0 0
      %5532 = vmatprep.subr.bf16.mxu0 0
      %5533 = vmatpush2.bf16.msra.mxu0 0
      %5534 = vmatprep.subr.bf16.mxu0 0
      %5535 = vmatpush2.bf16.msra.mxu0 0
      %5536 = vmatprep.subr.bf16.mxu0 0
      %5537 = vmatpush2.bf16.msra.mxu0 0
      %5538 = vmatprep.subr.bf16.mxu0 0
      %5539 = vmatpush2.bf16.msra.mxu0 0
      %5540 = vmatprep.mubr.bf16.mxu0 0
      %5541 = vmatmul.mubr.bf16.gmra.mxu0 %v5503
      %v5542 = vpop.f32.mrf.mxu0
      %v5543 = vadd.f32 0.0, %v5542
      %v5544 = vpop.f32.mrf.mxu0
      %v5545 = vpop.f32.mrf.mxu0
      %v5546 = vadd.f32 0.0, %v5545
      %v5547 = vpop.f32.mrf.mxu0
      %5548 = vmatprep.mubr.bf16.mxu0 0
      %5549 = vmatmul.mubr.bf16.gmra.mxu0 %v5506
      %v5550 = vpop.f32.mrf.mxu0
      %v5551 = vadd.f32 0.0, %v5550
      %v5552 = vpop.f32.mrf.mxu0
      %v5553 = vpop.f32.mrf.mxu0
      %v5554 = vadd.f32 0.0, %v5553
      %v5555 = vpop.f32.mrf.mxu0
      %5556 = vdwg.mxu0
      %v5557 = vadd.f32 %v5444, %v5543
      %v5558 = vadd.f32 %v5445, %v5546
      %v5559 = vadd.f32 %v5446, %v5551
      %v5560 = vadd.f32 %v5447, %v5554
      %v5561 = vld [vmem:[%s242 + $0x90] sm:$0x8]
      %v5562 = vld [vmem:[%s3251] sm:$0xf]
      %v5563 = vld [vmem:[%s3251 + $0x4] sm:$0xf]
      %v5564 = vld [vmem:[%s3251 + $0x8] sm:$0xf]
      %v5565 = vld [vmem:[%s3251 + $0xc] sm:$0xf]
      %v5566 = vld [vmem:[%s3251 + $0x10] sm:$0xf]
      %v5567 = vld [vmem:[%s3251 + $0x14] sm:$0xf]
      %v5569 = vunpack.c.l.b16 %v5561
      %v5570 = vpack.c.b16 %v5359, %v5569
      %v5571 = vrot.slane %v5570, 3
      %v5572 = vrot.slane %v5364, 3
      %v5573 = vsel %vm3261, %v5571, %v5572
      %v5574 = vrot.slane %v5457, 3
      %v5575 = vsel %vm3261, %v5572, %v5574
      %v5582 = vunpack.c.l.b16 %v5562
      %v5583 = vunpack.c.l.b16 %v5563
      %v5584 = vunpack.c.l.b16 %v5564
      %v5585 = vunpack.c.l.b16 %v5565
      %v5586 = vunpack.c.l.b16 %v5566
      %v5587 = vunpack.c.l.b16 %v5567
      %v5588 = vpack.c.b16 %v5583, %v5582
      %v5589 = vpack.c.b16 %v5585, %v5584
      %v5590 = vpack.c.b16 %v5587, %v5586
      %v5595 = vsel %vm545, %v5573, 0
      %v5598 = vsel %vm545, %v5575, 0
      %5600 = vmatprep.subr.bf16.mxu0 0
      %5601 = vmatpush1.bf16.msra.mxu0 0
      %5602 = vmatprep.subr.bf16.mxu0 0
      %5603 = vmatpush1.bf16.msra.mxu0 0
      %5604 = vmatprep.subr.bf16.mxu0 0
      %5605 = vmatpush1.bf16.msra.mxu0 0
      %5606 = vmatprep.subr.bf16.mxu0 0
      %5607 = vmatpush1.bf16.msra.mxu0 0
      %5608 = vmatprep.subr.bf16.mxu0 0
      %5609 = vmatpush1.bf16.msra.mxu0 0
      %5610 = vmatprep.subr.bf16.mxu0 0
      %5611 = vmatpush1.bf16.msra.mxu0 %v5590
      %5612 = vmatprep.subr.bf16.mxu0 0
      %5613 = vmatpush1.bf16.msra.mxu0 %v5589
      %5614 = vmatprep.subr.bf16.mxu0 0
      %5615 = vmatpush1.bf16.msra.mxu0 %v5588
      %5616 = vmatprep.subr.bf16.mxu0 0
      %5617 = vmatpush2.bf16.msra.mxu0 0
      %5618 = vmatprep.subr.bf16.mxu0 0
      %5619 = vmatpush2.bf16.msra.mxu0 0
      %5620 = vmatprep.subr.bf16.mxu0 0
      %5621 = vmatpush2.bf16.msra.mxu0 0
      %5622 = vmatprep.subr.bf16.mxu0 0
      %5623 = vmatpush2.bf16.msra.mxu0 0
      %5624 = vmatprep.subr.bf16.mxu0 0
      %5625 = vmatpush2.bf16.msra.mxu0 0
      %5626 = vmatprep.subr.bf16.mxu0 0
      %5627 = vmatpush2.bf16.msra.mxu0 0
      %5628 = vmatprep.subr.bf16.mxu0 0
      %5629 = vmatpush2.bf16.msra.mxu0 0
      %5630 = vmatprep.subr.bf16.mxu0 0
      %5631 = vmatpush2.bf16.msra.mxu0 0
      %5632 = vmatprep.mubr.bf16.mxu0 0
      %5633 = vmatmul.mubr.bf16.gmra.mxu0 %v5595
      %v5634 = vpop.f32.mrf.mxu0
      %v5635 = vadd.f32 0.0, %v5634
      %v5636 = vpop.f32.mrf.mxu0
      %v5637 = vpop.f32.mrf.mxu0
      %v5638 = vadd.f32 0.0, %v5637
      %v5639 = vpop.f32.mrf.mxu0
      %5640 = vmatprep.mubr.bf16.mxu0 0
      %5641 = vmatmul.mubr.bf16.gmra.mxu0 %v5598
      %v5642 = vpop.f32.mrf.mxu0
      %v5643 = vadd.f32 0.0, %v5642
      %v5644 = vpop.f32.mrf.mxu0
      %v5645 = vpop.f32.mrf.mxu0
      %v5646 = vadd.f32 0.0, %v5645
      %v5647 = vpop.f32.mrf.mxu0
      %5648 = vdwg.mxu0
      %v5649 = vadd.f32 %v5557, %v5635
      %v5650 = vadd.f32 %v5558, %v5638
      %v5651 = vadd.f32 %v5559, %v5643
      %v5652 = vadd.f32 %v5560, %v5646
      %v5653 = vadd.f32 %v5649, %v3558
      %v5654 = vadd.f32 %v5650, %v3558
      %v5655 = vadd.f32 %v5651, %v3558
      %v5656 = vadd.f32 %v5652, %v3558
      %v5657 = vmul.f32 %v262, %v5653
      %v5658 = vmul.f32 %v262, %v5654
      %v5659 = vmul.f32 %v262, %v5655
      %v5660 = vmul.f32 %v262, %v5656
      %v5661 = vtanh.pop %v5657
      %v5662 = vtanh.pop %v5658
      %v5663 = vtanh.pop %v5659
      %v5664 = vtanh.pop %v5660
      %v5665 = vmul.f32 %v262, %v5661
      %v5666 = vmul.f32 %v262, %v5662
      %v5667 = vmul.f32 %v262, %v5663
      %v5668 = vmul.f32 %v262, %v5664
      %v5669 = vadd.f32 %v5665, %v263
      %v5670 = vadd.f32 %v5666, %v263
      %v5671 = vadd.f32 %v5667, %v263
      %v5672 = vadd.f32 %v5668, %v263
      %v5673 = vld [vmem:[%s247 + $0x100] sm:$0xff]
      %v5674 = vld [vmem:[%s247 + $0x108] sm:$0xff]
      %v5675 = vld [vmem:[%s247 + $0x110] sm:$0xff]
      %v5676 = vld [vmem:[%s247 + $0x118] sm:$0xff]
      %5681 = vrot.lane.b32.xlu0 %v5673, 64
      %v5682 = vpop.permute.xlu0 %5681
      %5683 = vrot.lane.b32.xlu0 %v5674, 64
      %v5684 = vpop.permute.xlu0 %5683
      %5685 = vrot.lane.b32.xlu0 %v5675, 64
      %v5686 = vpop.permute.xlu0 %5685
      %5687 = vrot.lane.b32.xlu0 %v5676, 64
      %v5688 = vpop.permute.xlu0 %5687
      %v5693 = vmul.f32 %v5669, %v5682
      %v5694 = vmul.f32 %v5670, %v5684
      %v5695 = vmul.f32 %v5671, %v5686
      %v5696 = vmul.f32 %v5672, %v5688
      %5701 = vrot.lane.b32.xlu0 %v5669, 32
      %v5702 = vpop.permute.xlu0 %5701
      %5703 = vrot.lane.b32.xlu0 %v5670, 32
      %v5704 = vpop.permute.xlu0 %5703
      %5705 = vrot.lane.b32.xlu0 %v5671, 32
      %v5706 = vpop.permute.xlu0 %5705
      %5707 = vrot.lane.b32.xlu0 %v5672, 32
      %v5708 = vpop.permute.xlu0 %5707
      %v5713 = vmul.f32 %v5669, %v5702
      %v5714 = vmul.f32 %v5670, %v5704
      %v5715 = vmul.f32 %v5671, %v5706
      %v5716 = vmul.f32 %v5672, %v5708
      %5721 = vrot.lane.b32.xlu0 %v5713, 32
      %v5722 = vpop.permute.xlu0 %5721
      %5723 = vrot.lane.b32.xlu0 %v5714, 32
      %v5724 = vpop.permute.xlu0 %5723
      %5725 = vrot.lane.b32.xlu0 %v5715, 32
      %v5726 = vpop.permute.xlu0 %5725
      %5727 = vrot.lane.b32.xlu0 %v5716, 32
      %v5728 = vpop.permute.xlu0 %5727
      %v5733 = vadd.f32 %v5693, %v5722
      %v5734 = vadd.f32 %v5694, %v5724
      %v5735 = vadd.f32 %v5695, %v5726
      %v5736 = vadd.f32 %v5696, %v5728
      %v5737 = vtanh.pop %v5733
      %v5738 = vtanh.pop %v5734
      %v5739 = vtanh.pop %v5735
      %v5740 = vtanh.pop %v5736
      %5745 = vrot.lane.b32.xlu0 %v5737, 32
      %v5746 = vpop.permute.xlu0 %5745
      %5747 = vrot.lane.b32.xlu0 %v5738, 32
      %v5748 = vpop.permute.xlu0 %5747
      %5749 = vrot.lane.b32.xlu0 %v5739, 32
      %v5750 = vpop.permute.xlu0 %5749
      %5751 = vrot.lane.b32.xlu0 %v5740, 32
      %v5752 = vpop.permute.xlu0 %5751
      %v5757 = vmul.f32 %v5669, %v5746
      %v5758 = vmul.f32 %v5670, %v5748
      %v5759 = vmul.f32 %v5671, %v5750
      %v5760 = vmul.f32 %v5672, %v5752
      %5765 = vrot.lane.b32.xlu0 %v5733, 64
      %v5766 = vpop.permute.xlu0 %5765
      %5767 = vrot.lane.b32.xlu0 %v5734, 64
      %v5768 = vpop.permute.xlu0 %5767
      %5769 = vrot.lane.b32.xlu0 %v5735, 64
      %v5770 = vpop.permute.xlu0 %5769
      %5771 = vrot.lane.b32.xlu0 %v5736, 64
      %v5772 = vpop.permute.xlu0 %5771
      %5777 = vst.msk [vmem:[%s257 + $0x100] sm:$0xff] %vm4552, %v5766
      %5778 = vst.msk [vmem:[%s257 + $0x108] sm:$0xff] %vm4552, %v5768
      %5779 = vst.msk [vmem:[%s257 + $0x110] sm:$0xff] %vm4552, %v5770
      %5780 = vst.msk [vmem:[%s257 + $0x118] sm:$0xff] %vm4552, %v5772
      %5785 = vrot.lane.b32.xlu0 %v5757, 32
      %v5786 = vpop.permute.xlu0 %5785
      %5787 = vrot.lane.b32.xlu0 %v5758, 32
      %v5788 = vpop.permute.xlu0 %5787
      %5789 = vrot.lane.b32.xlu0 %v5759, 32
      %v5790 = vpop.permute.xlu0 %5789
      %5791 = vrot.lane.b32.xlu0 %v5760, 32
      %v5792 = vpop.permute.xlu0 %5791
      %5797 = vst.msk [vmem:[%s252 + $0x100] sm:$0xff] %vm4552, %v5786
      %5798 = vst.msk [vmem:[%s252 + $0x108] sm:$0xff] %vm4552, %v5788
      %5799 = vst.msk [vmem:[%s252 + $0x110] sm:$0xff] %vm4552, %v5790
      %5800 = vst.msk [vmem:[%s252 + $0x118] sm:$0xff] %vm4552, %v5792
      %p5801 = scmp.lt.s32.totalorder %s17, 1
      %s5802 = scalar_select %p5801, %s17, 1
      %s5803 = smul.addr %s5802, 36
      %s5804 = smul.addr %s5803, 8
      %s5805 = scalar_lea.vmem %s4, %s5804
      %p5806 = scmp.lt.s32.totalorder %s17, 1
      %s5807 = scalar_select %p5806, %s17, 1
      %s5808 = smul.addr %s5807, 36
      %s5809 = smul.addr %s5808, 8
      %s5810 = scalar_lea.vmem %s5, %s5809
      // Predicated region
      $region37: #{_lambda_.1} parent=35 // pred_check
        %p5811 = pneg %p129
      $region38: #{_lambda_.1} parent=35 // pred_check_branch
        %5813 = sbr.rel (%p5811) target = $region40
      $region39: #{_lambda_.1} parent=35 // pred_region
        _
      $region40: #{_lambda_.1} parent=35 // pred_fallthru
        _
      // Predicated region
      $region41: #{_lambda_.1} parent=35 // pred_check
        %p5814 = pneg %p155
      $region42: #{_lambda_.1} parent=35 // pred_check_branch
        %5816 = sbr.rel (%p5814) target = $region44
      $region43: #{_lambda_.1} parent=35 // pred_region
        _
      $region44: #{_lambda_.1} parent=35 // pred_fallthru
        _
    $region36: #{_lambda_.1} parent=5 // pred_fallthru
      _
    %p5817 = scmp.le.s32.totalorder 2, %s12
    // Predicated region
    $region45: #{_lambda_.1} parent=5 // pred_check
      %p5818 = pneg %p5817
    $region46: #{_lambda_.1} parent=5 // pred_check_branch
      %5820 = sbr.rel (%p5818) target = $region48
    $region47: #{_lambda_.1} parent=5 // pred_region
      %s5821 = ssub.s32 %s12, 2
      // Predicated region
      $region49: #{_lambda_.1} parent=47 // pred_check
        %p5822 = pneg %p135
      $region50: #{_lambda_.1} parent=47 // pred_check_branch
        %5824 = sbr.rel (%p5822) target = $region52
      $region51: #{_lambda_.1} parent=47 // pred_region
        %p5825 = scmp.lt.s32.totalorder %s18, 1
        %s5826 = scalar_select %p5825, %s18, 1
        %s5827 = smul.addr %s5826, 36
        %s5828 = smul.addr %s5827, 8
        %s5829 = scalar_lea.vmem %s4, %s5828
      $region52: #{_lambda_.1} parent=47 // pred_fallthru
        _
      // Predicated region
      $region53: #{_lambda_.1} parent=47 // pred_check
        %p5830 = pneg %p161
      $region54: #{_lambda_.1} parent=47 // pred_check_branch
        %5832 = sbr.rel (%p5830) target = $region56
      $region55: #{_lambda_.1} parent=47 // pred_region
        %p5833 = scmp.lt.s32.totalorder %s18, 1
        %s5834 = scalar_select %p5833, %s18, 1
        %s5835 = smul.addr %s5834, 36
        %s5836 = smul.addr %s5835, 8
        %s5837 = scalar_lea.vmem %s5, %s5836
      $region56: #{_lambda_.1} parent=47 // pred_fallthru
        _
    $region48: #{_lambda_.1} parent=5 // pred_fallthru
      _
  $region6: #{_lambda_.1} parent=0 // loop_footer
    %s16 = sadd.s32 1, %s12
  $region7: #{_lambda_.1} parent=0 // loop_footer_branch
    %11 = sbr.rel target = $region3
  $region8: #{_lambda_.1} parent=0 // loop_exit
    _

</llo_original>
